<compile_context>
chip_gen: v6e
topology: v6e:2x2x1
jax: 0.10.0
libtpu: 0.0.40
codegen_flags: <defaults>
</compile_context>

<pallas_src>
import numpy as np

import jax
import jax.numpy as jnp
from jax import lax
from jax.experimental import pallas as pl
from jax.experimental.pallas import tpu as pltpu


# ----------------------------- fused Pallas kernel ---------------------------
# Per grid step: one image.  In-kernel layouts (2-D, lane dim last):
#   conv1 activations  y1 : [28, 6*28]   columns = c*28  + ow
#   pooled #1          p1 : [14, 6*14]   columns = ci*14 + w
#   conv2 activations  y2 : [10, 16*10]  columns = co*10 + ow
#   pooled #2          p2 : [ 5, 16*5]   columns = co*5  + tw
# Conv weights are pre-packed into banded matrices A[i] so that
#   conv_out = sum_i  rows_shifted_by_i(activations) @ A[i]
# i.e. shift-and-accumulate conv with the width/channel mixing done on the MXU.
# Pooling matrices Ph / Pw implement the 2x2 mean as two matmuls.

def _lenet_kernel(x_ref, a1_ref, bb1_ref, ph1_ref, pw1_ref,
                  a2_ref, bb2_ref, ph2_ref, pw2_ref,
                  wfc1_ref, bfc1_ref, wfc2_ref, bfc2_ref, wfc3_ref, bfc3_ref,
                  out_ref):
    f32 = jnp.float32
    xp = x_ref[0]                                              # [32, 32] padded image

    # conv1 (1->6, 5x5, pad=2) + bias + relu
    y1 = jnp.dot(xp[0:28, :], a1_ref[0], preferred_element_type=f32)
    for i in range(1, 5):
        y1 = y1 + jnp.dot(xp[i:i + 28, :], a1_ref[i], preferred_element_type=f32)
    y1 = jnp.maximum(y1 + bb1_ref[...], 0.0)                   # [28, 168]

    # fused 2x2 average pool #1
    p1 = jnp.dot(ph1_ref[...],
                 jnp.dot(y1, pw1_ref[...], preferred_element_type=f32),
                 preferred_element_type=f32)                   # [14, 84]

    # conv2 (6->16, 5x5, valid) + bias + relu
    y2 = jnp.dot(p1[0:10, :], a2_ref[0], preferred_element_type=f32)
    for i in range(1, 5):
        y2 = y2 + jnp.dot(p1[i:i + 10, :], a2_ref[i], preferred_element_type=f32)
    y2 = jnp.maximum(y2 + bb2_ref[...], 0.0)                   # [10, 160]

    # fused 2x2 average pool #2
    p2 = jnp.dot(ph2_ref[...],
                 jnp.dot(y2, pw2_ref[...], preferred_element_type=f32),
                 preferred_element_type=f32)                   # [5, 80]

    # fc1 + relu (torch NCHW flatten permutation folded into wfc1 packing)
    h = bfc1_ref[...]                                          # [1, 120]
    for t in range(5):
        h = h + jnp.dot(p2[t:t + 1, :], wfc1_ref[t], preferred_element_type=f32)
    h = jnp.maximum(h, 0.0)

    # fc2 + relu, fc3
    h = jnp.maximum(jnp.dot(h, wfc2_ref[...], preferred_element_type=f32)
                    + bfc2_ref[...], 0.0)                      # [1, 84]
    out_ref[0] = (jnp.dot(h, wfc3_ref[...], preferred_element_type=f32)
                  + bfc3_ref[...])                             # [1, 10]


# --------------------------- one-time weight packing --------------------------

_PACKED_ORDER = ("a1", "bb1", "ph1", "pw1", "a2", "bb2", "ph2", "pw2",
                 "wfc1", "bfc1", "wfc2", "bfc2", "wfc3", "bfc3")


def _pool_matrices(n_chan, in_hw):
    """Row / column matrices implementing a 2x2 mean pool as matmuls."""
    out_hw = in_hw // 2
    ph = np.zeros((out_hw, in_hw), np.float32)
    for t in range(out_hw):
        ph[t, 2 * t] = 0.5
        ph[t, 2 * t + 1] = 0.5
    pw = np.zeros((n_chan * in_hw, n_chan * out_hw), np.float32)
    for c in range(n_chan):
        for t in range(out_hw):
            pw[c * in_hw + 2 * t, c * out_hw + t] = 0.5
            pw[c * in_hw + 2 * t + 1, c * out_hw + t] = 0.5
    return ph, pw


def pack_params(params):
    """One-time host-side packing of torch-layout params into kernel layout."""
    w1 = np.asarray(params["conv1_w"], np.float32)   # [6, 1, 5, 5]
    b1 = np.asarray(params["conv1_b"], np.float32)
    w2 = np.asarray(params["conv2_w"], np.float32)   # [16, 6, 5, 5]
    b2 = np.asarray(params["conv2_b"], np.float32)
    fw1 = np.asarray(params["fc1_w"], np.float32)    # [120, 400] (torch [out, in])
    fb1 = np.asarray(params["fc1_b"], np.float32)
    fw2 = np.asarray(params["fc2_w"], np.float32)    # [84, 120]
    fb2 = np.asarray(params["fc2_b"], np.float32)
    fw3 = np.asarray(params["fc3_w"], np.float32)    # [10, 84]
    fb3 = np.asarray(params["fc3_b"], np.float32)

    # conv1 banded matrices: a1[i, ow + j, c*28 + ow] = w1[c, 0, i, j]
    a1 = np.zeros((5, 32, 6 * 28), np.float32)
    for i in range(5):
        for c in range(6):
            for ow in range(28):
                for j in range(5):
                    a1[i, ow + j, c * 28 + ow] = w1[c, 0, i, j]
    bb1 = np.repeat(b1, 28)[None, :]                 # [1, 168]
    ph1, pw1 = _pool_matrices(6, 28)                 # [14, 28], [168, 84]

    # conv2 banded matrices: a2[i, ci*14 + ow + j, co*10 + ow] = w2[co, ci, i, j]
    a2 = np.zeros((5, 6 * 14, 16 * 10), np.float32)
    for i in range(5):
        for co in range(16):
            for ci in range(6):
                for ow in range(10):
                    for j in range(5):
                        a2[i, ci * 14 + ow + j, co * 10 + ow] = w2[co, ci, i, j]
    bb2 = np.repeat(b2, 10)[None, :]                 # [1, 160]
    ph2, pw2 = _pool_matrices(16, 10)                # [5, 10], [160, 80]

    # fc1 with the torch NCHW flatten permutation folded in:
    #   wfc1[th, co*5 + tw, n] = fc1_w[n, co*25 + th*5 + tw]
    wfc1 = np.zeros((5, 80, 120), np.float32)
    for th in range(5):
        for co in range(16):
            for tw in range(5):
                wfc1[th, co * 5 + tw, :] = fw1[:, co * 25 + th * 5 + tw]

    packed = dict(
        a1=a1, bb1=bb1, ph1=ph1, pw1=pw1,
        a2=a2, bb2=bb2, ph2=ph2, pw2=pw2,
        wfc1=wfc1, bfc1=fb1[None, :],
        wfc2=fw2.T.copy(), bfc2=fb2[None, :],
        wfc3=fw3.T.copy(), bfc3=fb3[None, :],
    )
    return {k: jnp.asarray(v) for k, v in packed.items()}


# --------------------------------- forward -----------------------------------

def _whole_spec(arr):
    """Whole-array VMEM block with a constant index map."""
    if arr.ndim == 2:
        return pl.BlockSpec(arr.shape, lambda b: (0, 0))
    return pl.BlockSpec(arr.shape, lambda b: (0, 0, 0))


def lenet_forward(packed, x):
    """x: [B, 1, 28, 28] float32 (NCHW, like PyTorch) -> logits [B, 10]."""
    B = x.shape[0]
    xp = jnp.pad(x[:, 0, :, :], ((0, 0), (2, 2), (2, 2)))      # [B, 32, 32]

    weights = [packed[k] for k in _PACKED_ORDER]
    out = pl.pallas_call(
        _lenet_kernel,
        grid=(B,),
        in_specs=[pl.BlockSpec((1, 32, 32), lambda b: (b, 0, 0))]
                 + [_whole_spec(w) for w in weights],
        out_specs=pl.BlockSpec((1, 1, 10), lambda b: (b, 0, 0)),
        out_shape=jax.ShapeDtypeStruct((B, 1, 10), jnp.float32),
        compiler_params=pltpu.CompilerParams(
            dimension_semantics=("parallel",),       # batch shards over v7x's 2 TCs
            vmem_limit_bytes=32 * 1024 * 1024),
    )(xp, *weights)
    return out.reshape(B, 10)


# ------------------------------ params & reference ----------------------------

def init_params(key):
    ks = jax.random.split(key, 10)
    p = {}
    p["conv1_w"] = 0.1 * jax.random.normal(ks[0], (6, 1, 5, 5), jnp.float32)
    p["conv1_b"] = 0.1 * jax.random.normal(ks[1], (6,), jnp.float32)
    p["conv2_w"] = 0.1 * jax.random.normal(ks[2], (16, 6, 5, 5), jnp.float32)
    p["conv2_b"] = 0.1 * jax.random.normal(ks[3], (16,), jnp.float32)
    p["fc1_w"] = 0.1 * jax.random.normal(ks[4], (120, 400), jnp.float32)  # torch [out, in]
    p["fc1_b"] = 0.1 * jax.random.normal(ks[5], (120,), jnp.float32)
    p["fc2_w"] = 0.1 * jax.random.normal(ks[6], (84, 120), jnp.float32)
    p["fc2_b"] = 0.1 * jax.random.normal(ks[7], (84,), jnp.float32)
    p["fc3_w"] = 0.1 * jax.random.normal(ks[8], (10, 84), jnp.float32)
    p["fc3_b"] = 0.1 * jax.random.normal(ks[9], (10,), jnp.float32)
    return p


def lenet_reference(params, x):
    """Plain-JAX reference with the exact PyTorch Net.forward semantics."""
    hp = lax.Precision.HIGHEST
    y = lax.conv_general_dilated(x, params["conv1_w"], (1, 1), ((2, 2), (2, 2)),
                                 dimension_numbers=("NCHW", "OIHW", "NCHW"),
                                 precision=hp)
    y = jax.nn.relu(y + params["conv1_b"][None, :, None, None])
    B, C, H, W = y.shape
    y = y.reshape(B, C, H // 2, 2, W // 2, 2).mean(axis=(3, 5))
    y = lax.conv_general_dilated(y, params["conv2_w"], (1, 1), ((0, 0), (0, 0)),
                                 dimension_numbers=("NCHW", "OIHW", "NCHW"),
                                 precision=hp)
    y = jax.nn.relu(y + params["conv2_b"][None, :, None, None])
    B, C, H, W = y.shape
    y = y.reshape(B, C, H // 2, 2, W // 2, 2).mean(axis=(3, 5))
    y = y.reshape(B, -1)                                       # torch flatten(1, -1)
    y = jax.nn.relu(jnp.dot(y, params["fc1_w"].T, precision=hp) + params["fc1_b"])
    y = jax.nn.relu(jnp.dot(y, params["fc2_w"].T, precision=hp) + params["fc2_b"])
    return jnp.dot(y, params["fc3_w"].T, precision=hp) + params["fc3_b"]


if __name__ == "__main__":
    key = jax.random.PRNGKey(0)
    k_params, k_x = jax.random.split(key)
    params = init_params(k_params)
    packed = pack_params(params)                 # one-time weight packing (host side)
    x = jax.random.normal(k_x, (2, 1, 28, 28), jnp.float32)

    out = jax.block_until_ready(jax.jit(lenet_forward)(packed, x))
    assert out.shape == (2, 10) and out.dtype == jnp.float32

    ref = jax.block_until_ready(jax.jit(lenet_reference)(params, x))
    assert float(jnp.max(jnp.abs(out - ref))) < 5e-2, "kernel/reference mismatch"
    print("KERNEL_OK")
</pallas_src>

<mosaic_0001>
module attributes {stable_mosaic.version = 11 : i64} {
  func.func @_lenet_kernel(%arg0: i32, %arg1: memref<1x32x32xf32, #tpu.memory_space<vmem>>, %arg2: memref<5x32x168xf32, #tpu.memory_space<vmem>>, %arg3: memref<1x168xf32, #tpu.memory_space<vmem>>, %arg4: memref<14x28xf32, #tpu.memory_space<vmem>>, %arg5: memref<168x84xf32, #tpu.memory_space<vmem>>, %arg6: memref<5x84x160xf32, #tpu.memory_space<vmem>>, %arg7: memref<1x160xf32, #tpu.memory_space<vmem>>, %arg8: memref<5x10xf32, #tpu.memory_space<vmem>>, %arg9: memref<160x80xf32, #tpu.memory_space<vmem>>, %arg10: memref<5x80x120xf32, #tpu.memory_space<vmem>>, %arg11: memref<1x120xf32, #tpu.memory_space<vmem>>, %arg12: memref<120x84xf32, #tpu.memory_space<vmem>>, %arg13: memref<1x84xf32, #tpu.memory_space<vmem>>, %arg14: memref<84x10xf32, #tpu.memory_space<vmem>>, %arg15: memref<1x10xf32, #tpu.memory_space<vmem>>, %arg16: memref<1x1x10xf32, #tpu.memory_space<vmem>>) attributes {dimension_semantics = [#tpu.dimension_semantics<parallel>], iteration_bounds = array<i64: 2>, scalar_prefetch = 0 : i64, scratch_operands = 0 : i64, tpu.core_type = #tpu.core_type<tc>, window_params = [{transform_indices = @transform_0, window_bounds = array<i64: 1, 32, 32>}, {pipeline_mode = #tpu.pipeline_mode<synchronous>, transform_indices = @transform_1, window_bounds = array<i64: 5, 32, 168>}, {pipeline_mode = #tpu.pipeline_mode<synchronous>, transform_indices = @transform_2, window_bounds = array<i64: 1, 168>}, {pipeline_mode = #tpu.pipeline_mode<synchronous>, transform_indices = @transform_3, window_bounds = array<i64: 14, 28>}, {pipeline_mode = #tpu.pipeline_mode<synchronous>, transform_indices = @transform_4, window_bounds = array<i64: 168, 84>}, {pipeline_mode = #tpu.pipeline_mode<synchronous>, transform_indices = @transform_5, window_bounds = array<i64: 5, 84, 160>}, {pipeline_mode = #tpu.pipeline_mode<synchronous>, transform_indices = @transform_6, window_bounds = array<i64: 1, 160>}, {pipeline_mode = #tpu.pipeline_mode<synchronous>, transform_indices = @transform_7, window_bounds = array<i64: 5, 10>}, {pipeline_mode = #tpu.pipeline_mode<synchronous>, transform_indices = @transform_8, window_bounds = array<i64: 160, 80>}, {pipeline_mode = #tpu.pipeline_mode<synchronous>, transform_indices = @transform_9, window_bounds = array<i64: 5, 80, 120>}, {pipeline_mode = #tpu.pipeline_mode<synchronous>, transform_indices = @transform_10, window_bounds = array<i64: 1, 120>}, {pipeline_mode = #tpu.pipeline_mode<synchronous>, transform_indices = @transform_11, window_bounds = array<i64: 120, 84>}, {pipeline_mode = #tpu.pipeline_mode<synchronous>, transform_indices = @transform_12, window_bounds = array<i64: 1, 84>}, {pipeline_mode = #tpu.pipeline_mode<synchronous>, transform_indices = @transform_13, window_bounds = array<i64: 84, 10>}, {pipeline_mode = #tpu.pipeline_mode<synchronous>, transform_indices = @transform_14, window_bounds = array<i64: 1, 10>}, {transform_indices = @transform_15, window_bounds = array<i64: 1, 1, 10>}]} {
    %c0 = arith.constant 0 : index
    %c0_0 = arith.constant 0 : index
    %c0_1 = arith.constant 0 : index
    %0 = vector.load %arg1[%c0, %c0_0, %c0_1] : memref<1x32x32xf32, #tpu.memory_space<vmem>>, vector<1x32x32xf32>
    %1 = vector.shape_cast %0 : vector<1x32x32xf32> to vector<32x32xf32>
    %2 = vector.extract_strided_slice %1 {offsets = [0, 0], sizes = [28, 32], strides = [1, 1]} : vector<32x32xf32> to vector<28x32xf32>
    %c0_2 = arith.constant 0 : index
    %c0_3 = arith.constant 0 : index
    %c0_4 = arith.constant 0 : index
    %3 = vector.load %arg2[%c0_2, %c0_3, %c0_4] : memref<5x32x168xf32, #tpu.memory_space<vmem>>, vector<1x32x168xf32>
    %4 = vector.shape_cast %3 : vector<1x32x168xf32> to vector<32x168xf32>
    %cst = arith.constant dense<0.000000e+00> : vector<28x168xf32>
    %5 = tpu.matmul %2, %4, %cst {dimension_numbers = #tpu.dot_dimension_numbers<[1], [0], [0], [1], [0, 0, 1, 1], [], []>} : vector<28x32xf32>, vector<32x168xf32>, vector<28x168xf32> -> vector<28x168xf32>
    %6 = vector.extract_strided_slice %1 {offsets = [1, 0], sizes = [28, 32], strides = [1, 1]} : vector<32x32xf32> to vector<28x32xf32>
    %c1 = arith.constant 1 : index
    %c0_5 = arith.constant 0 : index
    %c0_6 = arith.constant 0 : index
    %7 = vector.load %arg2[%c1, %c0_5, %c0_6] : memref<5x32x168xf32, #tpu.memory_space<vmem>>, vector<1x32x168xf32>
    %8 = vector.shape_cast %7 : vector<1x32x168xf32> to vector<32x168xf32>
    %cst_7 = arith.constant dense<0.000000e+00> : vector<28x168xf32>
    %9 = tpu.matmul %6, %8, %cst_7 {dimension_numbers = #tpu.dot_dimension_numbers<[1], [0], [0], [1], [0, 0, 1, 1], [], []>} : vector<28x32xf32>, vector<32x168xf32>, vector<28x168xf32> -> vector<28x168xf32>
    %10 = arith.addf %5, %9 : vector<28x168xf32>
    %11 = vector.extract_strided_slice %1 {offsets = [2, 0], sizes = [28, 32], strides = [1, 1]} : vector<32x32xf32> to vector<28x32xf32>
    %c2 = arith.constant 2 : index
    %c0_8 = arith.constant 0 : index
    %c0_9 = arith.constant 0 : index
    %12 = vector.load %arg2[%c2, %c0_8, %c0_9] : memref<5x32x168xf32, #tpu.memory_space<vmem>>, vector<1x32x168xf32>
    %13 = vector.shape_cast %12 : vector<1x32x168xf32> to vector<32x168xf32>
    %cst_10 = arith.constant dense<0.000000e+00> : vector<28x168xf32>
    %14 = tpu.matmul %11, %13, %cst_10 {dimension_numbers = #tpu.dot_dimension_numbers<[1], [0], [0], [1], [0, 0, 1, 1], [], []>} : vector<28x32xf32>, vector<32x168xf32>, vector<28x168xf32> -> vector<28x168xf32>
    %15 = arith.addf %10, %14 : vector<28x168xf32>
    %16 = vector.extract_strided_slice %1 {offsets = [3, 0], sizes = [28, 32], strides = [1, 1]} : vector<32x32xf32> to vector<28x32xf32>
    %c3 = arith.constant 3 : index
    %c0_11 = arith.constant 0 : index
    %c0_12 = arith.constant 0 : index
    %17 = vector.load %arg2[%c3, %c0_11, %c0_12] : memref<5x32x168xf32, #tpu.memory_space<vmem>>, vector<1x32x168xf32>
    %18 = vector.shape_cast %17 : vector<1x32x168xf32> to vector<32x168xf32>
    %cst_13 = arith.constant dense<0.000000e+00> : vector<28x168xf32>
    %19 = tpu.matmul %16, %18, %cst_13 {dimension_numbers = #tpu.dot_dimension_numbers<[1], [0], [0], [1], [0, 0, 1, 1], [], []>} : vector<28x32xf32>, vector<32x168xf32>, vector<28x168xf32> -> vector<28x168xf32>
    %20 = arith.addf %15, %19 : vector<28x168xf32>
    %21 = vector.extract_strided_slice %1 {offsets = [4, 0], sizes = [28, 32], strides = [1, 1]} : vector<32x32xf32> to vector<28x32xf32>
    %c4 = arith.constant 4 : index
    %c0_14 = arith.constant 0 : index
    %c0_15 = arith.constant 0 : index
    %22 = vector.load %arg2[%c4, %c0_14, %c0_15] : memref<5x32x168xf32, #tpu.memory_space<vmem>>, vector<1x32x168xf32>
    %23 = vector.shape_cast %22 : vector<1x32x168xf32> to vector<32x168xf32>
    %cst_16 = arith.constant dense<0.000000e+00> : vector<28x168xf32>
    %24 = tpu.matmul %21, %23, %cst_16 {dimension_numbers = #tpu.dot_dimension_numbers<[1], [0], [0], [1], [0, 0, 1, 1], [], []>} : vector<28x32xf32>, vector<32x168xf32>, vector<28x168xf32> -> vector<28x168xf32>
    %25 = arith.addf %20, %24 : vector<28x168xf32>
    %c0_17 = arith.constant 0 : index
    %c0_18 = arith.constant 0 : index
    %26 = vector.load %arg3[%c0_17, %c0_18] : memref<1x168xf32, #tpu.memory_space<vmem>>, vector<1x168xf32>
    %27 = vector.broadcast %26 : vector<1x168xf32> to vector<28x168xf32>
    %28 = arith.addf %25, %27 : vector<28x168xf32>
    %cst_19 = arith.constant 0.000000e+00 : f32
    %29 = vector.broadcast %cst_19 : f32 to vector<28x168xf32>
    %30 = arith.maximumf %28, %29 : vector<28x168xf32>
    %c0_20 = arith.constant 0 : index
    %c0_21 = arith.constant 0 : index
    %31 = vector.load %arg4[%c0_20, %c0_21] : memref<14x28xf32, #tpu.memory_space<vmem>>, vector<14x28xf32>
    %c0_22 = arith.constant 0 : index
    %c0_23 = arith.constant 0 : index
    %32 = vector.load %arg5[%c0_22, %c0_23] : memref<168x84xf32, #tpu.memory_space<vmem>>, vector<168x84xf32>
    %cst_24 = arith.constant dense<0.000000e+00> : vector<28x84xf32>
    %33 = tpu.matmul %30, %32, %cst_24 {dimension_numbers = #tpu.dot_dimension_numbers<[1], [0], [0], [1], [0, 0, 1, 1], [], []>} : vector<28x168xf32>, vector<168x84xf32>, vector<28x84xf32> -> vector<28x84xf32>
    %cst_25 = arith.constant dense<0.000000e+00> : vector<14x84xf32>
    %34 = tpu.matmul %31, %33, %cst_25 {dimension_numbers = #tpu.dot_dimension_numbers<[1], [0], [0], [1], [0, 0, 1, 1], [], []>} : vector<14x28xf32>, vector<28x84xf32>, vector<14x84xf32> -> vector<14x84xf32>
    %35 = vector.extract_strided_slice %34 {offsets = [0, 0], sizes = [10, 84], strides = [1, 1]} : vector<14x84xf32> to vector<10x84xf32>
    %c0_26 = arith.constant 0 : index
    %c0_27 = arith.constant 0 : index
    %c0_28 = arith.constant 0 : index
    %36 = vector.load %arg6[%c0_26, %c0_27, %c0_28] : memref<5x84x160xf32, #tpu.memory_space<vmem>>, vector<1x84x160xf32>
    %37 = vector.shape_cast %36 : vector<1x84x160xf32> to vector<84x160xf32>
    %cst_29 = arith.constant dense<0.000000e+00> : vector<10x160xf32>
    %38 = tpu.matmul %35, %37, %cst_29 {dimension_numbers = #tpu.dot_dimension_numbers<[1], [0], [0], [1], [0, 0, 1, 1], [], []>} : vector<10x84xf32>, vector<84x160xf32>, vector<10x160xf32> -> vector<10x160xf32>
    %39 = vector.extract_strided_slice %34 {offsets = [1, 0], sizes = [10, 84], strides = [1, 1]} : vector<14x84xf32> to vector<10x84xf32>
    %c1_30 = arith.constant 1 : index
    %c0_31 = arith.constant 0 : index
    %c0_32 = arith.constant 0 : index
    %40 = vector.load %arg6[%c1_30, %c0_31, %c0_32] : memref<5x84x160xf32, #tpu.memory_space<vmem>>, vector<1x84x160xf32>
    %41 = vector.shape_cast %40 : vector<1x84x160xf32> to vector<84x160xf32>
    %cst_33 = arith.constant dense<0.000000e+00> : vector<10x160xf32>
    %42 = tpu.matmul %39, %41, %cst_33 {dimension_numbers = #tpu.dot_dimension_numbers<[1], [0], [0], [1], [0, 0, 1, 1], [], []>} : vector<10x84xf32>, vector<84x160xf32>, vector<10x160xf32> -> vector<10x160xf32>
    %43 = arith.addf %38, %42 : vector<10x160xf32>
    %44 = vector.extract_strided_slice %34 {offsets = [2, 0], sizes = [10, 84], strides = [1, 1]} : vector<14x84xf32> to vector<10x84xf32>
    %c2_34 = arith.constant 2 : index
    %c0_35 = arith.constant 0 : index
    %c0_36 = arith.constant 0 : index
    %45 = vector.load %arg6[%c2_34, %c0_35, %c0_36] : memref<5x84x160xf32, #tpu.memory_space<vmem>>, vector<1x84x160xf32>
    %46 = vector.shape_cast %45 : vector<1x84x160xf32> to vector<84x160xf32>
    %cst_37 = arith.constant dense<0.000000e+00> : vector<10x160xf32>
    %47 = tpu.matmul %44, %46, %cst_37 {dimension_numbers = #tpu.dot_dimension_numbers<[1], [0], [0], [1], [0, 0, 1, 1], [], []>} : vector<10x84xf32>, vector<84x160xf32>, vector<10x160xf32> -> vector<10x160xf32>
    %48 = arith.addf %43, %47 : vector<10x160xf32>
    %49 = vector.extract_strided_slice %34 {offsets = [3, 0], sizes = [10, 84], strides = [1, 1]} : vector<14x84xf32> to vector<10x84xf32>
    %c3_38 = arith.constant 3 : index
    %c0_39 = arith.constant 0 : index
    %c0_40 = arith.constant 0 : index
    %50 = vector.load %arg6[%c3_38, %c0_39, %c0_40] : memref<5x84x160xf32, #tpu.memory_space<vmem>>, vector<1x84x160xf32>
    %51 = vector.shape_cast %50 : vector<1x84x160xf32> to vector<84x160xf32>
    %cst_41 = arith.constant dense<0.000000e+00> : vector<10x160xf32>
    %52 = tpu.matmul %49, %51, %cst_41 {dimension_numbers = #tpu.dot_dimension_numbers<[1], [0], [0], [1], [0, 0, 1, 1], [], []>} : vector<10x84xf32>, vector<84x160xf32>, vector<10x160xf32> -> vector<10x160xf32>
    %53 = arith.addf %48, %52 : vector<10x160xf32>
    %54 = vector.extract_strided_slice %34 {offsets = [4, 0], sizes = [10, 84], strides = [1, 1]} : vector<14x84xf32> to vector<10x84xf32>
    %c4_42 = arith.constant 4 : index
    %c0_43 = arith.constant 0 : index
    %c0_44 = arith.constant 0 : index
    %55 = vector.load %arg6[%c4_42, %c0_43, %c0_44] : memref<5x84x160xf32, #tpu.memory_space<vmem>>, vector<1x84x160xf32>
    %56 = vector.shape_cast %55 : vector<1x84x160xf32> to vector<84x160xf32>
    %cst_45 = arith.constant dense<0.000000e+00> : vector<10x160xf32>
    %57 = tpu.matmul %54, %56, %cst_45 {dimension_numbers = #tpu.dot_dimension_numbers<[1], [0], [0], [1], [0, 0, 1, 1], [], []>} : vector<10x84xf32>, vector<84x160xf32>, vector<10x160xf32> -> vector<10x160xf32>
    %58 = arith.addf %53, %57 : vector<10x160xf32>
    %c0_46 = arith.constant 0 : index
    %c0_47 = arith.constant 0 : index
    %59 = vector.load %arg7[%c0_46, %c0_47] : memref<1x160xf32, #tpu.memory_space<vmem>>, vector<1x160xf32>
    %60 = vector.broadcast %59 : vector<1x160xf32> to vector<10x160xf32>
    %61 = arith.addf %58, %60 : vector<10x160xf32>
    %cst_48 = arith.constant 0.000000e+00 : f32
    %62 = vector.broadcast %cst_48 : f32 to vector<10x160xf32>
    %63 = arith.maximumf %61, %62 : vector<10x160xf32>
    %c0_49 = arith.constant 0 : index
    %c0_50 = arith.constant 0 : index
    %64 = vector.load %arg8[%c0_49, %c0_50] : memref<5x10xf32, #tpu.memory_space<vmem>>, vector<5x10xf32>
    %c0_51 = arith.constant 0 : index
    %c0_52 = arith.constant 0 : index
    %65 = vector.load %arg9[%c0_51, %c0_52] : memref<160x80xf32, #tpu.memory_space<vmem>>, vector<160x80xf32>
    %cst_53 = arith.constant dense<0.000000e+00> : vector<10x80xf32>
    %66 = tpu.matmul %63, %65, %cst_53 {dimension_numbers = #tpu.dot_dimension_numbers<[1], [0], [0], [1], [0, 0, 1, 1], [], []>} : vector<10x160xf32>, vector<160x80xf32>, vector<10x80xf32> -> vector<10x80xf32>
    %cst_54 = arith.constant dense<0.000000e+00> : vector<5x80xf32>
    %67 = tpu.matmul %64, %66, %cst_54 {dimension_numbers = #tpu.dot_dimension_numbers<[1], [0], [0], [1], [0, 0, 1, 1], [], []>} : vector<5x10xf32>, vector<10x80xf32>, vector<5x80xf32> -> vector<5x80xf32>
    %c0_55 = arith.constant 0 : index
    %c0_56 = arith.constant 0 : index
    %68 = vector.load %arg11[%c0_55, %c0_56] : memref<1x120xf32, #tpu.memory_space<vmem>>, vector<1x120xf32>
    %69 = vector.extract_strided_slice %67 {offsets = [0, 0], sizes = [1, 80], strides = [1, 1]} : vector<5x80xf32> to vector<1x80xf32>
    %c0_57 = arith.constant 0 : index
    %c0_58 = arith.constant 0 : index
    %c0_59 = arith.constant 0 : index
    %70 = vector.load %arg10[%c0_57, %c0_58, %c0_59] : memref<5x80x120xf32, #tpu.memory_space<vmem>>, vector<1x80x120xf32>
    %71 = vector.shape_cast %70 : vector<1x80x120xf32> to vector<80x120xf32>
    %cst_60 = arith.constant dense<0.000000e+00> : vector<1x120xf32>
    %72 = tpu.matmul %69, %71, %cst_60 {dimension_numbers = #tpu.dot_dimension_numbers<[1], [0], [0], [1], [0, 0, 1, 1], [], []>} : vector<1x80xf32>, vector<80x120xf32>, vector<1x120xf32> -> vector<1x120xf32>
    %73 = arith.addf %68, %72 : vector<1x120xf32>
    %74 = vector.extract_strided_slice %67 {offsets = [1, 0], sizes = [1, 80], strides = [1, 1]} : vector<5x80xf32> to vector<1x80xf32>
    %c1_61 = arith.constant 1 : index
    %c0_62 = arith.constant 0 : index
    %c0_63 = arith.constant 0 : index
    %75 = vector.load %arg10[%c1_61, %c0_62, %c0_63] : memref<5x80x120xf32, #tpu.memory_space<vmem>>, vector<1x80x120xf32>
    %76 = vector.shape_cast %75 : vector<1x80x120xf32> to vector<80x120xf32>
    %cst_64 = arith.constant dense<0.000000e+00> : vector<1x120xf32>
    %77 = tpu.matmul %74, %76, %cst_64 {dimension_numbers = #tpu.dot_dimension_numbers<[1], [0], [0], [1], [0, 0, 1, 1], [], []>} : vector<1x80xf32>, vector<80x120xf32>, vector<1x120xf32> -> vector<1x120xf32>
    %78 = arith.addf %73, %77 : vector<1x120xf32>
    %79 = vector.extract_strided_slice %67 {offsets = [2, 0], sizes = [1, 80], strides = [1, 1]} : vector<5x80xf32> to vector<1x80xf32>
    %c2_65 = arith.constant 2 : index
    %c0_66 = arith.constant 0 : index
    %c0_67 = arith.constant 0 : index
    %80 = vector.load %arg10[%c2_65, %c0_66, %c0_67] : memref<5x80x120xf32, #tpu.memory_space<vmem>>, vector<1x80x120xf32>
    %81 = vector.shape_cast %80 : vector<1x80x120xf32> to vector<80x120xf32>
    %cst_68 = arith.constant dense<0.000000e+00> : vector<1x120xf32>
    %82 = tpu.matmul %79, %81, %cst_68 {dimension_numbers = #tpu.dot_dimension_numbers<[1], [0], [0], [1], [0, 0, 1, 1], [], []>} : vector<1x80xf32>, vector<80x120xf32>, vector<1x120xf32> -> vector<1x120xf32>
    %83 = arith.addf %78, %82 : vector<1x120xf32>
    %84 = vector.extract_strided_slice %67 {offsets = [3, 0], sizes = [1, 80], strides = [1, 1]} : vector<5x80xf32> to vector<1x80xf32>
    %c3_69 = arith.constant 3 : index
    %c0_70 = arith.constant 0 : index
    %c0_71 = arith.constant 0 : index
    %85 = vector.load %arg10[%c3_69, %c0_70, %c0_71] : memref<5x80x120xf32, #tpu.memory_space<vmem>>, vector<1x80x120xf32>
    %86 = vector.shape_cast %85 : vector<1x80x120xf32> to vector<80x120xf32>
    %cst_72 = arith.constant dense<0.000000e+00> : vector<1x120xf32>
    %87 = tpu.matmul %84, %86, %cst_72 {dimension_numbers = #tpu.dot_dimension_numbers<[1], [0], [0], [1], [0, 0, 1, 1], [], []>} : vector<1x80xf32>, vector<80x120xf32>, vector<1x120xf32> -> vector<1x120xf32>
    %88 = arith.addf %83, %87 : vector<1x120xf32>
    %89 = vector.extract_strided_slice %67 {offsets = [4, 0], sizes = [1, 80], strides = [1, 1]} : vector<5x80xf32> to vector<1x80xf32>
    %c4_73 = arith.constant 4 : index
    %c0_74 = arith.constant 0 : index
    %c0_75 = arith.constant 0 : index
    %90 = vector.load %arg10[%c4_73, %c0_74, %c0_75] : memref<5x80x120xf32, #tpu.memory_space<vmem>>, vector<1x80x120xf32>
    %91 = vector.shape_cast %90 : vector<1x80x120xf32> to vector<80x120xf32>
    %cst_76 = arith.constant dense<0.000000e+00> : vector<1x120xf32>
    %92 = tpu.matmul %89, %91, %cst_76 {dimension_numbers = #tpu.dot_dimension_numbers<[1], [0], [0], [1], [0, 0, 1, 1], [], []>} : vector<1x80xf32>, vector<80x120xf32>, vector<1x120xf32> -> vector<1x120xf32>
    %93 = arith.addf %88, %92 : vector<1x120xf32>
    %cst_77 = arith.constant 0.000000e+00 : f32
    %94 = vector.broadcast %cst_77 : f32 to vector<1x120xf32>
    %95 = arith.maximumf %93, %94 : vector<1x120xf32>
    %c0_78 = arith.constant 0 : index
    %c0_79 = arith.constant 0 : index
    %96 = vector.load %arg12[%c0_78, %c0_79] : memref<120x84xf32, #tpu.memory_space<vmem>>, vector<120x84xf32>
    %cst_80 = arith.constant dense<0.000000e+00> : vector<1x84xf32>
    %97 = tpu.matmul %95, %96, %cst_80 {dimension_numbers = #tpu.dot_dimension_numbers<[1], [0], [0], [1], [0, 0, 1, 1], [], []>} : vector<1x120xf32>, vector<120x84xf32>, vector<1x84xf32> -> vector<1x84xf32>
    %c0_81 = arith.constant 0 : index
    %c0_82 = arith.constant 0 : index
    %98 = vector.load %arg13[%c0_81, %c0_82] : memref<1x84xf32, #tpu.memory_space<vmem>>, vector<1x84xf32>
    %99 = arith.addf %97, %98 : vector<1x84xf32>
    %cst_83 = arith.constant 0.000000e+00 : f32
    %100 = vector.broadcast %cst_83 : f32 to vector<1x84xf32>
    %101 = arith.maximumf %99, %100 : vector<1x84xf32>
    %c0_84 = arith.constant 0 : index
    %c0_85 = arith.constant 0 : index
    %102 = vector.load %arg14[%c0_84, %c0_85] : memref<84x10xf32, #tpu.memory_space<vmem>>, vector<84x10xf32>
    %cst_86 = arith.constant dense<0.000000e+00> : vector<1x10xf32>
    %103 = tpu.matmul %101, %102, %cst_86 {dimension_numbers = #tpu.dot_dimension_numbers<[1], [0], [0], [1], [0, 0, 1, 1], [], []>} : vector<1x84xf32>, vector<84x10xf32>, vector<1x10xf32> -> vector<1x10xf32>
    %c0_87 = arith.constant 0 : index
    %c0_88 = arith.constant 0 : index
    %104 = vector.load %arg15[%c0_87, %c0_88] : memref<1x10xf32, #tpu.memory_space<vmem>>, vector<1x10xf32>
    %105 = arith.addf %103, %104 : vector<1x10xf32>
    %c0_89 = arith.constant 0 : index
    %c0_90 = arith.constant 0 : index
    %c0_91 = arith.constant 0 : index
    %106 = vector.load %arg16[%c0_89, %c0_90, %c0_91] : memref<1x1x10xf32, #tpu.memory_space<vmem>>, vector<1x1x10xf32>
    %107 = vector.shape_cast %106 : vector<1x1x10xf32> to vector<1x10xf32>
    %108 = vector.shape_cast %105 : vector<1x10xf32> to vector<1x1x10xf32>
    tpu.vector_store %arg16[%c0_89, %c0_90, %c0_91], %108 {strides = array<i32>} : memref<1x1x10xf32, #tpu.memory_space<vmem>>, vector<1x1x10xf32>,
    return
  }
  func.func @transform_0(%arg0: i32) -> (i32, i32, i32) {
    %c0_i32 = arith.constant 0 : i32
    %c0_i32_0 = arith.constant 0 : i32
    %c0_i32_1 = arith.constant 0 : i32
    return %arg0, %c0_i32, %c0_i32_0 : i32, i32, i32
  }
  func.func @transform_1(%arg0: i32) -> (i32, i32, i32) {
    %c0_i32 = arith.constant 0 : i32
    %c0_i32_0 = arith.constant 0 : i32
    %c0_i32_1 = arith.constant 0 : i32
    %c0_i32_2 = arith.constant 0 : i32
    return %c0_i32, %c0_i32_0, %c0_i32_1 : i32, i32, i32
  }
  func.func @transform_2(%arg0: i32) -> (i32, i32) {
    %c0_i32 = arith.constant 0 : i32
    %c0_i32_0 = arith.constant 0 : i32
    %c0_i32_1 = arith.constant 0 : i32
    return %c0_i32, %c0_i32_0 : i32, i32
  }
  func.func @transform_3(%arg0: i32) -> (i32, i32) {
    %c0_i32 = arith.constant 0 : i32
    %c0_i32_0 = arith.constant 0 : i32
    %c0_i32_1 = arith.constant 0 : i32
    return %c0_i32, %c0_i32_0 : i32, i32
  }
  func.func @transform_4(%arg0: i32) -> (i32, i32) {
    %c0_i32 = arith.constant 0 : i32
    %c0_i32_0 = arith.constant 0 : i32
    %c0_i32_1 = arith.constant 0 : i32
    return %c0_i32, %c0_i32_0 : i32, i32
  }
  func.func @transform_5(%arg0: i32) -> (i32, i32, i32) {
    %c0_i32 = arith.constant 0 : i32
    %c0_i32_0 = arith.constant 0 : i32
    %c0_i32_1 = arith.constant 0 : i32
    %c0_i32_2 = arith.constant 0 : i32
    return %c0_i32, %c0_i32_0, %c0_i32_1 : i32, i32, i32
  }
  func.func @transform_6(%arg0: i32) -> (i32, i32) {
    %c0_i32 = arith.constant 0 : i32
    %c0_i32_0 = arith.constant 0 : i32
    %c0_i32_1 = arith.constant 0 : i32
    return %c0_i32, %c0_i32_0 : i32, i32
  }
  func.func @transform_7(%arg0: i32) -> (i32, i32) {
    %c0_i32 = arith.constant 0 : i32
    %c0_i32_0 = arith.constant 0 : i32
    %c0_i32_1 = arith.constant 0 : i32
    return %c0_i32, %c0_i32_0 : i32, i32
  }
  func.func @transform_8(%arg0: i32) -> (i32, i32) {
    %c0_i32 = arith.constant 0 : i32
    %c0_i32_0 = arith.constant 0 : i32
    %c0_i32_1 = arith.constant 0 : i32
    return %c0_i32, %c0_i32_0 : i32, i32
  }
  func.func @transform_9(%arg0: i32) -> (i32, i32, i32) {
    %c0_i32 = arith.constant 0 : i32
    %c0_i32_0 = arith.constant 0 : i32
    %c0_i32_1 = arith.constant 0 : i32
    %c0_i32_2 = arith.constant 0 : i32
    return %c0_i32, %c0_i32_0, %c0_i32_1 : i32, i32, i32
  }
  func.func @transform_10(%arg0: i32) -> (i32, i32) {
    %c0_i32 = arith.constant 0 : i32
    %c0_i32_0 = arith.constant 0 : i32
    %c0_i32_1 = arith.constant 0 : i32
    return %c0_i32, %c0_i32_0 : i32, i32
  }
  func.func @transform_11(%arg0: i32) -> (i32, i32) {
    %c0_i32 = arith.constant 0 : i32
    %c0_i32_0 = arith.constant 0 : i32
    %c0_i32_1 = arith.constant 0 : i32
    return %c0_i32, %c0_i32_0 : i32, i32
  }
  func.func @transform_12(%arg0: i32) -> (i32, i32) {
    %c0_i32 = arith.constant 0 : i32
    %c0_i32_0 = arith.constant 0 : i32
    %c0_i32_1 = arith.constant 0 : i32
    return %c0_i32, %c0_i32_0 : i32, i32
  }
  func.func @transform_13(%arg0: i32) -> (i32, i32) {
    %c0_i32 = arith.constant 0 : i32
    %c0_i32_0 = arith.constant 0 : i32
    %c0_i32_1 = arith.constant 0 : i32
    return %c0_i32, %c0_i32_0 : i32, i32
  }
  func.func @transform_14(%arg0: i32) -> (i32, i32) {
    %c0_i32 = arith.constant 0 : i32
    %c0_i32_0 = arith.constant 0 : i32
    %c0_i32_1 = arith.constant 0 : i32
    return %c0_i32, %c0_i32_0 : i32, i32
  }
  func.func @transform_15(%arg0: i32) -> (i32, i32, i32) {
    %c0_i32 = arith.constant 0 : i32
    %c0_i32_0 = arith.constant 0 : i32
    %c0_i32_1 = arith.constant 0 : i32
    return %arg0, %c0_i32, %c0_i32_0 : i32, i32, i32
  }
}

</mosaic_0001>

<llo_original>
// kernel: lenet_forward.1
$region0: #{lenet_forward.1}
  #allocation0 [shape = 'u32[]', space=smem, size = 0x4, offset = 0x4, fixed_abs, tag = 'smem constant byte address 0x4 - core index']
  #allocation1 [shape = 'u32[144,128]{1,0:T(1,128)}', space=vmem, size = 0x12000, scoped, tag = 'internal scratch']
  %s0 = inlined_call_operand.vmem [shape: f32[2,32,32], index: 0, kind: input, shape index: {}]
  %s1 = inlined_call_operand.vmem [shape: f32[5,32,168], index: 1, kind: input, shape index: {}]
  %s2 = inlined_call_operand.vmem [shape: f32[1,168], index: 2, kind: input, shape index: {}]
  %s3 = inlined_call_operand.vmem [shape: f32[14,28], index: 3, kind: input, shape index: {}]
  %s4 = inlined_call_operand.vmem [shape: f32[168,84], index: 4, kind: input, shape index: {}]
  %s5 = inlined_call_operand.vmem [shape: f32[5,84,160], index: 5, kind: input, shape index: {}]
  %s6 = inlined_call_operand.vmem [shape: f32[1,160], index: 6, kind: input, shape index: {}]
  %s7 = inlined_call_operand.vmem [shape: f32[5,10], index: 7, kind: input, shape index: {}]
  %s8 = inlined_call_operand.vmem [shape: f32[160,80], index: 8, kind: input, shape index: {}]
  %s9 = inlined_call_operand.vmem [shape: f32[5,80,120], index: 9, kind: input, shape index: {}]
  %s10 = inlined_call_operand.vmem [shape: f32[1,120], index: 10, kind: input, shape index: {}]
  %s11 = inlined_call_operand.vmem [shape: f32[120,84], index: 11, kind: input, shape index: {}]
  %s12 = inlined_call_operand.vmem [shape: f32[1,84], index: 12, kind: input, shape index: {}]
  %s13 = inlined_call_operand.vmem [shape: f32[84,10], index: 13, kind: input, shape index: {}]
  %s14 = inlined_call_operand.vmem [shape: f32[1,10], index: 14, kind: input, shape index: {}]
  %s15 = inlined_call_operand.hbm [shape: f32[2,1,10], index: 15, kind: output, shape index: {}]
  %s16 = sld [smem:[#allocation0]]
  $region93: #{lenet_forward.1} parent=0
    _
  %s18 = ssub.s32 1, %s16
  %s19 = scalar_select 0, %s18, %s16
  $region1: #{lenet_forward.1} parent=0
    #allocation2 [shape = 'u8[1024]{0}', space=vmem, size = 0x400, scoped, tag = 'output window, operand 0']
    #allocation3 [shape = 's32[2]{0}', space=sflag, size = 0x8, scoped, tag = 'scoped memory for lenet_forward.1']
    %20 = vsyncpa [#allocation3], 0
    %s21 = scalar_lea.sflag [#allocation3], 1
    %22 = vsyncpa %s21, 0
    loop: start=0, step=1, limit=4
    $region2: #{lenet_forward.1} parent=1 // loop_pre_header
      _
    $region3: #{lenet_forward.1} parent=1 // loop_header
      %s24 = sphi 0, %s28
      %p25 = scmp.ge.s32.totalorder %s24, 4
      %s34 = sphi 0, %s36
      %s37 = sphi 0, %s34
      %s38 = sphi 0, %s37
      %s54 = sphi 0, %s38
      %s58 = sphi 0, %s58
      %s60 = sphi 0, %s58
      %s61 = sphi 0, %s60
      %s75 = sphi 0, %s61
      %s79 = sphi 0, %s79
      %s81 = sphi 0, %s79
      %s82 = sphi 0, %s81
      %s96 = sphi 0, %s82
      %s100 = sphi 0, %s100
      %s102 = sphi 0, %s100
      %s103 = sphi 0, %s102
      %s117 = sphi 0, %s103
      %s121 = sphi 0, %s121
      %s123 = sphi 0, %s121
      %s124 = sphi 0, %s123
      %s138 = sphi 0, %s124
      %s142 = sphi 0, %s142
      %s144 = sphi 0, %s142
      %s145 = sphi 0, %s144
      %s159 = sphi 0, %s145
      %s163 = sphi 0, %s163
      %s165 = sphi 0, %s163
      %s166 = sphi 0, %s165
      %s180 = sphi 0, %s166
      %s184 = sphi 0, %s184
      %s186 = sphi 0, %s184
      %s187 = sphi 0, %s186
      %s201 = sphi 0, %s187
      %s205 = sphi 0, %s205
      %s207 = sphi 0, %s205
      %s208 = sphi 0, %s207
      %s222 = sphi 0, %s208
      %s226 = sphi 0, %s226
      %s228 = sphi 0, %s226
      %s229 = sphi 0, %s228
      %s243 = sphi 0, %s229
      %s247 = sphi 0, %s247
      %s249 = sphi 0, %s247
      %s250 = sphi 0, %s249
      %s264 = sphi 0, %s250
      %s268 = sphi 0, %s268
      %s270 = sphi 0, %s268
      %s271 = sphi 0, %s270
      %s285 = sphi 0, %s271
      %s289 = sphi 0, %s289
      %s291 = sphi 0, %s289
      %s292 = sphi 0, %s291
      %s306 = sphi 0, %s292
      %s310 = sphi 0, %s310
      %s312 = sphi 0, %s310
      %s313 = sphi 0, %s312
      %s327 = sphi 0, %s313
      %s331 = sphi 0, %s331
      %s333 = sphi 0, %s331
      %s334 = sphi 0, %s333
      %s348 = sphi 0, %s334
      %s354 = sphi 0, %s356
      %s357 = sphi 0, %s354
      %s358 = sphi 0, %s357
      %s374 = sphi 0, %s358
    $region4: #{lenet_forward.1} parent=1 // loop_header_branch
      %27 = sbr.rel (%p25) target = $region8
    $region5: #{lenet_forward.1} parent=1 // loop_body
      %s29 = ssub.s32 %s24, 1
      %s30 = ssub.s32 %s24, 2
      %s31 = sadd.s32 %s24, 1
      %s32 = ssub.s32 %s24, %s31
      %p33 = scmp.eq.s32.totalorder %s32, 0
      %s35 = sadd.s32 %s34, 1
      %s36 = scalar_select %p33, %s34, %s35
      %p39 = pneg %p33
      %p40 = scmp.eq.s32.totalorder %s24, 1
      %p41 = por %p39, %p40
      %p42 = scmp.ne.s32.totalorder %s34, %s37
      %p43 = scmp.eq.s32.totalorder %s24, 0
      %p44 = por %p42, %p43
      %p45 = scmp.ne.s32.totalorder %s34, %s37
      %p46 = scmp.eq.s32.totalorder %s29, 1
      %p47 = por %p45, %p46
      %p48 = scmp.ne.s32.totalorder %s37, %s38
      %p49 = scmp.eq.s32.totalorder %s29, 0
      %p50 = por %p48, %p49
      %p51 = scmp.ne.s32.totalorder %s37, %s38
      %p52 = scmp.eq.s32.totalorder %s30, 1
      %p53 = por %p51, %p52
      %p55 = scmp.ne.s32.totalorder %s38, %s54
      %p56 = scmp.eq.s32.totalorder %s30, 0
      %p57 = por %p55, %p56
      %s59 = sadd.s32 %s58, 1
      %p62 = scmp.eq.s32.totalorder %s24, 1
      %p63 = scmp.ne.s32.totalorder %s58, %s60
      %p64 = scmp.eq.s32.totalorder %s24, 0
      %p65 = por %p63, %p64
      %p66 = scmp.ne.s32.totalorder %s58, %s60
      %p67 = scmp.eq.s32.totalorder %s29, 1
      %p68 = por %p66, %p67
      %p69 = scmp.ne.s32.totalorder %s60, %s61
      %p70 = scmp.eq.s32.totalorder %s29, 0
      %p71 = por %p69, %p70
      %p72 = scmp.ne.s32.totalorder %s60, %s61
      %p73 = scmp.eq.s32.totalorder %s30, 1
      %p74 = por %p72, %p73
      %p76 = scmp.ne.s32.totalorder %s61, %s75
      %p77 = scmp.eq.s32.totalorder %s30, 0
      %p78 = por %p76, %p77
      %s80 = sadd.s32 %s79, 1
      %p83 = scmp.eq.s32.totalorder %s24, 1
      %p84 = scmp.ne.s32.totalorder %s79, %s81
      %p85 = scmp.eq.s32.totalorder %s24, 0
      %p86 = por %p84, %p85
      %p87 = scmp.ne.s32.totalorder %s79, %s81
      %p88 = scmp.eq.s32.totalorder %s29, 1
      %p89 = por %p87, %p88
      %p90 = scmp.ne.s32.totalorder %s81, %s82
      %p91 = scmp.eq.s32.totalorder %s29, 0
      %p92 = por %p90, %p91
      %p93 = scmp.ne.s32.totalorder %s81, %s82
      %p94 = scmp.eq.s32.totalorder %s30, 1
      %p95 = por %p93, %p94
      %p97 = scmp.ne.s32.totalorder %s82, %s96
      %p98 = scmp.eq.s32.totalorder %s30, 0
      %p99 = por %p97, %p98
      %s101 = sadd.s32 %s100, 1
      %p104 = scmp.eq.s32.totalorder %s24, 1
      %p105 = scmp.ne.s32.totalorder %s100, %s102
      %p106 = scmp.eq.s32.totalorder %s24, 0
      %p107 = por %p105, %p106
      %p108 = scmp.ne.s32.totalorder %s100, %s102
      %p109 = scmp.eq.s32.totalorder %s29, 1
      %p110 = por %p108, %p109
      %p111 = scmp.ne.s32.totalorder %s102, %s103
      %p112 = scmp.eq.s32.totalorder %s29, 0
      %p113 = por %p111, %p112
      %p114 = scmp.ne.s32.totalorder %s102, %s103
      %p115 = scmp.eq.s32.totalorder %s30, 1
      %p116 = por %p114, %p115
      %p118 = scmp.ne.s32.totalorder %s103, %s117
      %p119 = scmp.eq.s32.totalorder %s30, 0
      %p120 = por %p118, %p119
      %s122 = sadd.s32 %s121, 1
      %p125 = scmp.eq.s32.totalorder %s24, 1
      %p126 = scmp.ne.s32.totalorder %s121, %s123
      %p127 = scmp.eq.s32.totalorder %s24, 0
      %p128 = por %p126, %p127
      %p129 = scmp.ne.s32.totalorder %s121, %s123
      %p130 = scmp.eq.s32.totalorder %s29, 1
      %p131 = por %p129, %p130
      %p132 = scmp.ne.s32.totalorder %s123, %s124
      %p133 = scmp.eq.s32.totalorder %s29, 0
      %p134 = por %p132, %p133
      %p135 = scmp.ne.s32.totalorder %s123, %s124
      %p136 = scmp.eq.s32.totalorder %s30, 1
      %p137 = por %p135, %p136
      %p139 = scmp.ne.s32.totalorder %s124, %s138
      %p140 = scmp.eq.s32.totalorder %s30, 0
      %p141 = por %p139, %p140
      %s143 = sadd.s32 %s142, 1
      %p146 = scmp.eq.s32.totalorder %s24, 1
      %p147 = scmp.ne.s32.totalorder %s142, %s144
      %p148 = scmp.eq.s32.totalorder %s24, 0
      %p149 = por %p147, %p148
      %p150 = scmp.ne.s32.totalorder %s142, %s144
      %p151 = scmp.eq.s32.totalorder %s29, 1
      %p152 = por %p150, %p151
      %p153 = scmp.ne.s32.totalorder %s144, %s145
      %p154 = scmp.eq.s32.totalorder %s29, 0
      %p155 = por %p153, %p154
      %p156 = scmp.ne.s32.totalorder %s144, %s145
      %p157 = scmp.eq.s32.totalorder %s30, 1
      %p158 = por %p156, %p157
      %p160 = scmp.ne.s32.totalorder %s145, %s159
      %p161 = scmp.eq.s32.totalorder %s30, 0
      %p162 = por %p160, %p161
      %s164 = sadd.s32 %s163, 1
      %p167 = scmp.eq.s32.totalorder %s24, 1
      %p168 = scmp.ne.s32.totalorder %s163, %s165
      %p169 = scmp.eq.s32.totalorder %s24, 0
      %p170 = por %p168, %p169
      %p171 = scmp.ne.s32.totalorder %s163, %s165
      %p172 = scmp.eq.s32.totalorder %s29, 1
      %p173 = por %p171, %p172
      %p174 = scmp.ne.s32.totalorder %s165, %s166
      %p175 = scmp.eq.s32.totalorder %s29, 0
      %p176 = por %p174, %p175
      %p177 = scmp.ne.s32.totalorder %s165, %s166
      %p178 = scmp.eq.s32.totalorder %s30, 1
      %p179 = por %p177, %p178
      %p181 = scmp.ne.s32.totalorder %s166, %s180
      %p182 = scmp.eq.s32.totalorder %s30, 0
      %p183 = por %p181, %p182
      %s185 = sadd.s32 %s184, 1
      %p188 = scmp.eq.s32.totalorder %s24, 1
      %p189 = scmp.ne.s32.totalorder %s184, %s186
      %p190 = scmp.eq.s32.totalorder %s24, 0
      %p191 = por %p189, %p190
      %p192 = scmp.ne.s32.totalorder %s184, %s186
      %p193 = scmp.eq.s32.totalorder %s29, 1
      %p194 = por %p192, %p193
      %p195 = scmp.ne.s32.totalorder %s186, %s187
      %p196 = scmp.eq.s32.totalorder %s29, 0
      %p197 = por %p195, %p196
      %p198 = scmp.ne.s32.totalorder %s186, %s187
      %p199 = scmp.eq.s32.totalorder %s30, 1
      %p200 = por %p198, %p199
      %p202 = scmp.ne.s32.totalorder %s187, %s201
      %p203 = scmp.eq.s32.totalorder %s30, 0
      %p204 = por %p202, %p203
      %s206 = sadd.s32 %s205, 1
      %p209 = scmp.eq.s32.totalorder %s24, 1
      %p210 = scmp.ne.s32.totalorder %s205, %s207
      %p211 = scmp.eq.s32.totalorder %s24, 0
      %p212 = por %p210, %p211
      %p213 = scmp.ne.s32.totalorder %s205, %s207
      %p214 = scmp.eq.s32.totalorder %s29, 1
      %p215 = por %p213, %p214
      %p216 = scmp.ne.s32.totalorder %s207, %s208
      %p217 = scmp.eq.s32.totalorder %s29, 0
      %p218 = por %p216, %p217
      %p219 = scmp.ne.s32.totalorder %s207, %s208
      %p220 = scmp.eq.s32.totalorder %s30, 1
      %p221 = por %p219, %p220
      %p223 = scmp.ne.s32.totalorder %s208, %s222
      %p224 = scmp.eq.s32.totalorder %s30, 0
      %p225 = por %p223, %p224
      %s227 = sadd.s32 %s226, 1
      %p230 = scmp.eq.s32.totalorder %s24, 1
      %p231 = scmp.ne.s32.totalorder %s226, %s228
      %p232 = scmp.eq.s32.totalorder %s24, 0
      %p233 = por %p231, %p232
      %p234 = scmp.ne.s32.totalorder %s226, %s228
      %p235 = scmp.eq.s32.totalorder %s29, 1
      %p236 = por %p234, %p235
      %p237 = scmp.ne.s32.totalorder %s228, %s229
      %p238 = scmp.eq.s32.totalorder %s29, 0
      %p239 = por %p237, %p238
      %p240 = scmp.ne.s32.totalorder %s228, %s229
      %p241 = scmp.eq.s32.totalorder %s30, 1
      %p242 = por %p240, %p241
      %p244 = scmp.ne.s32.totalorder %s229, %s243
      %p245 = scmp.eq.s32.totalorder %s30, 0
      %p246 = por %p244, %p245
      %s248 = sadd.s32 %s247, 1
      %p251 = scmp.eq.s32.totalorder %s24, 1
      %p252 = scmp.ne.s32.totalorder %s247, %s249
      %p253 = scmp.eq.s32.totalorder %s24, 0
      %p254 = por %p252, %p253
      %p255 = scmp.ne.s32.totalorder %s247, %s249
      %p256 = scmp.eq.s32.totalorder %s29, 1
      %p257 = por %p255, %p256
      %p258 = scmp.ne.s32.totalorder %s249, %s250
      %p259 = scmp.eq.s32.totalorder %s29, 0
      %p260 = por %p258, %p259
      %p261 = scmp.ne.s32.totalorder %s249, %s250
      %p262 = scmp.eq.s32.totalorder %s30, 1
      %p263 = por %p261, %p262
      %p265 = scmp.ne.s32.totalorder %s250, %s264
      %p266 = scmp.eq.s32.totalorder %s30, 0
      %p267 = por %p265, %p266
      %s269 = sadd.s32 %s268, 1
      %p272 = scmp.eq.s32.totalorder %s24, 1
      %p273 = scmp.ne.s32.totalorder %s268, %s270
      %p274 = scmp.eq.s32.totalorder %s24, 0
      %p275 = por %p273, %p274
      %p276 = scmp.ne.s32.totalorder %s268, %s270
      %p277 = scmp.eq.s32.totalorder %s29, 1
      %p278 = por %p276, %p277
      %p279 = scmp.ne.s32.totalorder %s270, %s271
      %p280 = scmp.eq.s32.totalorder %s29, 0
      %p281 = por %p279, %p280
      %p282 = scmp.ne.s32.totalorder %s270, %s271
      %p283 = scmp.eq.s32.totalorder %s30, 1
      %p284 = por %p282, %p283
      %p286 = scmp.ne.s32.totalorder %s271, %s285
      %p287 = scmp.eq.s32.totalorder %s30, 0
      %p288 = por %p286, %p287
      %s290 = sadd.s32 %s289, 1
      %p293 = scmp.eq.s32.totalorder %s24, 1
      %p294 = scmp.ne.s32.totalorder %s289, %s291
      %p295 = scmp.eq.s32.totalorder %s24, 0
      %p296 = por %p294, %p295
      %p297 = scmp.ne.s32.totalorder %s289, %s291
      %p298 = scmp.eq.s32.totalorder %s29, 1
      %p299 = por %p297, %p298
      %p300 = scmp.ne.s32.totalorder %s291, %s292
      %p301 = scmp.eq.s32.totalorder %s29, 0
      %p302 = por %p300, %p301
      %p303 = scmp.ne.s32.totalorder %s291, %s292
      %p304 = scmp.eq.s32.totalorder %s30, 1
      %p305 = por %p303, %p304
      %p307 = scmp.ne.s32.totalorder %s292, %s306
      %p308 = scmp.eq.s32.totalorder %s30, 0
      %p309 = por %p307, %p308
      %s311 = sadd.s32 %s310, 1
      %p314 = scmp.eq.s32.totalorder %s24, 1
      %p315 = scmp.ne.s32.totalorder %s310, %s312
      %p316 = scmp.eq.s32.totalorder %s24, 0
      %p317 = por %p315, %p316
      %p318 = scmp.ne.s32.totalorder %s310, %s312
      %p319 = scmp.eq.s32.totalorder %s29, 1
      %p320 = por %p318, %p319
      %p321 = scmp.ne.s32.totalorder %s312, %s313
      %p322 = scmp.eq.s32.totalorder %s29, 0
      %p323 = por %p321, %p322
      %p324 = scmp.ne.s32.totalorder %s312, %s313
      %p325 = scmp.eq.s32.totalorder %s30, 1
      %p326 = por %p324, %p325
      %p328 = scmp.ne.s32.totalorder %s313, %s327
      %p329 = scmp.eq.s32.totalorder %s30, 0
      %p330 = por %p328, %p329
      %s332 = sadd.s32 %s331, 1
      %p335 = scmp.eq.s32.totalorder %s24, 1
      %p336 = scmp.ne.s32.totalorder %s331, %s333
      %p337 = scmp.eq.s32.totalorder %s24, 0
      %p338 = por %p336, %p337
      %p339 = scmp.ne.s32.totalorder %s331, %s333
      %p340 = scmp.eq.s32.totalorder %s29, 1
      %p341 = por %p339, %p340
      %p342 = scmp.ne.s32.totalorder %s333, %s334
      %p343 = scmp.eq.s32.totalorder %s29, 0
      %p344 = por %p342, %p343
      %p345 = scmp.ne.s32.totalorder %s333, %s334
      %p346 = scmp.eq.s32.totalorder %s30, 1
      %p347 = por %p345, %p346
      %p349 = scmp.ne.s32.totalorder %s334, %s348
      %p350 = scmp.eq.s32.totalorder %s30, 0
      %p351 = por %p349, %p350
      %s352 = ssub.s32 %s24, %s31
      %p353 = scmp.eq.s32.totalorder %s352, 0
      %s355 = sadd.s32 %s354, 1
      %s356 = scalar_select %p353, %s354, %s355
      %p359 = pneg %p353
      %p360 = scmp.eq.s32.totalorder %s24, 1
      %p361 = por %p359, %p360
      %p362 = scmp.ne.s32.totalorder %s354, %s357
      %p363 = scmp.eq.s32.totalorder %s24, 0
      %p364 = por %p362, %p363
      %p365 = scmp.ne.s32.totalorder %s354, %s357
      %p366 = scmp.eq.s32.totalorder %s29, 1
      %p367 = por %p365, %p366
      %p368 = scmp.ne.s32.totalorder %s357, %s358
      %p369 = scmp.eq.s32.totalorder %s29, 0
      %p370 = por %p368, %p369
      %p371 = scmp.ne.s32.totalorder %s357, %s358
      %p372 = scmp.eq.s32.totalorder %s30, 1
      %p373 = por %p371, %p372
      %p375 = scmp.ne.s32.totalorder %s358, %s374
      %p376 = scmp.eq.s32.totalorder %s30, 0
      %p377 = por %p375, %p376
      %p378 = scmp.le.s32.totalorder 1, %s24
      %p379 = scmp.lt.s32.totalorder %s24, 3
      %p380 = pnand %p378, %p379
      %p381 = pneg %p380
      // Predicated region
      $region9: #{lenet_forward.1} parent=5 // pred_check
        _
      $region10: #{lenet_forward.1} parent=5 // pred_check_branch
        %383 = sbr.rel (%p380) target = $region12
      $region11: #{lenet_forward.1} parent=5 // pred_region
        %s384 = ssub.s32 %s24, 1
        // Predicated region
        $region13: #{lenet_forward.1} parent=11 // pred_check
          %p385 = pneg %p71
        $region14: #{lenet_forward.1} parent=11 // pred_check_branch
          %387 = sbr.rel (%p385) target = $region16
        $region15: #{lenet_forward.1} parent=11 // pred_region
          _
        $region16: #{lenet_forward.1} parent=11 // pred_fallthru
          _
        // Predicated region
        $region17: #{lenet_forward.1} parent=11 // pred_check
          %p388 = pneg %p92
        $region18: #{lenet_forward.1} parent=11 // pred_check_branch
          %390 = sbr.rel (%p388) target = $region20
        $region19: #{lenet_forward.1} parent=11 // pred_region
          _
        $region20: #{lenet_forward.1} parent=11 // pred_fallthru
          _
        // Predicated region
        $region21: #{lenet_forward.1} parent=11 // pred_check
          %p391 = pneg %p113
        $region22: #{lenet_forward.1} parent=11 // pred_check_branch
          %393 = sbr.rel (%p391) target = $region24
        $region23: #{lenet_forward.1} parent=11 // pred_region
          _
        $region24: #{lenet_forward.1} parent=11 // pred_fallthru
          _
        // Predicated region
        $region25: #{lenet_forward.1} parent=11 // pred_check
          %p394 = pneg %p134
        $region26: #{lenet_forward.1} parent=11 // pred_check_branch
          %396 = sbr.rel (%p394) target = $region28
        $region27: #{lenet_forward.1} parent=11 // pred_region
          _
        $region28: #{lenet_forward.1} parent=11 // pred_fallthru
          _
        // Predicated region
        $region29: #{lenet_forward.1} parent=11 // pred_check
          %p397 = pneg %p155
        $region30: #{lenet_forward.1} parent=11 // pred_check_branch
          %399 = sbr.rel (%p397) target = $region32
        $region31: #{lenet_forward.1} parent=11 // pred_region
          _
        $region32: #{lenet_forward.1} parent=11 // pred_fallthru
          _
        // Predicated region
        $region33: #{lenet_forward.1} parent=11 // pred_check
          %p400 = pneg %p176
        $region34: #{lenet_forward.1} parent=11 // pred_check_branch
          %402 = sbr.rel (%p400) target = $region36
        $region35: #{lenet_forward.1} parent=11 // pred_region
          _
        $region36: #{lenet_forward.1} parent=11 // pred_fallthru
          _
        // Predicated region
        $region37: #{lenet_forward.1} parent=11 // pred_check
          %p403 = pneg %p197
        $region38: #{lenet_forward.1} parent=11 // pred_check_branch
          %405 = sbr.rel (%p403) target = $region40
        $region39: #{lenet_forward.1} parent=11 // pred_region
          _
        $region40: #{lenet_forward.1} parent=11 // pred_fallthru
          _
        // Predicated region
        $region41: #{lenet_forward.1} parent=11 // pred_check
          %p406 = pneg %p218
        $region42: #{lenet_forward.1} parent=11 // pred_check_branch
          %408 = sbr.rel (%p406) target = $region44
        $region43: #{lenet_forward.1} parent=11 // pred_region
          _
        $region44: #{lenet_forward.1} parent=11 // pred_fallthru
          _
        // Predicated region
        $region45: #{lenet_forward.1} parent=11 // pred_check
          %p409 = pneg %p239
        $region46: #{lenet_forward.1} parent=11 // pred_check_branch
          %411 = sbr.rel (%p409) target = $region48
        $region47: #{lenet_forward.1} parent=11 // pred_region
          _
        $region48: #{lenet_forward.1} parent=11 // pred_fallthru
          _
        // Predicated region
        $region49: #{lenet_forward.1} parent=11 // pred_check
          %p412 = pneg %p260
        $region50: #{lenet_forward.1} parent=11 // pred_check_branch
          %414 = sbr.rel (%p412) target = $region52
        $region51: #{lenet_forward.1} parent=11 // pred_region
          _
        $region52: #{lenet_forward.1} parent=11 // pred_fallthru
          _
        // Predicated region
        $region53: #{lenet_forward.1} parent=11 // pred_check
          %p415 = pneg %p281
        $region54: #{lenet_forward.1} parent=11 // pred_check_branch
          %417 = sbr.rel (%p415) target = $region56
        $region55: #{lenet_forward.1} parent=11 // pred_region
          _
        $region56: #{lenet_forward.1} parent=11 // pred_fallthru
          _
        // Predicated region
        $region57: #{lenet_forward.1} parent=11 // pred_check
          %p418 = pneg %p302
        $region58: #{lenet_forward.1} parent=11 // pred_check_branch
          %420 = sbr.rel (%p418) target = $region60
        $region59: #{lenet_forward.1} parent=11 // pred_region
          _
        $region60: #{lenet_forward.1} parent=11 // pred_fallthru
          _
        // Predicated region
        $region61: #{lenet_forward.1} parent=11 // pred_check
          %p421 = pneg %p323
        $region62: #{lenet_forward.1} parent=11 // pred_check_branch
          %423 = sbr.rel (%p421) target = $region64
        $region63: #{lenet_forward.1} parent=11 // pred_region
          _
        $region64: #{lenet_forward.1} parent=11 // pred_fallthru
          _
        // Predicated region
        $region65: #{lenet_forward.1} parent=11 // pred_check
          %p424 = pneg %p344
        $region66: #{lenet_forward.1} parent=11 // pred_check_branch
          %426 = sbr.rel (%p424) target = $region68
        $region67: #{lenet_forward.1} parent=11 // pred_region
          _
        $region68: #{lenet_forward.1} parent=11 // pred_fallthru
          _
      $region12: #{lenet_forward.1} parent=5 // pred_fallthru
        _
      %p427 = scmp.lt.s32.totalorder %s24, 2
      // Predicated region
      $region69: #{lenet_forward.1} parent=5 // pred_check
        %p428 = pneg %p427
      $region70: #{lenet_forward.1} parent=5 // pred_check_branch
        %430 = sbr.rel (%p428) target = $region72
      $region71: #{lenet_forward.1} parent=5 // pred_region
        // Predicated region
        $region73: #{lenet_forward.1} parent=71 // pred_check
          %p431 = pneg %p44
        $region74: #{lenet_forward.1} parent=71 // pred_check_branch
          %433 = sbr.rel (%p431) target = $region76
        $region75: #{lenet_forward.1} parent=71 // pred_region
          %p434 = scmp.lt.s32.totalorder %s24, 1
          %s435 = scalar_select %p434, %s24, 1
          %s436 = smul.addr %s435, 4
          %s437 = smul.addr %s436, 8
          %s438 = scalar_lea.vmem %s0, %s437
        $region76: #{lenet_forward.1} parent=71 // pred_fallthru
          _
      $region72: #{lenet_forward.1} parent=5 // pred_fallthru
        _
      %p439 = scmp.le.s32.totalorder 1, %s24
      %p440 = scmp.lt.s32.totalorder %s24, 3
      %p441 = pnand %p439, %p440
      %p442 = pneg %p441
      // Predicated region
      $region77: #{lenet_forward.1} parent=5 // pred_check
        _
      $region78: #{lenet_forward.1} parent=5 // pred_check_branch
        %444 = sbr.rel (%p441) target = $region80
      $region79: #{lenet_forward.1} parent=5 // pred_region
        %s445 = ssub.s32 %s24, 1
        %p446 = scmp.lt.s32.totalorder %s29, 1
        %s447 = scalar_select %p446, %s29, 1
        %s448 = smul.addr %s447, 4
        %s449 = smul.addr %s448, 8
        %s450 = scalar_lea.vmem %s0, %s449
        %p451 = pneg %p50
        %p452 = pneg %p47
        %p453 = pneg %p71
        %p454 = pneg %p68
        %p455 = pneg %p92
        %p456 = pneg %p89
        %p457 = pneg %p113
        %p458 = pneg %p110
        %p459 = pneg %p134
        %p460 = pneg %p131
        %p461 = pneg %p155
        %p462 = pneg %p152
        %p463 = pneg %p176
        %p464 = pneg %p173
        %p465 = pneg %p197
        %p466 = pneg %p194
        %p467 = pneg %p218
        %p468 = pneg %p215
        %p469 = pneg %p239
        %p470 = pneg %p236
        %p471 = pneg %p260
        %p472 = pneg %p257
        %p473 = pneg %p281
        %p474 = pneg %p278
        %p475 = pneg %p302
        %p476 = pneg %p299
        %p477 = pneg %p323
        %p478 = pneg %p320
        %p479 = pneg %p344
        %p480 = pneg %p341
        %p481 = pneg %p370
        %p482 = pneg %p367
        %s483 = sand.u32 %s357, 1
        %s484 = scalar_lea.sflag [#allocation3], %s483
        %s485 = sand.u32 %s357, 1
        %s486 = scalar_lea.vmem [#allocation2], %s485
        %p487 = scmp.lt.s32.totalorder %s29, 1
        %s488 = scalar_select %p487, %s29, 1
        %s489 = smul.addr %s488, 4
        %s490 = smul.addr %s489, 8
        %s491 = scalar_lea.vmem %s0, %s490
        %v492 = vld [vmem:[%s491] sm:$0xff]
        %v493 = vld [vmem:[%s491 + $0x8] sm:$0xff]
        %v494 = vld [vmem:[%s491 + $0x10] sm:$0xff]
        %v495 = vld [vmem:[%s491 + $0x18] sm:$0xff]
        %v496 = vld [vmem:[%s1] sm:$0xff]
        %v497 = vld [vmem:[%s1 + $0x8] sm:$0xff]
        %v498 = vld [vmem:[%s1 + $0x10] sm:$0xff]
        %v499 = vld [vmem:[%s1 + $0x18] sm:$0xff]
        %v500 = vld [vmem:[%s1 + $0x20] sm:$0xff]
        %v501 = vld [vmem:[%s1 + $0x28] sm:$0xff]
        %v502 = vld [vmem:[%s1 + $0x30] sm:$0xff]
        %v503 = vld [vmem:[%s1 + $0x38] sm:$0xff]
        %s504 = scalar_lea.vmem %s1, 64
        %v505 = vld [vmem:[%s504] sm:$0xff]
        %v506 = vld [vmem:[%s504 + $0x8] sm:$0xff]
        %v507 = vld [vmem:[%s504 + $0x10] sm:$0xff]
        %v508 = vld [vmem:[%s504 + $0x18] sm:$0xff]
        %v509 = vld [vmem:[%s504 + $0x20] sm:$0xff]
        %v510 = vld [vmem:[%s504 + $0x28] sm:$0xff]
        %v511 = vld [vmem:[%s504 + $0x30] sm:$0xff]
        %v512 = vld [vmem:[%s504 + $0x38] sm:$0xff]
        %vm517 = vcmask 1046528
        %v518 = vrot.slane %v492, 1
        %v519 = vrot.slane %v493, 1
        %v520 = vsel %vm517, %v518, %v519
        %v521 = vrot.slane %v494, 1
        %v522 = vsel %vm517, %v519, %v521
        %v523 = vrot.slane %v495, 1
        %v524 = vsel %vm517, %v521, %v523
        %vm525 = vcmask 261120
        %v526 = vsel %vm525, %v520, 0
        %v528 = vsel %vm525, %v522, 0
        %v530 = vsel %vm525, %v524, 0
        %v532 = vsel %vm525, %v523, 0
        %534 = vmatprep.subr.mxu0 0.0
        %535 = vmatpush1.msra.mxu0 0.0
        %536 = vmatprep.subr.mxu0 0.0
        %537 = vmatpush1.msra.mxu0 0.0
        %538 = vmatprep.subr.mxu0 0.0
        %539 = vmatpush1.msra.mxu0 0.0
        %540 = vmatprep.subr.mxu0 0.0
        %541 = vmatpush1.msra.mxu0 0.0
        %542 = vmatprep.subr.mxu0 0.0
        %543 = vmatpush1.msra.mxu0 0.0
        %544 = vmatprep.subr.mxu0 0.0
        %545 = vmatpush1.msra.mxu0 0.0
        %546 = vmatprep.subr.mxu0 0.0
        %547 = vmatpush1.msra.mxu0 0.0
        %548 = vmatprep.subr.mxu0 0.0
        %549 = vmatpush1.msra.mxu0 0.0
        %550 = vmatprep.subr.mxu0 0.0
        %551 = vmatpush1.msra.mxu0 0.0
        %552 = vmatprep.subr.mxu0 0.0
        %553 = vmatpush1.msra.mxu0 0.0
        %554 = vmatprep.subr.mxu0 0.0
        %555 = vmatpush1.msra.mxu0 0.0
        %556 = vmatprep.subr.mxu0 0.0
        %557 = vmatpush1.msra.mxu0 0.0
        %558 = vmatprep.subr.mxu0 %v512
        %559 = vmatpush1.msra.mxu0 %v511
        %560 = vmatprep.subr.mxu0 %v510
        %561 = vmatpush1.msra.mxu0 %v509
        %562 = vmatprep.subr.mxu0 %v508
        %563 = vmatpush1.msra.mxu0 %v507
        %564 = vmatprep.subr.mxu0 %v506
        %565 = vmatpush1.msra.mxu0 %v505
        %566 = vmatprep.subr.mxu0 0.0
        %567 = vmatpush2.msra.mxu0 0.0
        %568 = vmatprep.subr.mxu0 0.0
        %569 = vmatpush2.msra.mxu0 0.0
        %570 = vmatprep.subr.mxu0 0.0
        %571 = vmatpush2.msra.mxu0 0.0
        %572 = vmatprep.subr.mxu0 0.0
        %573 = vmatpush2.msra.mxu0 0.0
        %574 = vmatprep.subr.mxu0 0.0
        %575 = vmatpush2.msra.mxu0 0.0
        %576 = vmatprep.subr.mxu0 0.0
        %577 = vmatpush2.msra.mxu0 0.0
        %578 = vmatprep.subr.mxu0 0.0
        %579 = vmatpush2.msra.mxu0 0.0
        %580 = vmatprep.subr.mxu0 0.0
        %581 = vmatpush2.msra.mxu0 0.0
        %582 = vmatprep.subr.mxu0 0.0
        %583 = vmatpush2.msra.mxu0 0.0
        %584 = vmatprep.subr.mxu0 0.0
        %585 = vmatpush2.msra.mxu0 0.0
        %586 = vmatprep.subr.mxu0 0.0
        %587 = vmatpush2.msra.mxu0 0.0
        %588 = vmatprep.subr.mxu0 0.0
        %589 = vmatpush2.msra.mxu0 0.0
        %590 = vmatprep.subr.mxu0 0.0
        %591 = vmatpush2.msra.mxu0 0.0
        %592 = vmatprep.subr.mxu0 0.0
        %593 = vmatpush2.msra.mxu0 0.0
        %594 = vmatprep.subr.mxu0 0.0
        %595 = vmatpush2.msra.mxu0 0.0
        %596 = vmatprep.subr.mxu0 0.0
        %597 = vmatpush2.msra.mxu0 0.0
        %598 = vmatprep.mubr.f32.mxu0 0.0
        %599 = vmatmul.mubr.f32.gmra.mxu0 %v526
        %v600 = vpop.f32.mrf.mxu0
        %v601 = vadd.f32 0.0, %v600
        %v602 = vpop.f32.mrf.mxu0
        %v603 = vadd.f32 0.0, %v602
        %604 = vmatprep.mubr.f32.mxu0 0.0
        %605 = vmatmul.mubr.f32.gmra.mxu0 %v528
        %v606 = vpop.f32.mrf.mxu0
        %v607 = vadd.f32 0.0, %v606
        %v608 = vpop.f32.mrf.mxu0
        %v609 = vadd.f32 0.0, %v608
        %610 = vmatprep.mubr.f32.mxu0 0.0
        %611 = vmatmul.mubr.f32.gmra.mxu0 %v530
        %v612 = vpop.f32.mrf.mxu0
        %v613 = vadd.f32 0.0, %v612
        %v614 = vpop.f32.mrf.mxu0
        %v615 = vadd.f32 0.0, %v614
        %616 = vmatprep.mubr.f32.mxu0 0.0
        %617 = vmatmul.mubr.f32.gmra.mxu0 %v532
        %v618 = vpop.f32.mrf.mxu0
        %v619 = vadd.f32 0.0, %v618
        %v620 = vpop.f32.mrf.mxu0
        %v621 = vadd.f32 0.0, %v620
        %622 = vdwg.mxu0
        %v623 = vsel %vm525, %v492, 0
        %v625 = vsel %vm525, %v493, 0
        %v627 = vsel %vm525, %v494, 0
        %v629 = vsel %vm525, %v495, 0
        %631 = vmatprep.subr.mxu0 0.0
        %632 = vmatpush1.msra.mxu0 0.0
        %633 = vmatprep.subr.mxu0 0.0
        %634 = vmatpush1.msra.mxu0 0.0
        %635 = vmatprep.subr.mxu0 0.0
        %636 = vmatpush1.msra.mxu0 0.0
        %637 = vmatprep.subr.mxu0 0.0
        %638 = vmatpush1.msra.mxu0 0.0
        %639 = vmatprep.subr.mxu0 0.0
        %640 = vmatpush1.msra.mxu0 0.0
        %641 = vmatprep.subr.mxu0 0.0
        %642 = vmatpush1.msra.mxu0 0.0
        %643 = vmatprep.subr.mxu0 0.0
        %644 = vmatpush1.msra.mxu0 0.0
        %645 = vmatprep.subr.mxu0 0.0
        %646 = vmatpush1.msra.mxu0 0.0
        %647 = vmatprep.subr.mxu0 0.0
        %648 = vmatpush1.msra.mxu0 0.0
        %649 = vmatprep.subr.mxu0 0.0
        %650 = vmatpush1.msra.mxu0 0.0
        %651 = vmatprep.subr.mxu0 0.0
        %652 = vmatpush1.msra.mxu0 0.0
        %653 = vmatprep.subr.mxu0 0.0
        %654 = vmatpush1.msra.mxu0 0.0
        %655 = vmatprep.subr.mxu0 %v503
        %656 = vmatpush1.msra.mxu0 %v502
        %657 = vmatprep.subr.mxu0 %v501
        %658 = vmatpush1.msra.mxu0 %v500
        %659 = vmatprep.subr.mxu0 %v499
        %660 = vmatpush1.msra.mxu0 %v498
        %661 = vmatprep.subr.mxu0 %v497
        %662 = vmatpush1.msra.mxu0 %v496
        %663 = vmatprep.subr.mxu0 0.0
        %664 = vmatpush2.msra.mxu0 0.0
        %665 = vmatprep.subr.mxu0 0.0
        %666 = vmatpush2.msra.mxu0 0.0
        %667 = vmatprep.subr.mxu0 0.0
        %668 = vmatpush2.msra.mxu0 0.0
        %669 = vmatprep.subr.mxu0 0.0
        %670 = vmatpush2.msra.mxu0 0.0
        %671 = vmatprep.subr.mxu0 0.0
        %672 = vmatpush2.msra.mxu0 0.0
        %673 = vmatprep.subr.mxu0 0.0
        %674 = vmatpush2.msra.mxu0 0.0
        %675 = vmatprep.subr.mxu0 0.0
        %676 = vmatpush2.msra.mxu0 0.0
        %677 = vmatprep.subr.mxu0 0.0
        %678 = vmatpush2.msra.mxu0 0.0
        %679 = vmatprep.subr.mxu0 0.0
        %680 = vmatpush2.msra.mxu0 0.0
        %681 = vmatprep.subr.mxu0 0.0
        %682 = vmatpush2.msra.mxu0 0.0
        %683 = vmatprep.subr.mxu0 0.0
        %684 = vmatpush2.msra.mxu0 0.0
        %685 = vmatprep.subr.mxu0 0.0
        %686 = vmatpush2.msra.mxu0 0.0
        %687 = vmatprep.subr.mxu0 0.0
        %688 = vmatpush2.msra.mxu0 0.0
        %689 = vmatprep.subr.mxu0 0.0
        %690 = vmatpush2.msra.mxu0 0.0
        %691 = vmatprep.subr.mxu0 0.0
        %692 = vmatpush2.msra.mxu0 0.0
        %693 = vmatprep.subr.mxu0 0.0
        %694 = vmatpush2.msra.mxu0 0.0
        %695 = vmatprep.mubr.f32.mxu0 0.0
        %696 = vmatmul.mubr.f32.gmra.mxu0 %v623
        %v697 = vpop.f32.mrf.mxu0
        %v698 = vadd.f32 %v601, %v697
        %v699 = vpop.f32.mrf.mxu0
        %v700 = vadd.f32 %v603, %v699
        %701 = vmatprep.mubr.f32.mxu0 0.0
        %702 = vmatmul.mubr.f32.gmra.mxu0 %v625
        %v703 = vpop.f32.mrf.mxu0
        %v704 = vadd.f32 %v607, %v703
        %v705 = vpop.f32.mrf.mxu0
        %v706 = vadd.f32 %v609, %v705
        %707 = vmatprep.mubr.f32.mxu0 0.0
        %708 = vmatmul.mubr.f32.gmra.mxu0 %v627
        %v709 = vpop.f32.mrf.mxu0
        %v710 = vadd.f32 %v613, %v709
        %v711 = vpop.f32.mrf.mxu0
        %v712 = vadd.f32 %v615, %v711
        %713 = vmatprep.mubr.f32.mxu0 0.0
        %714 = vmatmul.mubr.f32.gmra.mxu0 %v629
        %v715 = vpop.f32.mrf.mxu0
        %v716 = vadd.f32 %v619, %v715
        %v717 = vpop.f32.mrf.mxu0
        %v718 = vadd.f32 %v621, %v717
        %719 = vdwg.mxu0
        %s720 = scalar_lea.vmem %s1, 128
        %v721 = vld [vmem:[%s720] sm:$0xff]
        %v722 = vld [vmem:[%s720 + $0x8] sm:$0xff]
        %v723 = vld [vmem:[%s720 + $0x10] sm:$0xff]
        %v724 = vld [vmem:[%s720 + $0x18] sm:$0xff]
        %v725 = vld [vmem:[%s720 + $0x20] sm:$0xff]
        %v726 = vld [vmem:[%s720 + $0x28] sm:$0xff]
        %v727 = vld [vmem:[%s720 + $0x30] sm:$0xff]
        %v728 = vld [vmem:[%s720 + $0x38] sm:$0xff]
        %vm729 = vcmask 1045504
        %v730 = vrot.slane %v492, 2
        %v731 = vrot.slane %v493, 2
        %v732 = vsel %vm729, %v730, %v731
        %v733 = vrot.slane %v494, 2
        %v734 = vsel %vm729, %v731, %v733
        %v735 = vrot.slane %v495, 2
        %v736 = vsel %vm729, %v733, %v735
        %v737 = vsel %vm525, %v732, 0
        %v739 = vsel %vm525, %v734, 0
        %v741 = vsel %vm525, %v736, 0
        %v743 = vsel %vm525, %v735, 0
        %745 = vmatprep.subr.mxu0 0.0
        %746 = vmatpush1.msra.mxu0 0.0
        %747 = vmatprep.subr.mxu0 0.0
        %748 = vmatpush1.msra.mxu0 0.0
        %749 = vmatprep.subr.mxu0 0.0
        %750 = vmatpush1.msra.mxu0 0.0
        %751 = vmatprep.subr.mxu0 0.0
        %752 = vmatpush1.msra.mxu0 0.0
        %753 = vmatprep.subr.mxu0 0.0
        %754 = vmatpush1.msra.mxu0 0.0
        %755 = vmatprep.subr.mxu0 0.0
        %756 = vmatpush1.msra.mxu0 0.0
        %757 = vmatprep.subr.mxu0 0.0
        %758 = vmatpush1.msra.mxu0 0.0
        %759 = vmatprep.subr.mxu0 0.0
        %760 = vmatpush1.msra.mxu0 0.0
        %761 = vmatprep.subr.mxu0 0.0
        %762 = vmatpush1.msra.mxu0 0.0
        %763 = vmatprep.subr.mxu0 0.0
        %764 = vmatpush1.msra.mxu0 0.0
        %765 = vmatprep.subr.mxu0 0.0
        %766 = vmatpush1.msra.mxu0 0.0
        %767 = vmatprep.subr.mxu0 0.0
        %768 = vmatpush1.msra.mxu0 0.0
        %769 = vmatprep.subr.mxu0 %v728
        %770 = vmatpush1.msra.mxu0 %v727
        %771 = vmatprep.subr.mxu0 %v726
        %772 = vmatpush1.msra.mxu0 %v725
        %773 = vmatprep.subr.mxu0 %v724
        %774 = vmatpush1.msra.mxu0 %v723
        %775 = vmatprep.subr.mxu0 %v722
        %776 = vmatpush1.msra.mxu0 %v721
        %777 = vmatprep.subr.mxu0 0.0
        %778 = vmatpush2.msra.mxu0 0.0
        %779 = vmatprep.subr.mxu0 0.0
        %780 = vmatpush2.msra.mxu0 0.0
        %781 = vmatprep.subr.mxu0 0.0
        %782 = vmatpush2.msra.mxu0 0.0
        %783 = vmatprep.subr.mxu0 0.0
        %784 = vmatpush2.msra.mxu0 0.0
        %785 = vmatprep.subr.mxu0 0.0
        %786 = vmatpush2.msra.mxu0 0.0
        %787 = vmatprep.subr.mxu0 0.0
        %788 = vmatpush2.msra.mxu0 0.0
        %789 = vmatprep.subr.mxu0 0.0
        %790 = vmatpush2.msra.mxu0 0.0
        %791 = vmatprep.subr.mxu0 0.0
        %792 = vmatpush2.msra.mxu0 0.0
        %793 = vmatprep.subr.mxu0 0.0
        %794 = vmatpush2.msra.mxu0 0.0
        %795 = vmatprep.subr.mxu0 0.0
        %796 = vmatpush2.msra.mxu0 0.0
        %797 = vmatprep.subr.mxu0 0.0
        %798 = vmatpush2.msra.mxu0 0.0
        %799 = vmatprep.subr.mxu0 0.0
        %800 = vmatpush2.msra.mxu0 0.0
        %801 = vmatprep.subr.mxu0 0.0
        %802 = vmatpush2.msra.mxu0 0.0
        %803 = vmatprep.subr.mxu0 0.0
        %804 = vmatpush2.msra.mxu0 0.0
        %805 = vmatprep.subr.mxu0 0.0
        %806 = vmatpush2.msra.mxu0 0.0
        %807 = vmatprep.subr.mxu0 0.0
        %808 = vmatpush2.msra.mxu0 0.0
        %809 = vmatprep.mubr.f32.mxu0 0.0
        %810 = vmatmul.mubr.f32.gmra.mxu0 %v737
        %v811 = vpop.f32.mrf.mxu0
        %v812 = vadd.f32 0.0, %v811
        %v813 = vpop.f32.mrf.mxu0
        %v814 = vadd.f32 0.0, %v813
        %815 = vmatprep.mubr.f32.mxu0 0.0
        %816 = vmatmul.mubr.f32.gmra.mxu0 %v739
        %v817 = vpop.f32.mrf.mxu0
        %v818 = vadd.f32 0.0, %v817
        %v819 = vpop.f32.mrf.mxu0
        %v820 = vadd.f32 0.0, %v819
        %821 = vmatprep.mubr.f32.mxu0 0.0
        %822 = vmatmul.mubr.f32.gmra.mxu0 %v741
        %v823 = vpop.f32.mrf.mxu0
        %v824 = vadd.f32 0.0, %v823
        %v825 = vpop.f32.mrf.mxu0
        %v826 = vadd.f32 0.0, %v825
        %827 = vmatprep.mubr.f32.mxu0 0.0
        %828 = vmatmul.mubr.f32.gmra.mxu0 %v743
        %v829 = vpop.f32.mrf.mxu0
        %v830 = vadd.f32 0.0, %v829
        %v831 = vpop.f32.mrf.mxu0
        %v832 = vadd.f32 0.0, %v831
        %833 = vdwg.mxu0
        %v834 = vadd.f32 %v698, %v812
        %v835 = vadd.f32 %v700, %v814
        %v836 = vadd.f32 %v704, %v818
        %v837 = vadd.f32 %v706, %v820
        %v838 = vadd.f32 %v710, %v824
        %v839 = vadd.f32 %v712, %v826
        %v840 = vadd.f32 %v716, %v830
        %v841 = vadd.f32 %v718, %v832
        %s842 = scalar_lea.vmem %s1, 192
        %v843 = vld [vmem:[%s842] sm:$0xff]
        %v844 = vld [vmem:[%s842 + $0x8] sm:$0xff]
        %v845 = vld [vmem:[%s842 + $0x10] sm:$0xff]
        %v846 = vld [vmem:[%s842 + $0x18] sm:$0xff]
        %v847 = vld [vmem:[%s842 + $0x20] sm:$0xff]
        %v848 = vld [vmem:[%s842 + $0x28] sm:$0xff]
        %v849 = vld [vmem:[%s842 + $0x30] sm:$0xff]
        %v850 = vld [vmem:[%s842 + $0x38] sm:$0xff]
        %vm851 = vcmask 1044480
        %v852 = vrot.slane %v492, 3
        %v853 = vrot.slane %v493, 3
        %v854 = vsel %vm851, %v852, %v853
        %v855 = vrot.slane %v494, 3
        %v856 = vsel %vm851, %v853, %v855
        %v857 = vrot.slane %v495, 3
        %v858 = vsel %vm851, %v855, %v857
        %v859 = vsel %vm525, %v854, 0
        %v861 = vsel %vm525, %v856, 0
        %v863 = vsel %vm525, %v858, 0
        %v865 = vsel %vm525, %v857, 0
        %867 = vmatprep.subr.mxu0 0.0
        %868 = vmatpush1.msra.mxu0 0.0
        %869 = vmatprep.subr.mxu0 0.0
        %870 = vmatpush1.msra.mxu0 0.0
        %871 = vmatprep.subr.mxu0 0.0
        %872 = vmatpush1.msra.mxu0 0.0
        %873 = vmatprep.subr.mxu0 0.0
        %874 = vmatpush1.msra.mxu0 0.0
        %875 = vmatprep.subr.mxu0 0.0
        %876 = vmatpush1.msra.mxu0 0.0
        %877 = vmatprep.subr.mxu0 0.0
        %878 = vmatpush1.msra.mxu0 0.0
        %879 = vmatprep.subr.mxu0 0.0
        %880 = vmatpush1.msra.mxu0 0.0
        %881 = vmatprep.subr.mxu0 0.0
        %882 = vmatpush1.msra.mxu0 0.0
        %883 = vmatprep.subr.mxu0 0.0
        %884 = vmatpush1.msra.mxu0 0.0
        %885 = vmatprep.subr.mxu0 0.0
        %886 = vmatpush1.msra.mxu0 0.0
        %887 = vmatprep.subr.mxu0 0.0
        %888 = vmatpush1.msra.mxu0 0.0
        %889 = vmatprep.subr.mxu0 0.0
        %890 = vmatpush1.msra.mxu0 0.0
        %891 = vmatprep.subr.mxu0 %v850
        %892 = vmatpush1.msra.mxu0 %v849
        %893 = vmatprep.subr.mxu0 %v848
        %894 = vmatpush1.msra.mxu0 %v847
        %895 = vmatprep.subr.mxu0 %v846
        %896 = vmatpush1.msra.mxu0 %v845
        %897 = vmatprep.subr.mxu0 %v844
        %898 = vmatpush1.msra.mxu0 %v843
        %899 = vmatprep.subr.mxu0 0.0
        %900 = vmatpush2.msra.mxu0 0.0
        %901 = vmatprep.subr.mxu0 0.0
        %902 = vmatpush2.msra.mxu0 0.0
        %903 = vmatprep.subr.mxu0 0.0
        %904 = vmatpush2.msra.mxu0 0.0
        %905 = vmatprep.subr.mxu0 0.0
        %906 = vmatpush2.msra.mxu0 0.0
        %907 = vmatprep.subr.mxu0 0.0
        %908 = vmatpush2.msra.mxu0 0.0
        %909 = vmatprep.subr.mxu0 0.0
        %910 = vmatpush2.msra.mxu0 0.0
        %911 = vmatprep.subr.mxu0 0.0
        %912 = vmatpush2.msra.mxu0 0.0
        %913 = vmatprep.subr.mxu0 0.0
        %914 = vmatpush2.msra.mxu0 0.0
        %915 = vmatprep.subr.mxu0 0.0
        %916 = vmatpush2.msra.mxu0 0.0
        %917 = vmatprep.subr.mxu0 0.0
        %918 = vmatpush2.msra.mxu0 0.0
        %919 = vmatprep.subr.mxu0 0.0
        %920 = vmatpush2.msra.mxu0 0.0
        %921 = vmatprep.subr.mxu0 0.0
        %922 = vmatpush2.msra.mxu0 0.0
        %923 = vmatprep.subr.mxu0 0.0
        %924 = vmatpush2.msra.mxu0 0.0
        %925 = vmatprep.subr.mxu0 0.0
        %926 = vmatpush2.msra.mxu0 0.0
        %927 = vmatprep.subr.mxu0 0.0
        %928 = vmatpush2.msra.mxu0 0.0
        %929 = vmatprep.subr.mxu0 0.0
        %930 = vmatpush2.msra.mxu0 0.0
        %931 = vmatprep.mubr.f32.mxu0 0.0
        %932 = vmatmul.mubr.f32.gmra.mxu0 %v859
        %v933 = vpop.f32.mrf.mxu0
        %v934 = vadd.f32 0.0, %v933
        %v935 = vpop.f32.mrf.mxu0
        %v936 = vadd.f32 0.0, %v935
        %937 = vmatprep.mubr.f32.mxu0 0.0
        %938 = vmatmul.mubr.f32.gmra.mxu0 %v861
        %v939 = vpop.f32.mrf.mxu0
        %v940 = vadd.f32 0.0, %v939
        %v941 = vpop.f32.mrf.mxu0
        %v942 = vadd.f32 0.0, %v941
        %943 = vmatprep.mubr.f32.mxu0 0.0
        %944 = vmatmul.mubr.f32.gmra.mxu0 %v863
        %v945 = vpop.f32.mrf.mxu0
        %v946 = vadd.f32 0.0, %v945
        %v947 = vpop.f32.mrf.mxu0
        %v948 = vadd.f32 0.0, %v947
        %949 = vmatprep.mubr.f32.mxu0 0.0
        %950 = vmatmul.mubr.f32.gmra.mxu0 %v865
        %v951 = vpop.f32.mrf.mxu0
        %v952 = vadd.f32 0.0, %v951
        %v953 = vpop.f32.mrf.mxu0
        %v954 = vadd.f32 0.0, %v953
        %955 = vdwg.mxu0
        %v956 = vadd.f32 %v834, %v934
        %v957 = vadd.f32 %v835, %v936
        %v958 = vadd.f32 %v836, %v940
        %v959 = vadd.f32 %v837, %v942
        %v960 = vadd.f32 %v838, %v946
        %v961 = vadd.f32 %v839, %v948
        %v962 = vadd.f32 %v840, %v952
        %v963 = vadd.f32 %v841, %v954
        %s964 = scalar_lea.vmem %s1, 256
        %v965 = vld [vmem:[%s964] sm:$0xff]
        %v966 = vld [vmem:[%s964 + $0x8] sm:$0xff]
        %v967 = vld [vmem:[%s964 + $0x10] sm:$0xff]
        %v968 = vld [vmem:[%s964 + $0x18] sm:$0xff]
        %v969 = vld [vmem:[%s964 + $0x20] sm:$0xff]
        %v970 = vld [vmem:[%s964 + $0x28] sm:$0xff]
        %v971 = vld [vmem:[%s964 + $0x30] sm:$0xff]
        %v972 = vld [vmem:[%s964 + $0x38] sm:$0xff]
        %vm973 = vcmask 1043456
        %v974 = vrot.slane %v492, 4
        %v975 = vrot.slane %v493, 4
        %v976 = vsel %vm973, %v974, %v975
        %v977 = vrot.slane %v494, 4
        %v978 = vsel %vm973, %v975, %v977
        %v979 = vrot.slane %v495, 4
        %v980 = vsel %vm973, %v977, %v979
        %v981 = vsel %vm525, %v976, 0
        %v983 = vsel %vm525, %v978, 0
        %v985 = vsel %vm525, %v980, 0
        %v987 = vsel %vm525, %v979, 0
        %989 = vmatprep.subr.mxu0 0.0
        %990 = vmatpush1.msra.mxu0 0.0
        %991 = vmatprep.subr.mxu0 0.0
        %992 = vmatpush1.msra.mxu0 0.0
        %993 = vmatprep.subr.mxu0 0.0
        %994 = vmatpush1.msra.mxu0 0.0
        %995 = vmatprep.subr.mxu0 0.0
        %996 = vmatpush1.msra.mxu0 0.0
        %997 = vmatprep.subr.mxu0 0.0
        %998 = vmatpush1.msra.mxu0 0.0
        %999 = vmatprep.subr.mxu0 0.0
        %1000 = vmatpush1.msra.mxu0 0.0
        %1001 = vmatprep.subr.mxu0 0.0
        %1002 = vmatpush1.msra.mxu0 0.0
        %1003 = vmatprep.subr.mxu0 0.0
        %1004 = vmatpush1.msra.mxu0 0.0
        %1005 = vmatprep.subr.mxu0 0.0
        %1006 = vmatpush1.msra.mxu0 0.0
        %1007 = vmatprep.subr.mxu0 0.0
        %1008 = vmatpush1.msra.mxu0 0.0
        %1009 = vmatprep.subr.mxu0 0.0
        %1010 = vmatpush1.msra.mxu0 0.0
        %1011 = vmatprep.subr.mxu0 0.0
        %1012 = vmatpush1.msra.mxu0 0.0
        %1013 = vmatprep.subr.mxu0 %v972
        %1014 = vmatpush1.msra.mxu0 %v971
        %1015 = vmatprep.subr.mxu0 %v970
        %1016 = vmatpush1.msra.mxu0 %v969
        %1017 = vmatprep.subr.mxu0 %v968
        %1018 = vmatpush1.msra.mxu0 %v967
        %1019 = vmatprep.subr.mxu0 %v966
        %1020 = vmatpush1.msra.mxu0 %v965
        %1021 = vmatprep.subr.mxu0 0.0
        %1022 = vmatpush2.msra.mxu0 0.0
        %1023 = vmatprep.subr.mxu0 0.0
        %1024 = vmatpush2.msra.mxu0 0.0
        %1025 = vmatprep.subr.mxu0 0.0
        %1026 = vmatpush2.msra.mxu0 0.0
        %1027 = vmatprep.subr.mxu0 0.0
        %1028 = vmatpush2.msra.mxu0 0.0
        %1029 = vmatprep.subr.mxu0 0.0
        %1030 = vmatpush2.msra.mxu0 0.0
        %1031 = vmatprep.subr.mxu0 0.0
        %1032 = vmatpush2.msra.mxu0 0.0
        %1033 = vmatprep.subr.mxu0 0.0
        %1034 = vmatpush2.msra.mxu0 0.0
        %1035 = vmatprep.subr.mxu0 0.0
        %1036 = vmatpush2.msra.mxu0 0.0
        %1037 = vmatprep.subr.mxu0 0.0
        %1038 = vmatpush2.msra.mxu0 0.0
        %1039 = vmatprep.subr.mxu0 0.0
        %1040 = vmatpush2.msra.mxu0 0.0
        %1041 = vmatprep.subr.mxu0 0.0
        %1042 = vmatpush2.msra.mxu0 0.0
        %1043 = vmatprep.subr.mxu0 0.0
        %1044 = vmatpush2.msra.mxu0 0.0
        %1045 = vmatprep.subr.mxu0 0.0
        %1046 = vmatpush2.msra.mxu0 0.0
        %1047 = vmatprep.subr.mxu0 0.0
        %1048 = vmatpush2.msra.mxu0 0.0
        %1049 = vmatprep.subr.mxu0 0.0
        %1050 = vmatpush2.msra.mxu0 0.0
        %1051 = vmatprep.subr.mxu0 0.0
        %1052 = vmatpush2.msra.mxu0 0.0
        %1053 = vmatprep.mubr.f32.mxu0 0.0
        %1054 = vmatmul.mubr.f32.gmra.mxu0 %v981
        %v1055 = vpop.f32.mrf.mxu0
        %v1056 = vadd.f32 0.0, %v1055
        %v1057 = vpop.f32.mrf.mxu0
        %v1058 = vadd.f32 0.0, %v1057
        %1059 = vmatprep.mubr.f32.mxu0 0.0
        %1060 = vmatmul.mubr.f32.gmra.mxu0 %v983
        %v1061 = vpop.f32.mrf.mxu0
        %v1062 = vadd.f32 0.0, %v1061
        %v1063 = vpop.f32.mrf.mxu0
        %v1064 = vadd.f32 0.0, %v1063
        %1065 = vmatprep.mubr.f32.mxu0 0.0
        %1066 = vmatmul.mubr.f32.gmra.mxu0 %v985
        %v1067 = vpop.f32.mrf.mxu0
        %v1068 = vadd.f32 0.0, %v1067
        %v1069 = vpop.f32.mrf.mxu0
        %v1070 = vadd.f32 0.0, %v1069
        %1071 = vmatprep.mubr.f32.mxu0 0.0
        %1072 = vmatmul.mubr.f32.gmra.mxu0 %v987
        %v1073 = vpop.f32.mrf.mxu0
        %v1074 = vadd.f32 0.0, %v1073
        %v1075 = vpop.f32.mrf.mxu0
        %v1076 = vadd.f32 0.0, %v1075
        %1077 = vdwg.mxu0
        %v1078 = vadd.f32 %v956, %v1056
        %v1079 = vadd.f32 %v957, %v1058
        %v1080 = vadd.f32 %v958, %v1062
        %v1081 = vadd.f32 %v959, %v1064
        %v1082 = vadd.f32 %v960, %v1068
        %v1083 = vadd.f32 %v961, %v1070
        %v1084 = vadd.f32 %v962, %v1074
        %v1085 = vadd.f32 %v963, %v1076
        %v1086 = vld [vmem:[%s2] sm:$0x3]
        %v1088 = vlaneseq
        %v1089 = vshrl.u32 %v1088, 7
        %v1090 = vsub.s32 0, %v1089
        %v1091 = vrot.slane %v1086, %v1090
        %v1092 = vlaneseq
        %v1093 = vshrl.u32 %v1092, 7
        %v1094 = vsub.s32 1, %v1093
        %v1095 = vrot.slane %v1086, %v1094
        %v1098 = vadd.f32 %v1078, %v1091
        %v1099 = vadd.f32 %v1079, %v1095
        %v1100 = vadd.f32 %v1080, %v1091
        %v1101 = vadd.f32 %v1081, %v1095
        %v1102 = vadd.f32 %v1082, %v1091
        %v1103 = vadd.f32 %v1083, %v1095
        %v1104 = vadd.f32 %v1084, %v1091
        %v1105 = vadd.f32 %v1085, %v1095
        %v1106 = vmax.f32 %v1098, 0.0
        %v1107 = vmax.f32 %v1099, 0.0
        %v1108 = vmax.f32 %v1100, 0.0
        %v1109 = vmax.f32 %v1101, 0.0
        %v1110 = vmax.f32 %v1102, 0.0
        %v1111 = vmax.f32 %v1103, 0.0
        %v1112 = vmax.f32 %v1104, 0.0
        %v1113 = vmax.f32 %v1105, 0.0
        %v1114 = vld [vmem:[%s3] sm:$0xff]
        %v1115 = vld [vmem:[%s3 + $0x8] sm:$0x3f]
        %v1116 = vld [vmem:[%s4] sm:$0xff]
        %v1117 = vld [vmem:[%s4 + $0x8] sm:$0xff]
        %v1118 = vld [vmem:[%s4 + $0x10] sm:$0xff]
        %v1119 = vld [vmem:[%s4 + $0x18] sm:$0xff]
        %v1120 = vld [vmem:[%s4 + $0x20] sm:$0xff]
        %v1121 = vld [vmem:[%s4 + $0x28] sm:$0xff]
        %v1122 = vld [vmem:[%s4 + $0x30] sm:$0xff]
        %v1123 = vld [vmem:[%s4 + $0x38] sm:$0xff]
        %v1124 = vld [vmem:[%s4 + $0x40] sm:$0xff]
        %v1125 = vld [vmem:[%s4 + $0x48] sm:$0xff]
        %v1126 = vld [vmem:[%s4 + $0x50] sm:$0xff]
        %v1127 = vld [vmem:[%s4 + $0x58] sm:$0xff]
        %v1128 = vld [vmem:[%s4 + $0x60] sm:$0xff]
        %v1129 = vld [vmem:[%s4 + $0x68] sm:$0xff]
        %v1130 = vld [vmem:[%s4 + $0x70] sm:$0xff]
        %v1131 = vld [vmem:[%s4 + $0x78] sm:$0xff]
        %v1132 = vld [vmem:[%s4 + $0x80] sm:$0xff]
        %v1133 = vld [vmem:[%s4 + $0x88] sm:$0xff]
        %v1134 = vld [vmem:[%s4 + $0x90] sm:$0xff]
        %v1135 = vld [vmem:[%s4 + $0x98] sm:$0xff]
        %v1136 = vld [vmem:[%s4 + $0xa0] sm:$0xff]
        %vm1137 = vcmask 326656
        %v1139 = vsel %vm1137, %v1107, 0
        %v1142 = vsel %vm1137, %v1109, 0
        %v1145 = vsel %vm1137, %v1111, 0
        %v1148 = vsel %vm1137, %v1113, 0
        %1150 = vmatprep.subr.mxu0 0.0
        %1151 = vmatpush1.msra.mxu0 %v1131
        %1152 = vmatprep.subr.mxu0 0.0
        %1153 = vmatpush1.msra.mxu0 %v1130
        %1154 = vmatprep.subr.mxu0 0.0
        %1155 = vmatpush1.msra.mxu0 %v1129
        %1156 = vmatprep.subr.mxu0 0.0
        %1157 = vmatpush1.msra.mxu0 %v1128
        %1158 = vmatprep.subr.mxu0 0.0
        %1159 = vmatpush1.msra.mxu0 %v1127
        %1160 = vmatprep.subr.mxu0 0.0
        %1161 = vmatpush1.msra.mxu0 %v1126
        %1162 = vmatprep.subr.mxu0 0.0
        %1163 = vmatpush1.msra.mxu0 %v1125
        %1164 = vmatprep.subr.mxu0 0.0
        %1165 = vmatpush1.msra.mxu0 %v1124
        %1166 = vmatprep.subr.mxu0 0.0
        %1167 = vmatpush1.msra.mxu0 %v1123
        %1168 = vmatprep.subr.mxu0 0.0
        %1169 = vmatpush1.msra.mxu0 %v1122
        %1170 = vmatprep.subr.mxu0 0.0
        %1171 = vmatpush1.msra.mxu0 %v1121
        %1172 = vmatprep.subr.mxu0 0.0
        %1173 = vmatpush1.msra.mxu0 %v1120
        %1174 = vmatprep.subr.mxu0 0.0
        %1175 = vmatpush1.msra.mxu0 %v1119
        %1176 = vmatprep.subr.mxu0 0.0
        %1177 = vmatpush1.msra.mxu0 %v1118
        %1178 = vmatprep.subr.mxu0 0.0
        %1179 = vmatpush1.msra.mxu0 %v1117
        %1180 = vmatprep.subr.mxu0 0.0
        %1181 = vmatpush1.msra.mxu0 %v1116
        %1182 = vmatprep.subr.mxu0 0.0
        %1183 = vmatpush2.msra.mxu0 0.0
        %1184 = vmatprep.subr.mxu0 0.0
        %1185 = vmatpush2.msra.mxu0 0.0
        %1186 = vmatprep.subr.mxu0 0.0
        %1187 = vmatpush2.msra.mxu0 0.0
        %1188 = vmatprep.subr.mxu0 0.0
        %1189 = vmatpush2.msra.mxu0 0.0
        %1190 = vmatprep.subr.mxu0 0.0
        %1191 = vmatpush2.msra.mxu0 0.0
        %1192 = vmatprep.subr.mxu0 0.0
        %1193 = vmatpush2.msra.mxu0 0.0
        %1194 = vmatprep.subr.mxu0 0.0
        %1195 = vmatpush2.msra.mxu0 0.0
        %1196 = vmatprep.subr.mxu0 0.0
        %1197 = vmatpush2.msra.mxu0 0.0
        %1198 = vmatprep.subr.mxu0 0.0
        %1199 = vmatpush2.msra.mxu0 0.0
        %1200 = vmatprep.subr.mxu0 0.0
        %1201 = vmatpush2.msra.mxu0 0.0
        %1202 = vmatprep.subr.mxu0 0.0
        %1203 = vmatpush2.msra.mxu0 0.0
        %1204 = vmatprep.subr.mxu0 0.0
        %1205 = vmatpush2.msra.mxu0 %v1136
        %1206 = vmatprep.subr.mxu0 0.0
        %1207 = vmatpush2.msra.mxu0 %v1135
        %1208 = vmatprep.subr.mxu0 0.0
        %1209 = vmatpush2.msra.mxu0 %v1134
        %1210 = vmatprep.subr.mxu0 0.0
        %1211 = vmatpush2.msra.mxu0 %v1133
        %1212 = vmatprep.subr.mxu0 0.0
        %1213 = vmatpush2.msra.mxu0 %v1132
        %1214 = vmatprep.mubr.f32.mxu0 %v1139
        %1215 = vmatmul.mubr.f32.gmra.mxu0 %v1106
        %v1216 = vpop.f32.mrf.mxu0
        %v1217 = vadd.f32 0.0, %v1216
        %v1218 = vpop.f32.mrf.mxu0
        %1219 = vmatprep.mubr.f32.mxu0 %v1142
        %1220 = vmatmul.mubr.f32.gmra.mxu0 %v1108
        %v1221 = vpop.f32.mrf.mxu0
        %v1222 = vadd.f32 0.0, %v1221
        %v1223 = vpop.f32.mrf.mxu0
        %1224 = vmatprep.mubr.f32.mxu0 %v1145
        %1225 = vmatmul.mubr.f32.gmra.mxu0 %v1110
        %v1226 = vpop.f32.mrf.mxu0
        %v1227 = vadd.f32 0.0, %v1226
        %v1228 = vpop.f32.mrf.mxu0
        %1229 = vmatprep.mubr.f32.mxu0 %v1148
        %1230 = vmatmul.mubr.f32.gmra.mxu0 %v1112
        %v1231 = vpop.f32.mrf.mxu0
        %v1232 = vadd.f32 0.0, %v1231
        %v1233 = vpop.f32.mrf.mxu0
        %1234 = vdwg.mxu0
        %vm1235 = vcmask 228352
        %v1237 = vsel %vm1235, %v1114, 0
        %v1240 = vsel %vm1235, %v1115, 0
        %v1243 = vsel %vm973, %v1232, 0
        %1245 = vmatprep.subr.mxu0 0.0
        %1246 = vmatpush1.msra.mxu0 0.0
        %1247 = vmatprep.subr.mxu0 0.0
        %1248 = vmatpush1.msra.mxu0 0.0
        %1249 = vmatprep.subr.mxu0 0.0
        %1250 = vmatpush1.msra.mxu0 0.0
        %1251 = vmatprep.subr.mxu0 0.0
        %1252 = vmatpush1.msra.mxu0 0.0
        %1253 = vmatprep.subr.mxu0 0.0
        %1254 = vmatpush1.msra.mxu0 0.0
        %1255 = vmatprep.subr.mxu0 0.0
        %1256 = vmatpush1.msra.mxu0 0.0
        %1257 = vmatprep.subr.mxu0 0.0
        %1258 = vmatpush1.msra.mxu0 0.0
        %1259 = vmatprep.subr.mxu0 0.0
        %1260 = vmatpush1.msra.mxu0 0.0
        %1261 = vmatprep.subr.mxu0 0.0
        %1262 = vmatpush1.msra.mxu0 0.0
        %1263 = vmatprep.subr.mxu0 0.0
        %1264 = vmatpush1.msra.mxu0 0.0
        %1265 = vmatprep.subr.mxu0 0.0
        %1266 = vmatpush1.msra.mxu0 0.0
        %1267 = vmatprep.subr.mxu0 0.0
        %1268 = vmatpush1.msra.mxu0 0.0
        %1269 = vmatprep.subr.mxu0 0.0
        %1270 = vmatpush1.msra.mxu0 %v1243
        %1271 = vmatprep.subr.mxu0 0.0
        %1272 = vmatpush1.msra.mxu0 %v1227
        %1273 = vmatprep.subr.mxu0 0.0
        %1274 = vmatpush1.msra.mxu0 %v1222
        %1275 = vmatprep.subr.mxu0 0.0
        %1276 = vmatpush1.msra.mxu0 %v1217
        %1277 = vmatprep.subr.mxu0 0.0
        %1278 = vmatpush2.msra.mxu0 0.0
        %1279 = vmatprep.subr.mxu0 0.0
        %1280 = vmatpush2.msra.mxu0 0.0
        %1281 = vmatprep.subr.mxu0 0.0
        %1282 = vmatpush2.msra.mxu0 0.0
        %1283 = vmatprep.subr.mxu0 0.0
        %1284 = vmatpush2.msra.mxu0 0.0
        %1285 = vmatprep.subr.mxu0 0.0
        %1286 = vmatpush2.msra.mxu0 0.0
        %1287 = vmatprep.subr.mxu0 0.0
        %1288 = vmatpush2.msra.mxu0 0.0
        %1289 = vmatprep.subr.mxu0 0.0
        %1290 = vmatpush2.msra.mxu0 0.0
        %1291 = vmatprep.subr.mxu0 0.0
        %1292 = vmatpush2.msra.mxu0 0.0
        %1293 = vmatprep.subr.mxu0 0.0
        %1294 = vmatpush2.msra.mxu0 0.0
        %1295 = vmatprep.subr.mxu0 0.0
        %1296 = vmatpush2.msra.mxu0 0.0
        %1297 = vmatprep.subr.mxu0 0.0
        %1298 = vmatpush2.msra.mxu0 0.0
        %1299 = vmatprep.subr.mxu0 0.0
        %1300 = vmatpush2.msra.mxu0 0.0
        %1301 = vmatprep.subr.mxu0 0.0
        %1302 = vmatpush2.msra.mxu0 0.0
        %1303 = vmatprep.subr.mxu0 0.0
        %1304 = vmatpush2.msra.mxu0 0.0
        %1305 = vmatprep.subr.mxu0 0.0
        %1306 = vmatpush2.msra.mxu0 0.0
        %1307 = vmatprep.subr.mxu0 0.0
        %1308 = vmatpush2.msra.mxu0 0.0
        %1309 = vmatprep.mubr.f32.mxu0 0.0
        %1310 = vmatmul.mubr.f32.gmra.mxu0 %v1237
        %v1311 = vpop.f32.mrf.mxu0
        %v1312 = vadd.f32 0.0, %v1311
        %v1313 = vpop.f32.mrf.mxu0
        %1314 = vmatprep.mubr.f32.mxu0 0.0
        %1315 = vmatmul.mubr.f32.gmra.mxu0 %v1240
        %v1316 = vpop.f32.mrf.mxu0
        %v1317 = vadd.f32 0.0, %v1316
        %v1318 = vpop.f32.mrf.mxu0
        %1319 = vdwg.mxu0
        %v1320 = vld [vmem:[%s5] sm:$0xff]
        %v1321 = vld [vmem:[%s5 + $0x8] sm:$0xff]
        %v1322 = vld [vmem:[%s5 + $0x10] sm:$0xff]
        %v1323 = vld [vmem:[%s5 + $0x18] sm:$0xff]
        %v1324 = vld [vmem:[%s5 + $0x20] sm:$0xff]
        %v1325 = vld [vmem:[%s5 + $0x28] sm:$0xff]
        %v1326 = vld [vmem:[%s5 + $0x30] sm:$0xff]
        %v1327 = vld [vmem:[%s5 + $0x38] sm:$0xff]
        %v1328 = vld [vmem:[%s5 + $0x40] sm:$0xff]
        %v1329 = vld [vmem:[%s5 + $0x48] sm:$0xff]
        %v1330 = vld [vmem:[%s5 + $0x50] sm:$0xff]
        %v1331 = vld [vmem:[%s5 + $0x58] sm:$0xff]
        %v1332 = vld [vmem:[%s5 + $0x60] sm:$0xff]
        %v1333 = vld [vmem:[%s5 + $0x68] sm:$0xff]
        %v1334 = vld [vmem:[%s5 + $0x70] sm:$0xff]
        %v1335 = vld [vmem:[%s5 + $0x78] sm:$0xff]
        %v1336 = vld [vmem:[%s5 + $0x80] sm:$0xff]
        %v1337 = vld [vmem:[%s5 + $0x88] sm:$0xff]
        %v1338 = vld [vmem:[%s5 + $0x90] sm:$0xff]
        %v1339 = vld [vmem:[%s5 + $0x98] sm:$0xff]
        %v1340 = vld [vmem:[%s5 + $0xa0] sm:$0xf]
        %v1341 = vld [vmem:[%s5 + $0xa8] sm:$0xf]
        %s1342 = scalar_lea.vmem %s5, 176
        %v1343 = vld [vmem:[%s1342] sm:$0xff]
        %v1344 = vld [vmem:[%s1342 + $0x8] sm:$0xff]
        %v1345 = vld [vmem:[%s1342 + $0x10] sm:$0xff]
        %v1346 = vld [vmem:[%s1342 + $0x18] sm:$0xff]
        %v1347 = vld [vmem:[%s1342 + $0x20] sm:$0xff]
        %v1348 = vld [vmem:[%s1342 + $0x28] sm:$0xff]
        %v1349 = vld [vmem:[%s1342 + $0x30] sm:$0xff]
        %v1350 = vld [vmem:[%s1342 + $0x38] sm:$0xff]
        %v1351 = vld [vmem:[%s1342 + $0x40] sm:$0xff]
        %v1352 = vld [vmem:[%s1342 + $0x48] sm:$0xff]
        %v1353 = vld [vmem:[%s1342 + $0x50] sm:$0xff]
        %v1354 = vld [vmem:[%s1342 + $0x58] sm:$0xff]
        %v1355 = vld [vmem:[%s1342 + $0x60] sm:$0xff]
        %v1356 = vld [vmem:[%s1342 + $0x68] sm:$0xff]
        %v1357 = vld [vmem:[%s1342 + $0x70] sm:$0xff]
        %v1358 = vld [vmem:[%s1342 + $0x78] sm:$0xff]
        %v1359 = vld [vmem:[%s1342 + $0x80] sm:$0xff]
        %v1360 = vld [vmem:[%s1342 + $0x88] sm:$0xff]
        %v1361 = vld [vmem:[%s1342 + $0x90] sm:$0xff]
        %v1362 = vld [vmem:[%s1342 + $0x98] sm:$0xff]
        %v1363 = vld [vmem:[%s1342 + $0xa0] sm:$0xf]
        %v1364 = vld [vmem:[%s1342 + $0xa8] sm:$0xf]
        %v1367 = vrot.slane %v1312, 1
        %v1368 = vrot.slane %v1317, 1
        %v1369 = vsel %vm517, %v1367, %v1368
        %vm1370 = vcmask 687104
        %v1371 = vsel %vm1370, %v1369, 0
        %v1373 = vsel %vm1370, %v1368, 0
        %v1376 = vsel %vm973, %v1363, 0
        %v1379 = vsel %vm973, %v1364, 0
        %1381 = vmatprep.subr.mxu0 0.0
        %1382 = vmatpush1.msra.mxu0 0.0
        %1383 = vmatprep.subr.mxu0 0.0
        %1384 = vmatpush1.msra.mxu0 0.0
        %1385 = vmatprep.subr.mxu0 0.0
        %1386 = vmatpush1.msra.mxu0 0.0
        %1387 = vmatprep.subr.mxu0 0.0
        %1388 = vmatpush1.msra.mxu0 0.0
        %1389 = vmatprep.subr.mxu0 0.0
        %1390 = vmatpush1.msra.mxu0 0.0
        %1391 = vmatprep.subr.mxu0 %v1379
        %1392 = vmatpush1.msra.mxu0 %v1376
        %1393 = vmatprep.subr.mxu0 %v1362
        %1394 = vmatpush1.msra.mxu0 %v1361
        %1395 = vmatprep.subr.mxu0 %v1360
        %1396 = vmatpush1.msra.mxu0 %v1359
        %1397 = vmatprep.subr.mxu0 %v1358
        %1398 = vmatpush1.msra.mxu0 %v1357
        %1399 = vmatprep.subr.mxu0 %v1356
        %1400 = vmatpush1.msra.mxu0 %v1355
        %1401 = vmatprep.subr.mxu0 %v1354
        %1402 = vmatpush1.msra.mxu0 %v1353
        %1403 = vmatprep.subr.mxu0 %v1352
        %1404 = vmatpush1.msra.mxu0 %v1351
        %1405 = vmatprep.subr.mxu0 %v1350
        %1406 = vmatpush1.msra.mxu0 %v1349
        %1407 = vmatprep.subr.mxu0 %v1348
        %1408 = vmatpush1.msra.mxu0 %v1347
        %1409 = vmatprep.subr.mxu0 %v1346
        %1410 = vmatpush1.msra.mxu0 %v1345
        %1411 = vmatprep.subr.mxu0 %v1344
        %1412 = vmatpush1.msra.mxu0 %v1343
        %1413 = vmatprep.subr.mxu0 0.0
        %1414 = vmatpush2.msra.mxu0 0.0
        %1415 = vmatprep.subr.mxu0 0.0
        %1416 = vmatpush2.msra.mxu0 0.0
        %1417 = vmatprep.subr.mxu0 0.0
        %1418 = vmatpush2.msra.mxu0 0.0
        %1419 = vmatprep.subr.mxu0 0.0
        %1420 = vmatpush2.msra.mxu0 0.0
        %1421 = vmatprep.subr.mxu0 0.0
        %1422 = vmatpush2.msra.mxu0 0.0
        %1423 = vmatprep.subr.mxu0 0.0
        %1424 = vmatpush2.msra.mxu0 0.0
        %1425 = vmatprep.subr.mxu0 0.0
        %1426 = vmatpush2.msra.mxu0 0.0
        %1427 = vmatprep.subr.mxu0 0.0
        %1428 = vmatpush2.msra.mxu0 0.0
        %1429 = vmatprep.subr.mxu0 0.0
        %1430 = vmatpush2.msra.mxu0 0.0
        %1431 = vmatprep.subr.mxu0 0.0
        %1432 = vmatpush2.msra.mxu0 0.0
        %1433 = vmatprep.subr.mxu0 0.0
        %1434 = vmatpush2.msra.mxu0 0.0
        %1435 = vmatprep.subr.mxu0 0.0
        %1436 = vmatpush2.msra.mxu0 0.0
        %1437 = vmatprep.subr.mxu0 0.0
        %1438 = vmatpush2.msra.mxu0 0.0
        %1439 = vmatprep.subr.mxu0 0.0
        %1440 = vmatpush2.msra.mxu0 0.0
        %1441 = vmatprep.subr.mxu0 0.0
        %1442 = vmatpush2.msra.mxu0 0.0
        %1443 = vmatprep.subr.mxu0 0.0
        %1444 = vmatpush2.msra.mxu0 0.0
        %1445 = vmatprep.mubr.f32.mxu0 0.0
        %1446 = vmatmul.mubr.f32.gmra.mxu0 %v1371
        %v1447 = vpop.f32.mrf.mxu0
        %v1448 = vadd.f32 0.0, %v1447
        %v1449 = vpop.f32.mrf.mxu0
        %v1450 = vadd.f32 0.0, %v1449
        %1451 = vmatprep.mubr.f32.mxu0 0.0
        %1452 = vmatmul.mubr.f32.gmra.mxu0 %v1373
        %v1453 = vpop.f32.mrf.mxu0
        %v1454 = vadd.f32 0.0, %v1453
        %v1455 = vpop.f32.mrf.mxu0
        %v1456 = vadd.f32 0.0, %v1455
        %1457 = vdwg.mxu0
        %v1458 = vsel %vm1370, %v1312, 0
        %v1460 = vsel %vm1370, %v1317, 0
        %v1463 = vsel %vm973, %v1340, 0
        %v1466 = vsel %vm973, %v1341, 0
        %1468 = vmatprep.subr.mxu0 0.0
        %1469 = vmatpush1.msra.mxu0 0.0
        %1470 = vmatprep.subr.mxu0 0.0
        %1471 = vmatpush1.msra.mxu0 0.0
        %1472 = vmatprep.subr.mxu0 0.0
        %1473 = vmatpush1.msra.mxu0 0.0
        %1474 = vmatprep.subr.mxu0 0.0
        %1475 = vmatpush1.msra.mxu0 0.0
        %1476 = vmatprep.subr.mxu0 0.0
        %1477 = vmatpush1.msra.mxu0 0.0
        %1478 = vmatprep.subr.mxu0 %v1466
        %1479 = vmatpush1.msra.mxu0 %v1463
        %1480 = vmatprep.subr.mxu0 %v1339
        %1481 = vmatpush1.msra.mxu0 %v1338
        %1482 = vmatprep.subr.mxu0 %v1337
        %1483 = vmatpush1.msra.mxu0 %v1336
        %1484 = vmatprep.subr.mxu0 %v1335
        %1485 = vmatpush1.msra.mxu0 %v1334
        %1486 = vmatprep.subr.mxu0 %v1333
        %1487 = vmatpush1.msra.mxu0 %v1332
        %1488 = vmatprep.subr.mxu0 %v1331
        %1489 = vmatpush1.msra.mxu0 %v1330
        %1490 = vmatprep.subr.mxu0 %v1329
        %1491 = vmatpush1.msra.mxu0 %v1328
        %1492 = vmatprep.subr.mxu0 %v1327
        %1493 = vmatpush1.msra.mxu0 %v1326
        %1494 = vmatprep.subr.mxu0 %v1325
        %1495 = vmatpush1.msra.mxu0 %v1324
        %1496 = vmatprep.subr.mxu0 %v1323
        %1497 = vmatpush1.msra.mxu0 %v1322
        %1498 = vmatprep.subr.mxu0 %v1321
        %1499 = vmatpush1.msra.mxu0 %v1320
        %1500 = vmatprep.subr.mxu0 0.0
        %1501 = vmatpush2.msra.mxu0 0.0
        %1502 = vmatprep.subr.mxu0 0.0
        %1503 = vmatpush2.msra.mxu0 0.0
        %1504 = vmatprep.subr.mxu0 0.0
        %1505 = vmatpush2.msra.mxu0 0.0
        %1506 = vmatprep.subr.mxu0 0.0
        %1507 = vmatpush2.msra.mxu0 0.0
        %1508 = vmatprep.subr.mxu0 0.0
        %1509 = vmatpush2.msra.mxu0 0.0
        %1510 = vmatprep.subr.mxu0 0.0
        %1511 = vmatpush2.msra.mxu0 0.0
        %1512 = vmatprep.subr.mxu0 0.0
        %1513 = vmatpush2.msra.mxu0 0.0
        %1514 = vmatprep.subr.mxu0 0.0
        %1515 = vmatpush2.msra.mxu0 0.0
        %1516 = vmatprep.subr.mxu0 0.0
        %1517 = vmatpush2.msra.mxu0 0.0
        %1518 = vmatprep.subr.mxu0 0.0
        %1519 = vmatpush2.msra.mxu0 0.0
        %1520 = vmatprep.subr.mxu0 0.0
        %1521 = vmatpush2.msra.mxu0 0.0
        %1522 = vmatprep.subr.mxu0 0.0
        %1523 = vmatpush2.msra.mxu0 0.0
        %1524 = vmatprep.subr.mxu0 0.0
        %1525 = vmatpush2.msra.mxu0 0.0
        %1526 = vmatprep.subr.mxu0 0.0
        %1527 = vmatpush2.msra.mxu0 0.0
        %1528 = vmatprep.subr.mxu0 0.0
        %1529 = vmatpush2.msra.mxu0 0.0
        %1530 = vmatprep.subr.mxu0 0.0
        %1531 = vmatpush2.msra.mxu0 0.0
        %1532 = vmatprep.mubr.f32.mxu0 0.0
        %1533 = vmatmul.mubr.f32.gmra.mxu0 %v1458
        %v1534 = vpop.f32.mrf.mxu0
        %v1535 = vadd.f32 %v1448, %v1534
        %v1536 = vpop.f32.mrf.mxu0
        %v1537 = vadd.f32 %v1450, %v1536
        %1538 = vmatprep.mubr.f32.mxu0 0.0
        %1539 = vmatmul.mubr.f32.gmra.mxu0 %v1460
        %v1540 = vpop.f32.mrf.mxu0
        %v1541 = vadd.f32 %v1454, %v1540
        %v1542 = vpop.f32.mrf.mxu0
        %v1543 = vadd.f32 %v1456, %v1542
        %1544 = vdwg.mxu0
        %s1545 = scalar_lea.vmem %s5, 352
        %v1546 = vld [vmem:[%s1545] sm:$0xff]
        %v1547 = vld [vmem:[%s1545 + $0x8] sm:$0xff]
        %v1548 = vld [vmem:[%s1545 + $0x10] sm:$0xff]
        %v1549 = vld [vmem:[%s1545 + $0x18] sm:$0xff]
        %v1550 = vld [vmem:[%s1545 + $0x20] sm:$0xff]
        %v1551 = vld [vmem:[%s1545 + $0x28] sm:$0xff]
        %v1552 = vld [vmem:[%s1545 + $0x30] sm:$0xff]
        %v1553 = vld [vmem:[%s1545 + $0x38] sm:$0xff]
        %v1554 = vld [vmem:[%s1545 + $0x40] sm:$0xff]
        %v1555 = vld [vmem:[%s1545 + $0x48] sm:$0xff]
        %v1556 = vld [vmem:[%s1545 + $0x50] sm:$0xff]
        %v1557 = vld [vmem:[%s1545 + $0x58] sm:$0xff]
        %v1558 = vld [vmem:[%s1545 + $0x60] sm:$0xff]
        %v1559 = vld [vmem:[%s1545 + $0x68] sm:$0xff]
        %v1560 = vld [vmem:[%s1545 + $0x70] sm:$0xff]
        %v1561 = vld [vmem:[%s1545 + $0x78] sm:$0xff]
        %v1562 = vld [vmem:[%s1545 + $0x80] sm:$0xff]
        %v1563 = vld [vmem:[%s1545 + $0x88] sm:$0xff]
        %v1564 = vld [vmem:[%s1545 + $0x90] sm:$0xff]
        %v1565 = vld [vmem:[%s1545 + $0x98] sm:$0xff]
        %v1566 = vld [vmem:[%s1545 + $0xa0] sm:$0xf]
        %v1567 = vld [vmem:[%s1545 + $0xa8] sm:$0xf]
        %v1568 = vrot.slane %v1312, 2
        %v1569 = vrot.slane %v1317, 2
        %v1570 = vsel %vm729, %v1568, %v1569
        %v1571 = vsel %vm1370, %v1570, 0
        %v1573 = vsel %vm1370, %v1569, 0
        %v1576 = vsel %vm973, %v1566, 0
        %v1579 = vsel %vm973, %v1567, 0
        %1581 = vmatprep.subr.mxu0 0.0
        %1582 = vmatpush1.msra.mxu0 0.0
        %1583 = vmatprep.subr.mxu0 0.0
        %1584 = vmatpush1.msra.mxu0 0.0
        %1585 = vmatprep.subr.mxu0 0.0
        %1586 = vmatpush1.msra.mxu0 0.0
        %1587 = vmatprep.subr.mxu0 0.0
        %1588 = vmatpush1.msra.mxu0 0.0
        %1589 = vmatprep.subr.mxu0 0.0
        %1590 = vmatpush1.msra.mxu0 0.0
        %1591 = vmatprep.subr.mxu0 %v1579
        %1592 = vmatpush1.msra.mxu0 %v1576
        %1593 = vmatprep.subr.mxu0 %v1565
        %1594 = vmatpush1.msra.mxu0 %v1564
        %1595 = vmatprep.subr.mxu0 %v1563
        %1596 = vmatpush1.msra.mxu0 %v1562
        %1597 = vmatprep.subr.mxu0 %v1561
        %1598 = vmatpush1.msra.mxu0 %v1560
        %1599 = vmatprep.subr.mxu0 %v1559
        %1600 = vmatpush1.msra.mxu0 %v1558
        %1601 = vmatprep.subr.mxu0 %v1557
        %1602 = vmatpush1.msra.mxu0 %v1556
        %1603 = vmatprep.subr.mxu0 %v1555
        %1604 = vmatpush1.msra.mxu0 %v1554
        %1605 = vmatprep.subr.mxu0 %v1553
        %1606 = vmatpush1.msra.mxu0 %v1552
        %1607 = vmatprep.subr.mxu0 %v1551
        %1608 = vmatpush1.msra.mxu0 %v1550
        %1609 = vmatprep.subr.mxu0 %v1549
        %1610 = vmatpush1.msra.mxu0 %v1548
        %1611 = vmatprep.subr.mxu0 %v1547
        %1612 = vmatpush1.msra.mxu0 %v1546
        %1613 = vmatprep.subr.mxu0 0.0
        %1614 = vmatpush2.msra.mxu0 0.0
        %1615 = vmatprep.subr.mxu0 0.0
        %1616 = vmatpush2.msra.mxu0 0.0
        %1617 = vmatprep.subr.mxu0 0.0
        %1618 = vmatpush2.msra.mxu0 0.0
        %1619 = vmatprep.subr.mxu0 0.0
        %1620 = vmatpush2.msra.mxu0 0.0
        %1621 = vmatprep.subr.mxu0 0.0
        %1622 = vmatpush2.msra.mxu0 0.0
        %1623 = vmatprep.subr.mxu0 0.0
        %1624 = vmatpush2.msra.mxu0 0.0
        %1625 = vmatprep.subr.mxu0 0.0
        %1626 = vmatpush2.msra.mxu0 0.0
        %1627 = vmatprep.subr.mxu0 0.0
        %1628 = vmatpush2.msra.mxu0 0.0
        %1629 = vmatprep.subr.mxu0 0.0
        %1630 = vmatpush2.msra.mxu0 0.0
        %1631 = vmatprep.subr.mxu0 0.0
        %1632 = vmatpush2.msra.mxu0 0.0
        %1633 = vmatprep.subr.mxu0 0.0
        %1634 = vmatpush2.msra.mxu0 0.0
        %1635 = vmatprep.subr.mxu0 0.0
        %1636 = vmatpush2.msra.mxu0 0.0
        %1637 = vmatprep.subr.mxu0 0.0
        %1638 = vmatpush2.msra.mxu0 0.0
        %1639 = vmatprep.subr.mxu0 0.0
        %1640 = vmatpush2.msra.mxu0 0.0
        %1641 = vmatprep.subr.mxu0 0.0
        %1642 = vmatpush2.msra.mxu0 0.0
        %1643 = vmatprep.subr.mxu0 0.0
        %1644 = vmatpush2.msra.mxu0 0.0
        %1645 = vmatprep.mubr.f32.mxu0 0.0
        %1646 = vmatmul.mubr.f32.gmra.mxu0 %v1571
        %v1647 = vpop.f32.mrf.mxu0
        %v1648 = vadd.f32 0.0, %v1647
        %v1649 = vpop.f32.mrf.mxu0
        %v1650 = vadd.f32 0.0, %v1649
        %1651 = vmatprep.mubr.f32.mxu0 0.0
        %1652 = vmatmul.mubr.f32.gmra.mxu0 %v1573
        %v1653 = vpop.f32.mrf.mxu0
        %v1654 = vadd.f32 0.0, %v1653
        %v1655 = vpop.f32.mrf.mxu0
        %v1656 = vadd.f32 0.0, %v1655
        %1657 = vdwg.mxu0
        %v1658 = vadd.f32 %v1535, %v1648
        %v1659 = vadd.f32 %v1537, %v1650
        %v1660 = vadd.f32 %v1541, %v1654
        %v1661 = vadd.f32 %v1543, %v1656
        %s1662 = scalar_lea.vmem %s5, 528
        %v1663 = vld [vmem:[%s1662] sm:$0xff]
        %v1664 = vld [vmem:[%s1662 + $0x8] sm:$0xff]
        %v1665 = vld [vmem:[%s1662 + $0x10] sm:$0xff]
        %v1666 = vld [vmem:[%s1662 + $0x18] sm:$0xff]
        %v1667 = vld [vmem:[%s1662 + $0x20] sm:$0xff]
        %v1668 = vld [vmem:[%s1662 + $0x28] sm:$0xff]
        %v1669 = vld [vmem:[%s1662 + $0x30] sm:$0xff]
        %v1670 = vld [vmem:[%s1662 + $0x38] sm:$0xff]
        %v1671 = vld [vmem:[%s1662 + $0x40] sm:$0xff]
        %v1672 = vld [vmem:[%s1662 + $0x48] sm:$0xff]
        %v1673 = vld [vmem:[%s1662 + $0x50] sm:$0xff]
        %v1674 = vld [vmem:[%s1662 + $0x58] sm:$0xff]
        %v1675 = vld [vmem:[%s1662 + $0x60] sm:$0xff]
        %v1676 = vld [vmem:[%s1662 + $0x68] sm:$0xff]
        %v1677 = vld [vmem:[%s1662 + $0x70] sm:$0xff]
        %v1678 = vld [vmem:[%s1662 + $0x78] sm:$0xff]
        %v1679 = vld [vmem:[%s1662 + $0x80] sm:$0xff]
        %v1680 = vld [vmem:[%s1662 + $0x88] sm:$0xff]
        %v1681 = vld [vmem:[%s1662 + $0x90] sm:$0xff]
        %v1682 = vld [vmem:[%s1662 + $0x98] sm:$0xff]
        %v1683 = vld [vmem:[%s1662 + $0xa0] sm:$0xf]
        %v1684 = vld [vmem:[%s1662 + $0xa8] sm:$0xf]
        %v1685 = vrot.slane %v1312, 3
        %v1686 = vrot.slane %v1317, 3
        %v1687 = vsel %vm851, %v1685, %v1686
        %v1688 = vsel %vm1370, %v1687, 0
        %v1690 = vsel %vm1370, %v1686, 0
        %v1693 = vsel %vm973, %v1683, 0
        %v1696 = vsel %vm973, %v1684, 0
        %1698 = vmatprep.subr.mxu0 0.0
        %1699 = vmatpush1.msra.mxu0 0.0
        %1700 = vmatprep.subr.mxu0 0.0
        %1701 = vmatpush1.msra.mxu0 0.0
        %1702 = vmatprep.subr.mxu0 0.0
        %1703 = vmatpush1.msra.mxu0 0.0
        %1704 = vmatprep.subr.mxu0 0.0
        %1705 = vmatpush1.msra.mxu0 0.0
        %1706 = vmatprep.subr.mxu0 0.0
        %1707 = vmatpush1.msra.mxu0 0.0
        %1708 = vmatprep.subr.mxu0 %v1696
        %1709 = vmatpush1.msra.mxu0 %v1693
        %1710 = vmatprep.subr.mxu0 %v1682
        %1711 = vmatpush1.msra.mxu0 %v1681
        %1712 = vmatprep.subr.mxu0 %v1680
        %1713 = vmatpush1.msra.mxu0 %v1679
        %1714 = vmatprep.subr.mxu0 %v1678
        %1715 = vmatpush1.msra.mxu0 %v1677
        %1716 = vmatprep.subr.mxu0 %v1676
        %1717 = vmatpush1.msra.mxu0 %v1675
        %1718 = vmatprep.subr.mxu0 %v1674
        %1719 = vmatpush1.msra.mxu0 %v1673
        %1720 = vmatprep.subr.mxu0 %v1672
        %1721 = vmatpush1.msra.mxu0 %v1671
        %1722 = vmatprep.subr.mxu0 %v1670
        %1723 = vmatpush1.msra.mxu0 %v1669
        %1724 = vmatprep.subr.mxu0 %v1668
        %1725 = vmatpush1.msra.mxu0 %v1667
        %1726 = vmatprep.subr.mxu0 %v1666
        %1727 = vmatpush1.msra.mxu0 %v1665
        %1728 = vmatprep.subr.mxu0 %v1664
        %1729 = vmatpush1.msra.mxu0 %v1663
        %1730 = vmatprep.subr.mxu0 0.0
        %1731 = vmatpush2.msra.mxu0 0.0
        %1732 = vmatprep.subr.mxu0 0.0
        %1733 = vmatpush2.msra.mxu0 0.0
        %1734 = vmatprep.subr.mxu0 0.0
        %1735 = vmatpush2.msra.mxu0 0.0
        %1736 = vmatprep.subr.mxu0 0.0
        %1737 = vmatpush2.msra.mxu0 0.0
        %1738 = vmatprep.subr.mxu0 0.0
        %1739 = vmatpush2.msra.mxu0 0.0
        %1740 = vmatprep.subr.mxu0 0.0
        %1741 = vmatpush2.msra.mxu0 0.0
        %1742 = vmatprep.subr.mxu0 0.0
        %1743 = vmatpush2.msra.mxu0 0.0
        %1744 = vmatprep.subr.mxu0 0.0
        %1745 = vmatpush2.msra.mxu0 0.0
        %1746 = vmatprep.subr.mxu0 0.0
        %1747 = vmatpush2.msra.mxu0 0.0
        %1748 = vmatprep.subr.mxu0 0.0
        %1749 = vmatpush2.msra.mxu0 0.0
        %1750 = vmatprep.subr.mxu0 0.0
        %1751 = vmatpush2.msra.mxu0 0.0
        %1752 = vmatprep.subr.mxu0 0.0
        %1753 = vmatpush2.msra.mxu0 0.0
        %1754 = vmatprep.subr.mxu0 0.0
        %1755 = vmatpush2.msra.mxu0 0.0
        %1756 = vmatprep.subr.mxu0 0.0
        %1757 = vmatpush2.msra.mxu0 0.0
        %1758 = vmatprep.subr.mxu0 0.0
        %1759 = vmatpush2.msra.mxu0 0.0
        %1760 = vmatprep.subr.mxu0 0.0
        %1761 = vmatpush2.msra.mxu0 0.0
        %1762 = vmatprep.mubr.f32.mxu0 0.0
        %1763 = vmatmul.mubr.f32.gmra.mxu0 %v1688
        %v1764 = vpop.f32.mrf.mxu0
        %v1765 = vadd.f32 0.0, %v1764
        %v1766 = vpop.f32.mrf.mxu0
        %v1767 = vadd.f32 0.0, %v1766
        %1768 = vmatprep.mubr.f32.mxu0 0.0
        %1769 = vmatmul.mubr.f32.gmra.mxu0 %v1690
        %v1770 = vpop.f32.mrf.mxu0
        %v1771 = vadd.f32 0.0, %v1770
        %v1772 = vpop.f32.mrf.mxu0
        %v1773 = vadd.f32 0.0, %v1772
        %1774 = vdwg.mxu0
        %v1775 = vadd.f32 %v1658, %v1765
        %v1776 = vadd.f32 %v1659, %v1767
        %v1777 = vadd.f32 %v1660, %v1771
        %v1778 = vadd.f32 %v1661, %v1773
        %s1779 = scalar_lea.vmem %s5, 704
        %v1780 = vld [vmem:[%s1779] sm:$0xff]
        %v1781 = vld [vmem:[%s1779 + $0x8] sm:$0xff]
        %v1782 = vld [vmem:[%s1779 + $0x10] sm:$0xff]
        %v1783 = vld [vmem:[%s1779 + $0x18] sm:$0xff]
        %v1784 = vld [vmem:[%s1779 + $0x20] sm:$0xff]
        %v1785 = vld [vmem:[%s1779 + $0x28] sm:$0xff]
        %v1786 = vld [vmem:[%s1779 + $0x30] sm:$0xff]
        %v1787 = vld [vmem:[%s1779 + $0x38] sm:$0xff]
        %v1788 = vld [vmem:[%s1779 + $0x40] sm:$0xff]
        %v1789 = vld [vmem:[%s1779 + $0x48] sm:$0xff]
        %v1790 = vld [vmem:[%s1779 + $0x50] sm:$0xff]
        %v1791 = vld [vmem:[%s1779 + $0x58] sm:$0xff]
        %v1792 = vld [vmem:[%s1779 + $0x60] sm:$0xff]
        %v1793 = vld [vmem:[%s1779 + $0x68] sm:$0xff]
        %v1794 = vld [vmem:[%s1779 + $0x70] sm:$0xff]
        %v1795 = vld [vmem:[%s1779 + $0x78] sm:$0xff]
        %v1796 = vld [vmem:[%s1779 + $0x80] sm:$0xff]
        %v1797 = vld [vmem:[%s1779 + $0x88] sm:$0xff]
        %v1798 = vld [vmem:[%s1779 + $0x90] sm:$0xff]
        %v1799 = vld [vmem:[%s1779 + $0x98] sm:$0xff]
        %v1800 = vld [vmem:[%s1779 + $0xa0] sm:$0xf]
        %v1801 = vld [vmem:[%s1779 + $0xa8] sm:$0xf]
        %v1802 = vrot.slane %v1312, 4
        %v1803 = vrot.slane %v1317, 4
        %v1804 = vsel %vm973, %v1802, %v1803
        %v1805 = vsel %vm1370, %v1804, 0
        %v1807 = vsel %vm1370, %v1803, 0
        %v1810 = vsel %vm973, %v1800, 0
        %v1813 = vsel %vm973, %v1801, 0
        %1815 = vmatprep.subr.mxu0 0.0
        %1816 = vmatpush1.msra.mxu0 0.0
        %1817 = vmatprep.subr.mxu0 0.0
        %1818 = vmatpush1.msra.mxu0 0.0
        %1819 = vmatprep.subr.mxu0 0.0
        %1820 = vmatpush1.msra.mxu0 0.0
        %1821 = vmatprep.subr.mxu0 0.0
        %1822 = vmatpush1.msra.mxu0 0.0
        %1823 = vmatprep.subr.mxu0 0.0
        %1824 = vmatpush1.msra.mxu0 0.0
        %1825 = vmatprep.subr.mxu0 %v1813
        %1826 = vmatpush1.msra.mxu0 %v1810
        %1827 = vmatprep.subr.mxu0 %v1799
        %1828 = vmatpush1.msra.mxu0 %v1798
        %1829 = vmatprep.subr.mxu0 %v1797
        %1830 = vmatpush1.msra.mxu0 %v1796
        %1831 = vmatprep.subr.mxu0 %v1795
        %1832 = vmatpush1.msra.mxu0 %v1794
        %1833 = vmatprep.subr.mxu0 %v1793
        %1834 = vmatpush1.msra.mxu0 %v1792
        %1835 = vmatprep.subr.mxu0 %v1791
        %1836 = vmatpush1.msra.mxu0 %v1790
        %1837 = vmatprep.subr.mxu0 %v1789
        %1838 = vmatpush1.msra.mxu0 %v1788
        %1839 = vmatprep.subr.mxu0 %v1787
        %1840 = vmatpush1.msra.mxu0 %v1786
        %1841 = vmatprep.subr.mxu0 %v1785
        %1842 = vmatpush1.msra.mxu0 %v1784
        %1843 = vmatprep.subr.mxu0 %v1783
        %1844 = vmatpush1.msra.mxu0 %v1782
        %1845 = vmatprep.subr.mxu0 %v1781
        %1846 = vmatpush1.msra.mxu0 %v1780
        %1847 = vmatprep.subr.mxu0 0.0
        %1848 = vmatpush2.msra.mxu0 0.0
        %1849 = vmatprep.subr.mxu0 0.0
        %1850 = vmatpush2.msra.mxu0 0.0
        %1851 = vmatprep.subr.mxu0 0.0
        %1852 = vmatpush2.msra.mxu0 0.0
        %1853 = vmatprep.subr.mxu0 0.0
        %1854 = vmatpush2.msra.mxu0 0.0
        %1855 = vmatprep.subr.mxu0 0.0
        %1856 = vmatpush2.msra.mxu0 0.0
        %1857 = vmatprep.subr.mxu0 0.0
        %1858 = vmatpush2.msra.mxu0 0.0
        %1859 = vmatprep.subr.mxu0 0.0
        %1860 = vmatpush2.msra.mxu0 0.0
        %1861 = vmatprep.subr.mxu0 0.0
        %1862 = vmatpush2.msra.mxu0 0.0
        %1863 = vmatprep.subr.mxu0 0.0
        %1864 = vmatpush2.msra.mxu0 0.0
        %1865 = vmatprep.subr.mxu0 0.0
        %1866 = vmatpush2.msra.mxu0 0.0
        %1867 = vmatprep.subr.mxu0 0.0
        %1868 = vmatpush2.msra.mxu0 0.0
        %1869 = vmatprep.subr.mxu0 0.0
        %1870 = vmatpush2.msra.mxu0 0.0
        %1871 = vmatprep.subr.mxu0 0.0
        %1872 = vmatpush2.msra.mxu0 0.0
        %1873 = vmatprep.subr.mxu0 0.0
        %1874 = vmatpush2.msra.mxu0 0.0
        %1875 = vmatprep.subr.mxu0 0.0
        %1876 = vmatpush2.msra.mxu0 0.0
        %1877 = vmatprep.subr.mxu0 0.0
        %1878 = vmatpush2.msra.mxu0 0.0
        %1879 = vmatprep.mubr.f32.mxu0 0.0
        %1880 = vmatmul.mubr.f32.gmra.mxu0 %v1805
        %v1881 = vpop.f32.mrf.mxu0
        %v1882 = vadd.f32 0.0, %v1881
        %v1883 = vpop.f32.mrf.mxu0
        %v1884 = vadd.f32 0.0, %v1883
        %1885 = vmatprep.mubr.f32.mxu0 0.0
        %1886 = vmatmul.mubr.f32.gmra.mxu0 %v1807
        %v1887 = vpop.f32.mrf.mxu0
        %v1888 = vadd.f32 0.0, %v1887
        %v1889 = vpop.f32.mrf.mxu0
        %v1890 = vadd.f32 0.0, %v1889
        %1891 = vdwg.mxu0
        %v1892 = vadd.f32 %v1775, %v1882
        %v1893 = vadd.f32 %v1776, %v1884
        %v1894 = vadd.f32 %v1777, %v1888
        %v1895 = vadd.f32 %v1778, %v1890
        %v1896 = vld [vmem:[%s6] sm:$0x3]
        %v1898 = vlaneseq
        %v1899 = vshrl.u32 %v1898, 7
        %v1900 = vsub.s32 0, %v1899
        %v1901 = vrot.slane %v1896, %v1900
        %v1902 = vlaneseq
        %v1903 = vshrl.u32 %v1902, 7
        %v1904 = vsub.s32 1, %v1903
        %v1905 = vrot.slane %v1896, %v1904
        %v1908 = vadd.f32 %v1892, %v1901
        %v1909 = vadd.f32 %v1893, %v1905
        %v1910 = vadd.f32 %v1894, %v1901
        %v1911 = vadd.f32 %v1895, %v1905
        %v1912 = vmax.f32 %v1908, 0.0
        %v1913 = vmax.f32 %v1909, 0.0
        %v1914 = vmax.f32 %v1910, 0.0
        %v1915 = vmax.f32 %v1911, 0.0
        %v1916 = vld [vmem:[%s7] sm:$0x1f]
        %v1917 = vld [vmem:[%s8] sm:$0xff]
        %v1918 = vld [vmem:[%s8 + $0x8] sm:$0xff]
        %v1919 = vld [vmem:[%s8 + $0x10] sm:$0xff]
        %v1920 = vld [vmem:[%s8 + $0x18] sm:$0xff]
        %v1921 = vld [vmem:[%s8 + $0x20] sm:$0xff]
        %v1922 = vld [vmem:[%s8 + $0x28] sm:$0xff]
        %v1923 = vld [vmem:[%s8 + $0x30] sm:$0xff]
        %v1924 = vld [vmem:[%s8 + $0x38] sm:$0xff]
        %v1925 = vld [vmem:[%s8 + $0x40] sm:$0xff]
        %v1926 = vld [vmem:[%s8 + $0x48] sm:$0xff]
        %v1927 = vld [vmem:[%s8 + $0x50] sm:$0xff]
        %v1928 = vld [vmem:[%s8 + $0x58] sm:$0xff]
        %v1929 = vld [vmem:[%s8 + $0x60] sm:$0xff]
        %v1930 = vld [vmem:[%s8 + $0x68] sm:$0xff]
        %v1931 = vld [vmem:[%s8 + $0x70] sm:$0xff]
        %v1932 = vld [vmem:[%s8 + $0x78] sm:$0xff]
        %v1933 = vld [vmem:[%s8 + $0x80] sm:$0xff]
        %v1934 = vld [vmem:[%s8 + $0x88] sm:$0xff]
        %v1935 = vld [vmem:[%s8 + $0x90] sm:$0xff]
        %v1936 = vld [vmem:[%s8 + $0x98] sm:$0xff]
        %v1938 = vsel %vm525, %v1913, 0
        %v1941 = vsel %vm525, %v1915, 0
        %1943 = vmatprep.subr.mxu0 0.0
        %1944 = vmatpush1.msra.mxu0 %v1932
        %1945 = vmatprep.subr.mxu0 0.0
        %1946 = vmatpush1.msra.mxu0 %v1931
        %1947 = vmatprep.subr.mxu0 0.0
        %1948 = vmatpush1.msra.mxu0 %v1930
        %1949 = vmatprep.subr.mxu0 0.0
        %1950 = vmatpush1.msra.mxu0 %v1929
        %1951 = vmatprep.subr.mxu0 0.0
        %1952 = vmatpush1.msra.mxu0 %v1928
        %1953 = vmatprep.subr.mxu0 0.0
        %1954 = vmatpush1.msra.mxu0 %v1927
        %1955 = vmatprep.subr.mxu0 0.0
        %1956 = vmatpush1.msra.mxu0 %v1926
        %1957 = vmatprep.subr.mxu0 0.0
        %1958 = vmatpush1.msra.mxu0 %v1925
        %1959 = vmatprep.subr.mxu0 0.0
        %1960 = vmatpush1.msra.mxu0 %v1924
        %1961 = vmatprep.subr.mxu0 0.0
        %1962 = vmatpush1.msra.mxu0 %v1923
        %1963 = vmatprep.subr.mxu0 0.0
        %1964 = vmatpush1.msra.mxu0 %v1922
        %1965 = vmatprep.subr.mxu0 0.0
        %1966 = vmatpush1.msra.mxu0 %v1921
        %1967 = vmatprep.subr.mxu0 0.0
        %1968 = vmatpush1.msra.mxu0 %v1920
        %1969 = vmatprep.subr.mxu0 0.0
        %1970 = vmatpush1.msra.mxu0 %v1919
        %1971 = vmatprep.subr.mxu0 0.0
        %1972 = vmatpush1.msra.mxu0 %v1918
        %1973 = vmatprep.subr.mxu0 0.0
        %1974 = vmatpush1.msra.mxu0 %v1917
        %1975 = vmatprep.subr.mxu0 0.0
        %1976 = vmatpush2.msra.mxu0 0.0
        %1977 = vmatprep.subr.mxu0 0.0
        %1978 = vmatpush2.msra.mxu0 0.0
        %1979 = vmatprep.subr.mxu0 0.0
        %1980 = vmatpush2.msra.mxu0 0.0
        %1981 = vmatprep.subr.mxu0 0.0
        %1982 = vmatpush2.msra.mxu0 0.0
        %1983 = vmatprep.subr.mxu0 0.0
        %1984 = vmatpush2.msra.mxu0 0.0
        %1985 = vmatprep.subr.mxu0 0.0
        %1986 = vmatpush2.msra.mxu0 0.0
        %1987 = vmatprep.subr.mxu0 0.0
        %1988 = vmatpush2.msra.mxu0 0.0
        %1989 = vmatprep.subr.mxu0 0.0
        %1990 = vmatpush2.msra.mxu0 0.0
        %1991 = vmatprep.subr.mxu0 0.0
        %1992 = vmatpush2.msra.mxu0 0.0
        %1993 = vmatprep.subr.mxu0 0.0
        %1994 = vmatpush2.msra.mxu0 0.0
        %1995 = vmatprep.subr.mxu0 0.0
        %1996 = vmatpush2.msra.mxu0 0.0
        %1997 = vmatprep.subr.mxu0 0.0
        %1998 = vmatpush2.msra.mxu0 0.0
        %1999 = vmatprep.subr.mxu0 0.0
        %2000 = vmatpush2.msra.mxu0 %v1936
        %2001 = vmatprep.subr.mxu0 0.0
        %2002 = vmatpush2.msra.mxu0 %v1935
        %2003 = vmatprep.subr.mxu0 0.0
        %2004 = vmatpush2.msra.mxu0 %v1934
        %2005 = vmatprep.subr.mxu0 0.0
        %2006 = vmatpush2.msra.mxu0 %v1933
        %2007 = vmatprep.mubr.f32.mxu0 %v1938
        %2008 = vmatmul.mubr.f32.gmra.mxu0 %v1912
        %v2009 = vpop.f32.mrf.mxu0
        %v2010 = vadd.f32 0.0, %v2009
        %v2011 = vpop.f32.mrf.mxu0
        %2012 = vmatprep.mubr.f32.mxu0 %v1941
        %2013 = vmatmul.mubr.f32.gmra.mxu0 %v1914
        %v2014 = vpop.f32.mrf.mxu0
        %v2015 = vadd.f32 0.0, %v2014
        %v2016 = vpop.f32.mrf.mxu0
        %2017 = vdwg.mxu0
        %vm2018 = vcmask 80896
        %v2020 = vsel %vm2018, %v1916, 0
        %vm2022 = vcmask 1041408
        %v2024 = vsel %vm2022, %v2015, 0
        %2026 = vmatprep.subr.mxu0 0.0
        %2027 = vmatpush1.msra.mxu0 0.0
        %2028 = vmatprep.subr.mxu0 0.0
        %2029 = vmatpush1.msra.mxu0 0.0
        %2030 = vmatprep.subr.mxu0 0.0
        %2031 = vmatpush1.msra.mxu0 0.0
        %2032 = vmatprep.subr.mxu0 0.0
        %2033 = vmatpush1.msra.mxu0 0.0
        %2034 = vmatprep.subr.mxu0 0.0
        %2035 = vmatpush1.msra.mxu0 0.0
        %2036 = vmatprep.subr.mxu0 0.0
        %2037 = vmatpush1.msra.mxu0 0.0
        %2038 = vmatprep.subr.mxu0 0.0
        %2039 = vmatpush1.msra.mxu0 0.0
        %2040 = vmatprep.subr.mxu0 0.0
        %2041 = vmatpush1.msra.mxu0 0.0
        %2042 = vmatprep.subr.mxu0 0.0
        %2043 = vmatpush1.msra.mxu0 0.0
        %2044 = vmatprep.subr.mxu0 0.0
        %2045 = vmatpush1.msra.mxu0 0.0
        %2046 = vmatprep.subr.mxu0 0.0
        %2047 = vmatpush1.msra.mxu0 0.0
        %2048 = vmatprep.subr.mxu0 0.0
        %2049 = vmatpush1.msra.mxu0 0.0
        %2050 = vmatprep.subr.mxu0 0.0
        %2051 = vmatpush1.msra.mxu0 0.0
        %2052 = vmatprep.subr.mxu0 0.0
        %2053 = vmatpush1.msra.mxu0 0.0
        %2054 = vmatprep.subr.mxu0 0.0
        %2055 = vmatpush1.msra.mxu0 %v2024
        %2056 = vmatprep.subr.mxu0 0.0
        %2057 = vmatpush1.msra.mxu0 %v2010
        %2058 = vmatprep.subr.mxu0 0.0
        %2059 = vmatpush2.msra.mxu0 0.0
        %2060 = vmatprep.subr.mxu0 0.0
        %2061 = vmatpush2.msra.mxu0 0.0
        %2062 = vmatprep.subr.mxu0 0.0
        %2063 = vmatpush2.msra.mxu0 0.0
        %2064 = vmatprep.subr.mxu0 0.0
        %2065 = vmatpush2.msra.mxu0 0.0
        %2066 = vmatprep.subr.mxu0 0.0
        %2067 = vmatpush2.msra.mxu0 0.0
        %2068 = vmatprep.subr.mxu0 0.0
        %2069 = vmatpush2.msra.mxu0 0.0
        %2070 = vmatprep.subr.mxu0 0.0
        %2071 = vmatpush2.msra.mxu0 0.0
        %2072 = vmatprep.subr.mxu0 0.0
        %2073 = vmatpush2.msra.mxu0 0.0
        %2074 = vmatprep.subr.mxu0 0.0
        %2075 = vmatpush2.msra.mxu0 0.0
        %2076 = vmatprep.subr.mxu0 0.0
        %2077 = vmatpush2.msra.mxu0 0.0
        %2078 = vmatprep.subr.mxu0 0.0
        %2079 = vmatpush2.msra.mxu0 0.0
        %2080 = vmatprep.subr.mxu0 0.0
        %2081 = vmatpush2.msra.mxu0 0.0
        %2082 = vmatprep.subr.mxu0 0.0
        %2083 = vmatpush2.msra.mxu0 0.0
        %2084 = vmatprep.subr.mxu0 0.0
        %2085 = vmatpush2.msra.mxu0 0.0
        %2086 = vmatprep.subr.mxu0 0.0
        %2087 = vmatpush2.msra.mxu0 0.0
        %2088 = vmatprep.subr.mxu0 0.0
        %2089 = vmatpush2.msra.mxu0 0.0
        %2090 = vmatprep.mubr.f32.mxu0 0.0
        %2091 = vmatmul.mubr.f32.gmra.mxu0 %v2020
        %v2092 = vpop.f32.mrf.mxu0
        %v2093 = vadd.f32 0.0, %v2092
        %v2094 = vpop.f32.mrf.mxu0
        %2095 = vdwg.mxu0
        %v2096 = vld [vmem:[%s10] sm:$0x1]
        %v2097 = vld [vmem:[%s9] sm:$0xff]
        %v2098 = vld [vmem:[%s9 + $0x8] sm:$0xff]
        %v2099 = vld [vmem:[%s9 + $0x10] sm:$0xff]
        %v2100 = vld [vmem:[%s9 + $0x18] sm:$0xff]
        %v2101 = vld [vmem:[%s9 + $0x20] sm:$0xff]
        %v2102 = vld [vmem:[%s9 + $0x28] sm:$0xff]
        %v2103 = vld [vmem:[%s9 + $0x30] sm:$0xff]
        %v2104 = vld [vmem:[%s9 + $0x38] sm:$0xff]
        %v2105 = vld [vmem:[%s9 + $0x40] sm:$0xff]
        %v2106 = vld [vmem:[%s9 + $0x48] sm:$0xff]
        %vm2107 = vcmask 654336
        %v2109 = vsel %vm2107, %v2093, 0
        %2111 = vmatprep.subr.mxu0 0.0
        %2112 = vmatpush1.msra.mxu0 0.0
        %2113 = vmatprep.subr.mxu0 0.0
        %2114 = vmatpush1.msra.mxu0 0.0
        %2115 = vmatprep.subr.mxu0 0.0
        %2116 = vmatpush1.msra.mxu0 0.0
        %2117 = vmatprep.subr.mxu0 0.0
        %2118 = vmatpush1.msra.mxu0 0.0
        %2119 = vmatprep.subr.mxu0 0.0
        %2120 = vmatpush1.msra.mxu0 0.0
        %2121 = vmatprep.subr.mxu0 0.0
        %2122 = vmatpush1.msra.mxu0 0.0
        %2123 = vmatprep.subr.mxu0 0.0
        %2124 = vmatpush1.msra.mxu0 %v2106
        %2125 = vmatprep.subr.mxu0 0.0
        %2126 = vmatpush1.msra.mxu0 %v2105
        %2127 = vmatprep.subr.mxu0 0.0
        %2128 = vmatpush1.msra.mxu0 %v2104
        %2129 = vmatprep.subr.mxu0 0.0
        %2130 = vmatpush1.msra.mxu0 %v2103
        %2131 = vmatprep.subr.mxu0 0.0
        %2132 = vmatpush1.msra.mxu0 %v2102
        %2133 = vmatprep.subr.mxu0 0.0
        %2134 = vmatpush1.msra.mxu0 %v2101
        %2135 = vmatprep.subr.mxu0 0.0
        %2136 = vmatpush1.msra.mxu0 %v2100
        %2137 = vmatprep.subr.mxu0 0.0
        %2138 = vmatpush1.msra.mxu0 %v2099
        %2139 = vmatprep.subr.mxu0 0.0
        %2140 = vmatpush1.msra.mxu0 %v2098
        %2141 = vmatprep.subr.mxu0 0.0
        %2142 = vmatpush1.msra.mxu0 %v2097
        %2143 = vmatprep.subr.mxu0 0.0
        %2144 = vmatpush2.msra.mxu0 0.0
        %2145 = vmatprep.subr.mxu0 0.0
        %2146 = vmatpush2.msra.mxu0 0.0
        %2147 = vmatprep.subr.mxu0 0.0
        %2148 = vmatpush2.msra.mxu0 0.0
        %2149 = vmatprep.subr.mxu0 0.0
        %2150 = vmatpush2.msra.mxu0 0.0
        %2151 = vmatprep.subr.mxu0 0.0
        %2152 = vmatpush2.msra.mxu0 0.0
        %2153 = vmatprep.subr.mxu0 0.0
        %2154 = vmatpush2.msra.mxu0 0.0
        %2155 = vmatprep.subr.mxu0 0.0
        %2156 = vmatpush2.msra.mxu0 0.0
        %2157 = vmatprep.subr.mxu0 0.0
        %2158 = vmatpush2.msra.mxu0 0.0
        %2159 = vmatprep.subr.mxu0 0.0
        %2160 = vmatpush2.msra.mxu0 0.0
        %2161 = vmatprep.subr.mxu0 0.0
        %2162 = vmatpush2.msra.mxu0 0.0
        %2163 = vmatprep.subr.mxu0 0.0
        %2164 = vmatpush2.msra.mxu0 0.0
        %2165 = vmatprep.subr.mxu0 0.0
        %2166 = vmatpush2.msra.mxu0 0.0
        %2167 = vmatprep.subr.mxu0 0.0
        %2168 = vmatpush2.msra.mxu0 0.0
        %2169 = vmatprep.subr.mxu0 0.0
        %2170 = vmatpush2.msra.mxu0 0.0
        %2171 = vmatprep.subr.mxu0 0.0
        %2172 = vmatpush2.msra.mxu0 0.0
        %2173 = vmatprep.subr.mxu0 0.0
        %2174 = vmatpush2.msra.mxu0 0.0
        %2175 = vmatprep.mubr.f32.mxu0 0.0
        %2176 = vmatmul.mubr.f32.gmra.mxu0 %v2109
        %v2177 = vpop.f32.mrf.mxu0
        %v2178 = vadd.f32 0.0, %v2177
        %v2179 = vpop.f32.mrf.mxu0
        %2180 = vdwg.mxu0
        %v2181 = vadd.f32 %v2096, %v2178
        %s2182 = scalar_lea.vmem %s9, 80
        %v2183 = vld [vmem:[%s2182] sm:$0xff]
        %v2184 = vld [vmem:[%s2182 + $0x8] sm:$0xff]
        %v2185 = vld [vmem:[%s2182 + $0x10] sm:$0xff]
        %v2186 = vld [vmem:[%s2182 + $0x18] sm:$0xff]
        %v2187 = vld [vmem:[%s2182 + $0x20] sm:$0xff]
        %v2188 = vld [vmem:[%s2182 + $0x28] sm:$0xff]
        %v2189 = vld [vmem:[%s2182 + $0x30] sm:$0xff]
        %v2190 = vld [vmem:[%s2182 + $0x38] sm:$0xff]
        %v2191 = vld [vmem:[%s2182 + $0x40] sm:$0xff]
        %v2192 = vld [vmem:[%s2182 + $0x48] sm:$0xff]
        %v2193 = vrot.slane %v2093, 1
        %v2194 = vsel %vm2107, %v2193, 0
        %2196 = vmatprep.subr.mxu0 0.0
        %2197 = vmatpush1.msra.mxu0 0.0
        %2198 = vmatprep.subr.mxu0 0.0
        %2199 = vmatpush1.msra.mxu0 0.0
        %2200 = vmatprep.subr.mxu0 0.0
        %2201 = vmatpush1.msra.mxu0 0.0
        %2202 = vmatprep.subr.mxu0 0.0
        %2203 = vmatpush1.msra.mxu0 0.0
        %2204 = vmatprep.subr.mxu0 0.0
        %2205 = vmatpush1.msra.mxu0 0.0
        %2206 = vmatprep.subr.mxu0 0.0
        %2207 = vmatpush1.msra.mxu0 0.0
        %2208 = vmatprep.subr.mxu0 0.0
        %2209 = vmatpush1.msra.mxu0 %v2192
        %2210 = vmatprep.subr.mxu0 0.0
        %2211 = vmatpush1.msra.mxu0 %v2191
        %2212 = vmatprep.subr.mxu0 0.0
        %2213 = vmatpush1.msra.mxu0 %v2190
        %2214 = vmatprep.subr.mxu0 0.0
        %2215 = vmatpush1.msra.mxu0 %v2189
        %2216 = vmatprep.subr.mxu0 0.0
        %2217 = vmatpush1.msra.mxu0 %v2188
        %2218 = vmatprep.subr.mxu0 0.0
        %2219 = vmatpush1.msra.mxu0 %v2187
        %2220 = vmatprep.subr.mxu0 0.0
        %2221 = vmatpush1.msra.mxu0 %v2186
        %2222 = vmatprep.subr.mxu0 0.0
        %2223 = vmatpush1.msra.mxu0 %v2185
        %2224 = vmatprep.subr.mxu0 0.0
        %2225 = vmatpush1.msra.mxu0 %v2184
        %2226 = vmatprep.subr.mxu0 0.0
        %2227 = vmatpush1.msra.mxu0 %v2183
        %2228 = vmatprep.subr.mxu0 0.0
        %2229 = vmatpush2.msra.mxu0 0.0
        %2230 = vmatprep.subr.mxu0 0.0
        %2231 = vmatpush2.msra.mxu0 0.0
        %2232 = vmatprep.subr.mxu0 0.0
        %2233 = vmatpush2.msra.mxu0 0.0
        %2234 = vmatprep.subr.mxu0 0.0
        %2235 = vmatpush2.msra.mxu0 0.0
        %2236 = vmatprep.subr.mxu0 0.0
        %2237 = vmatpush2.msra.mxu0 0.0
        %2238 = vmatprep.subr.mxu0 0.0
        %2239 = vmatpush2.msra.mxu0 0.0
        %2240 = vmatprep.subr.mxu0 0.0
        %2241 = vmatpush2.msra.mxu0 0.0
        %2242 = vmatprep.subr.mxu0 0.0
        %2243 = vmatpush2.msra.mxu0 0.0
        %2244 = vmatprep.subr.mxu0 0.0
        %2245 = vmatpush2.msra.mxu0 0.0
        %2246 = vmatprep.subr.mxu0 0.0
        %2247 = vmatpush2.msra.mxu0 0.0
        %2248 = vmatprep.subr.mxu0 0.0
        %2249 = vmatpush2.msra.mxu0 0.0
        %2250 = vmatprep.subr.mxu0 0.0
        %2251 = vmatpush2.msra.mxu0 0.0
        %2252 = vmatprep.subr.mxu0 0.0
        %2253 = vmatpush2.msra.mxu0 0.0
        %2254 = vmatprep.subr.mxu0 0.0
        %2255 = vmatpush2.msra.mxu0 0.0
        %2256 = vmatprep.subr.mxu0 0.0
        %2257 = vmatpush2.msra.mxu0 0.0
        %2258 = vmatprep.subr.mxu0 0.0
        %2259 = vmatpush2.msra.mxu0 0.0
        %2260 = vmatprep.mubr.f32.mxu0 0.0
        %2261 = vmatmul.mubr.f32.gmra.mxu0 %v2194
        %v2262 = vpop.f32.mrf.mxu0
        %v2263 = vadd.f32 0.0, %v2262
        %v2264 = vpop.f32.mrf.mxu0
        %2265 = vdwg.mxu0
        %v2266 = vadd.f32 %v2181, %v2263
        %s2267 = scalar_lea.vmem %s9, 160
        %v2268 = vld [vmem:[%s2267] sm:$0xff]
        %v2269 = vld [vmem:[%s2267 + $0x8] sm:$0xff]
        %v2270 = vld [vmem:[%s2267 + $0x10] sm:$0xff]
        %v2271 = vld [vmem:[%s2267 + $0x18] sm:$0xff]
        %v2272 = vld [vmem:[%s2267 + $0x20] sm:$0xff]
        %v2273 = vld [vmem:[%s2267 + $0x28] sm:$0xff]
        %v2274 = vld [vmem:[%s2267 + $0x30] sm:$0xff]
        %v2275 = vld [vmem:[%s2267 + $0x38] sm:$0xff]
        %v2276 = vld [vmem:[%s2267 + $0x40] sm:$0xff]
        %v2277 = vld [vmem:[%s2267 + $0x48] sm:$0xff]
        %v2278 = vrot.slane %v2093, 2
        %v2279 = vsel %vm2107, %v2278, 0
        %2281 = vmatprep.subr.mxu0 0.0
        %2282 = vmatpush1.msra.mxu0 0.0
        %2283 = vmatprep.subr.mxu0 0.0
        %2284 = vmatpush1.msra.mxu0 0.0
        %2285 = vmatprep.subr.mxu0 0.0
        %2286 = vmatpush1.msra.mxu0 0.0
        %2287 = vmatprep.subr.mxu0 0.0
        %2288 = vmatpush1.msra.mxu0 0.0
        %2289 = vmatprep.subr.mxu0 0.0
        %2290 = vmatpush1.msra.mxu0 0.0
        %2291 = vmatprep.subr.mxu0 0.0
        %2292 = vmatpush1.msra.mxu0 0.0
        %2293 = vmatprep.subr.mxu0 0.0
        %2294 = vmatpush1.msra.mxu0 %v2277
        %2295 = vmatprep.subr.mxu0 0.0
        %2296 = vmatpush1.msra.mxu0 %v2276
        %2297 = vmatprep.subr.mxu0 0.0
        %2298 = vmatpush1.msra.mxu0 %v2275
        %2299 = vmatprep.subr.mxu0 0.0
        %2300 = vmatpush1.msra.mxu0 %v2274
        %2301 = vmatprep.subr.mxu0 0.0
        %2302 = vmatpush1.msra.mxu0 %v2273
        %2303 = vmatprep.subr.mxu0 0.0
        %2304 = vmatpush1.msra.mxu0 %v2272
        %2305 = vmatprep.subr.mxu0 0.0
        %2306 = vmatpush1.msra.mxu0 %v2271
        %2307 = vmatprep.subr.mxu0 0.0
        %2308 = vmatpush1.msra.mxu0 %v2270
        %2309 = vmatprep.subr.mxu0 0.0
        %2310 = vmatpush1.msra.mxu0 %v2269
        %2311 = vmatprep.subr.mxu0 0.0
        %2312 = vmatpush1.msra.mxu0 %v2268
        %2313 = vmatprep.subr.mxu0 0.0
        %2314 = vmatpush2.msra.mxu0 0.0
        %2315 = vmatprep.subr.mxu0 0.0
        %2316 = vmatpush2.msra.mxu0 0.0
        %2317 = vmatprep.subr.mxu0 0.0
        %2318 = vmatpush2.msra.mxu0 0.0
        %2319 = vmatprep.subr.mxu0 0.0
        %2320 = vmatpush2.msra.mxu0 0.0
        %2321 = vmatprep.subr.mxu0 0.0
        %2322 = vmatpush2.msra.mxu0 0.0
        %2323 = vmatprep.subr.mxu0 0.0
        %2324 = vmatpush2.msra.mxu0 0.0
        %2325 = vmatprep.subr.mxu0 0.0
        %2326 = vmatpush2.msra.mxu0 0.0
        %2327 = vmatprep.subr.mxu0 0.0
        %2328 = vmatpush2.msra.mxu0 0.0
        %2329 = vmatprep.subr.mxu0 0.0
        %2330 = vmatpush2.msra.mxu0 0.0
        %2331 = vmatprep.subr.mxu0 0.0
        %2332 = vmatpush2.msra.mxu0 0.0
        %2333 = vmatprep.subr.mxu0 0.0
        %2334 = vmatpush2.msra.mxu0 0.0
        %2335 = vmatprep.subr.mxu0 0.0
        %2336 = vmatpush2.msra.mxu0 0.0
        %2337 = vmatprep.subr.mxu0 0.0
        %2338 = vmatpush2.msra.mxu0 0.0
        %2339 = vmatprep.subr.mxu0 0.0
        %2340 = vmatpush2.msra.mxu0 0.0
        %2341 = vmatprep.subr.mxu0 0.0
        %2342 = vmatpush2.msra.mxu0 0.0
        %2343 = vmatprep.subr.mxu0 0.0
        %2344 = vmatpush2.msra.mxu0 0.0
        %2345 = vmatprep.mubr.f32.mxu0 0.0
        %2346 = vmatmul.mubr.f32.gmra.mxu0 %v2279
        %v2347 = vpop.f32.mrf.mxu0
        %v2348 = vadd.f32 0.0, %v2347
        %v2349 = vpop.f32.mrf.mxu0
        %2350 = vdwg.mxu0
        %v2351 = vadd.f32 %v2266, %v2348
        %s2352 = scalar_lea.vmem %s9, 240
        %v2353 = vld [vmem:[%s2352] sm:$0xff]
        %v2354 = vld [vmem:[%s2352 + $0x8] sm:$0xff]
        %v2355 = vld [vmem:[%s2352 + $0x10] sm:$0xff]
        %v2356 = vld [vmem:[%s2352 + $0x18] sm:$0xff]
        %v2357 = vld [vmem:[%s2352 + $0x20] sm:$0xff]
        %v2358 = vld [vmem:[%s2352 + $0x28] sm:$0xff]
        %v2359 = vld [vmem:[%s2352 + $0x30] sm:$0xff]
        %v2360 = vld [vmem:[%s2352 + $0x38] sm:$0xff]
        %v2361 = vld [vmem:[%s2352 + $0x40] sm:$0xff]
        %v2362 = vld [vmem:[%s2352 + $0x48] sm:$0xff]
        %v2363 = vrot.slane %v2093, 3
        %v2364 = vsel %vm2107, %v2363, 0
        %2366 = vmatprep.subr.mxu0 0.0
        %2367 = vmatpush1.msra.mxu0 0.0
        %2368 = vmatprep.subr.mxu0 0.0
        %2369 = vmatpush1.msra.mxu0 0.0
        %2370 = vmatprep.subr.mxu0 0.0
        %2371 = vmatpush1.msra.mxu0 0.0
        %2372 = vmatprep.subr.mxu0 0.0
        %2373 = vmatpush1.msra.mxu0 0.0
        %2374 = vmatprep.subr.mxu0 0.0
        %2375 = vmatpush1.msra.mxu0 0.0
        %2376 = vmatprep.subr.mxu0 0.0
        %2377 = vmatpush1.msra.mxu0 0.0
        %2378 = vmatprep.subr.mxu0 0.0
        %2379 = vmatpush1.msra.mxu0 %v2362
        %2380 = vmatprep.subr.mxu0 0.0
        %2381 = vmatpush1.msra.mxu0 %v2361
        %2382 = vmatprep.subr.mxu0 0.0
        %2383 = vmatpush1.msra.mxu0 %v2360
        %2384 = vmatprep.subr.mxu0 0.0
        %2385 = vmatpush1.msra.mxu0 %v2359
        %2386 = vmatprep.subr.mxu0 0.0
        %2387 = vmatpush1.msra.mxu0 %v2358
        %2388 = vmatprep.subr.mxu0 0.0
        %2389 = vmatpush1.msra.mxu0 %v2357
        %2390 = vmatprep.subr.mxu0 0.0
        %2391 = vmatpush1.msra.mxu0 %v2356
        %2392 = vmatprep.subr.mxu0 0.0
        %2393 = vmatpush1.msra.mxu0 %v2355
        %2394 = vmatprep.subr.mxu0 0.0
        %2395 = vmatpush1.msra.mxu0 %v2354
        %2396 = vmatprep.subr.mxu0 0.0
        %2397 = vmatpush1.msra.mxu0 %v2353
        %2398 = vmatprep.subr.mxu0 0.0
        %2399 = vmatpush2.msra.mxu0 0.0
        %2400 = vmatprep.subr.mxu0 0.0
        %2401 = vmatpush2.msra.mxu0 0.0
        %2402 = vmatprep.subr.mxu0 0.0
        %2403 = vmatpush2.msra.mxu0 0.0
        %2404 = vmatprep.subr.mxu0 0.0
        %2405 = vmatpush2.msra.mxu0 0.0
        %2406 = vmatprep.subr.mxu0 0.0
        %2407 = vmatpush2.msra.mxu0 0.0
        %2408 = vmatprep.subr.mxu0 0.0
        %2409 = vmatpush2.msra.mxu0 0.0
        %2410 = vmatprep.subr.mxu0 0.0
        %2411 = vmatpush2.msra.mxu0 0.0
        %2412 = vmatprep.subr.mxu0 0.0
        %2413 = vmatpush2.msra.mxu0 0.0
        %2414 = vmatprep.subr.mxu0 0.0
        %2415 = vmatpush2.msra.mxu0 0.0
        %2416 = vmatprep.subr.mxu0 0.0
        %2417 = vmatpush2.msra.mxu0 0.0
        %2418 = vmatprep.subr.mxu0 0.0
        %2419 = vmatpush2.msra.mxu0 0.0
        %2420 = vmatprep.subr.mxu0 0.0
        %2421 = vmatpush2.msra.mxu0 0.0
        %2422 = vmatprep.subr.mxu0 0.0
        %2423 = vmatpush2.msra.mxu0 0.0
        %2424 = vmatprep.subr.mxu0 0.0
        %2425 = vmatpush2.msra.mxu0 0.0
        %2426 = vmatprep.subr.mxu0 0.0
        %2427 = vmatpush2.msra.mxu0 0.0
        %2428 = vmatprep.subr.mxu0 0.0
        %2429 = vmatpush2.msra.mxu0 0.0
        %2430 = vmatprep.mubr.f32.mxu0 0.0
        %2431 = vmatmul.mubr.f32.gmra.mxu0 %v2364
        %v2432 = vpop.f32.mrf.mxu0
        %v2433 = vadd.f32 0.0, %v2432
        %v2434 = vpop.f32.mrf.mxu0
        %2435 = vdwg.mxu0
        %v2436 = vadd.f32 %v2351, %v2433
        %s2437 = scalar_lea.vmem %s9, 320
        %v2438 = vld [vmem:[%s2437] sm:$0xff]
        %v2439 = vld [vmem:[%s2437 + $0x8] sm:$0xff]
        %v2440 = vld [vmem:[%s2437 + $0x10] sm:$0xff]
        %v2441 = vld [vmem:[%s2437 + $0x18] sm:$0xff]
        %v2442 = vld [vmem:[%s2437 + $0x20] sm:$0xff]
        %v2443 = vld [vmem:[%s2437 + $0x28] sm:$0xff]
        %v2444 = vld [vmem:[%s2437 + $0x30] sm:$0xff]
        %v2445 = vld [vmem:[%s2437 + $0x38] sm:$0xff]
        %v2446 = vld [vmem:[%s2437 + $0x40] sm:$0xff]
        %v2447 = vld [vmem:[%s2437 + $0x48] sm:$0xff]
        %v2448 = vrot.slane %v2093, 4
        %v2449 = vsel %vm2107, %v2448, 0
        %2451 = vmatprep.subr.mxu0 0.0
        %2452 = vmatpush1.msra.mxu0 0.0
        %2453 = vmatprep.subr.mxu0 0.0
        %2454 = vmatpush1.msra.mxu0 0.0
        %2455 = vmatprep.subr.mxu0 0.0
        %2456 = vmatpush1.msra.mxu0 0.0
        %2457 = vmatprep.subr.mxu0 0.0
        %2458 = vmatpush1.msra.mxu0 0.0
        %2459 = vmatprep.subr.mxu0 0.0
        %2460 = vmatpush1.msra.mxu0 0.0
        %2461 = vmatprep.subr.mxu0 0.0
        %2462 = vmatpush1.msra.mxu0 0.0
        %2463 = vmatprep.subr.mxu0 0.0
        %2464 = vmatpush1.msra.mxu0 %v2447
        %2465 = vmatprep.subr.mxu0 0.0
        %2466 = vmatpush1.msra.mxu0 %v2446
        %2467 = vmatprep.subr.mxu0 0.0
        %2468 = vmatpush1.msra.mxu0 %v2445
        %2469 = vmatprep.subr.mxu0 0.0
        %2470 = vmatpush1.msra.mxu0 %v2444
        %2471 = vmatprep.subr.mxu0 0.0
        %2472 = vmatpush1.msra.mxu0 %v2443
        %2473 = vmatprep.subr.mxu0 0.0
        %2474 = vmatpush1.msra.mxu0 %v2442
        %2475 = vmatprep.subr.mxu0 0.0
        %2476 = vmatpush1.msra.mxu0 %v2441
        %2477 = vmatprep.subr.mxu0 0.0
        %2478 = vmatpush1.msra.mxu0 %v2440
        %2479 = vmatprep.subr.mxu0 0.0
        %2480 = vmatpush1.msra.mxu0 %v2439
        %2481 = vmatprep.subr.mxu0 0.0
        %2482 = vmatpush1.msra.mxu0 %v2438
        %2483 = vmatprep.subr.mxu0 0.0
        %2484 = vmatpush2.msra.mxu0 0.0
        %2485 = vmatprep.subr.mxu0 0.0
        %2486 = vmatpush2.msra.mxu0 0.0
        %2487 = vmatprep.subr.mxu0 0.0
        %2488 = vmatpush2.msra.mxu0 0.0
        %2489 = vmatprep.subr.mxu0 0.0
        %2490 = vmatpush2.msra.mxu0 0.0
        %2491 = vmatprep.subr.mxu0 0.0
        %2492 = vmatpush2.msra.mxu0 0.0
        %2493 = vmatprep.subr.mxu0 0.0
        %2494 = vmatpush2.msra.mxu0 0.0
        %2495 = vmatprep.subr.mxu0 0.0
        %2496 = vmatpush2.msra.mxu0 0.0
        %2497 = vmatprep.subr.mxu0 0.0
        %2498 = vmatpush2.msra.mxu0 0.0
        %2499 = vmatprep.subr.mxu0 0.0
        %2500 = vmatpush2.msra.mxu0 0.0
        %2501 = vmatprep.subr.mxu0 0.0
        %2502 = vmatpush2.msra.mxu0 0.0
        %2503 = vmatprep.subr.mxu0 0.0
        %2504 = vmatpush2.msra.mxu0 0.0
        %2505 = vmatprep.subr.mxu0 0.0
        %2506 = vmatpush2.msra.mxu0 0.0
        %2507 = vmatprep.subr.mxu0 0.0
        %2508 = vmatpush2.msra.mxu0 0.0
        %2509 = vmatprep.subr.mxu0 0.0
        %2510 = vmatpush2.msra.mxu0 0.0
        %2511 = vmatprep.subr.mxu0 0.0
        %2512 = vmatpush2.msra.mxu0 0.0
        %2513 = vmatprep.subr.mxu0 0.0
        %2514 = vmatpush2.msra.mxu0 0.0
        %2515 = vmatprep.mubr.f32.mxu0 0.0
        %2516 = vmatmul.mubr.f32.gmra.mxu0 %v2449
        %v2517 = vpop.f32.mrf.mxu0
        %v2518 = vadd.f32 0.0, %v2517
        %v2519 = vpop.f32.mrf.mxu0
        %2520 = vdwg.mxu0
        %v2521 = vadd.f32 %v2436, %v2518
        %v2522 = vmax.f32 %v2521, 0.0
        %v2523 = vld [vmem:[%s11] sm:$0xff]
        %v2524 = vld [vmem:[%s11 + $0x8] sm:$0xff]
        %v2525 = vld [vmem:[%s11 + $0x10] sm:$0xff]
        %v2526 = vld [vmem:[%s11 + $0x18] sm:$0xff]
        %v2527 = vld [vmem:[%s11 + $0x20] sm:$0xff]
        %v2528 = vld [vmem:[%s11 + $0x28] sm:$0xff]
        %v2529 = vld [vmem:[%s11 + $0x30] sm:$0xff]
        %v2530 = vld [vmem:[%s11 + $0x38] sm:$0xff]
        %v2531 = vld [vmem:[%s11 + $0x40] sm:$0xff]
        %v2532 = vld [vmem:[%s11 + $0x48] sm:$0xff]
        %v2533 = vld [vmem:[%s11 + $0x50] sm:$0xff]
        %v2534 = vld [vmem:[%s11 + $0x58] sm:$0xff]
        %v2535 = vld [vmem:[%s11 + $0x60] sm:$0xff]
        %v2536 = vld [vmem:[%s11 + $0x68] sm:$0xff]
        %v2537 = vld [vmem:[%s11 + $0x70] sm:$0xff]
        %v2538 = vld [vmem:[%s12] sm:$0x1]
        %vm2539 = vcmask 982016
        %v2541 = vsel %vm2539, %v2522, 0
        %2543 = vmatprep.subr.mxu0 0.0
        %2544 = vmatpush1.msra.mxu0 0.0
        %2545 = vmatprep.subr.mxu0 0.0
        %2546 = vmatpush1.msra.mxu0 %v2537
        %2547 = vmatprep.subr.mxu0 0.0
        %2548 = vmatpush1.msra.mxu0 %v2536
        %2549 = vmatprep.subr.mxu0 0.0
        %2550 = vmatpush1.msra.mxu0 %v2535
        %2551 = vmatprep.subr.mxu0 0.0
        %2552 = vmatpush1.msra.mxu0 %v2534
        %2553 = vmatprep.subr.mxu0 0.0
        %2554 = vmatpush1.msra.mxu0 %v2533
        %2555 = vmatprep.subr.mxu0 0.0
        %2556 = vmatpush1.msra.mxu0 %v2532
        %2557 = vmatprep.subr.mxu0 0.0
        %2558 = vmatpush1.msra.mxu0 %v2531
        %2559 = vmatprep.subr.mxu0 0.0
        %2560 = vmatpush1.msra.mxu0 %v2530
        %2561 = vmatprep.subr.mxu0 0.0
        %2562 = vmatpush1.msra.mxu0 %v2529
        %2563 = vmatprep.subr.mxu0 0.0
        %2564 = vmatpush1.msra.mxu0 %v2528
        %2565 = vmatprep.subr.mxu0 0.0
        %2566 = vmatpush1.msra.mxu0 %v2527
        %2567 = vmatprep.subr.mxu0 0.0
        %2568 = vmatpush1.msra.mxu0 %v2526
        %2569 = vmatprep.subr.mxu0 0.0
        %2570 = vmatpush1.msra.mxu0 %v2525
        %2571 = vmatprep.subr.mxu0 0.0
        %2572 = vmatpush1.msra.mxu0 %v2524
        %2573 = vmatprep.subr.mxu0 0.0
        %2574 = vmatpush1.msra.mxu0 %v2523
        %2575 = vmatprep.subr.mxu0 0.0
        %2576 = vmatpush2.msra.mxu0 0.0
        %2577 = vmatprep.subr.mxu0 0.0
        %2578 = vmatpush2.msra.mxu0 0.0
        %2579 = vmatprep.subr.mxu0 0.0
        %2580 = vmatpush2.msra.mxu0 0.0
        %2581 = vmatprep.subr.mxu0 0.0
        %2582 = vmatpush2.msra.mxu0 0.0
        %2583 = vmatprep.subr.mxu0 0.0
        %2584 = vmatpush2.msra.mxu0 0.0
        %2585 = vmatprep.subr.mxu0 0.0
        %2586 = vmatpush2.msra.mxu0 0.0
        %2587 = vmatprep.subr.mxu0 0.0
        %2588 = vmatpush2.msra.mxu0 0.0
        %2589 = vmatprep.subr.mxu0 0.0
        %2590 = vmatpush2.msra.mxu0 0.0
        %2591 = vmatprep.subr.mxu0 0.0
        %2592 = vmatpush2.msra.mxu0 0.0
        %2593 = vmatprep.subr.mxu0 0.0
        %2594 = vmatpush2.msra.mxu0 0.0
        %2595 = vmatprep.subr.mxu0 0.0
        %2596 = vmatpush2.msra.mxu0 0.0
        %2597 = vmatprep.subr.mxu0 0.0
        %2598 = vmatpush2.msra.mxu0 0.0
        %2599 = vmatprep.subr.mxu0 0.0
        %2600 = vmatpush2.msra.mxu0 0.0
        %2601 = vmatprep.subr.mxu0 0.0
        %2602 = vmatpush2.msra.mxu0 0.0
        %2603 = vmatprep.subr.mxu0 0.0
        %2604 = vmatpush2.msra.mxu0 0.0
        %2605 = vmatprep.subr.mxu0 0.0
        %2606 = vmatpush2.msra.mxu0 0.0
        %2607 = vmatprep.mubr.f32.mxu0 0.0
        %2608 = vmatmul.mubr.f32.gmra.mxu0 %v2541
        %v2609 = vpop.f32.mrf.mxu0
        %v2610 = vadd.f32 %v2538, %v2609
        %v2611 = vpop.f32.mrf.mxu0
        %2612 = vdwg.mxu0
        %v2613 = vmax.f32 %v2610, 0.0
        %v2614 = vld [vmem:[%s13] sm:$0xff]
        %v2615 = vld [vmem:[%s13 + $0x8] sm:$0xff]
        %v2616 = vld [vmem:[%s13 + $0x10] sm:$0xff]
        %v2617 = vld [vmem:[%s13 + $0x18] sm:$0xff]
        %v2618 = vld [vmem:[%s13 + $0x20] sm:$0xff]
        %v2619 = vld [vmem:[%s13 + $0x28] sm:$0xff]
        %v2620 = vld [vmem:[%s13 + $0x30] sm:$0xff]
        %v2621 = vld [vmem:[%s13 + $0x38] sm:$0xff]
        %v2622 = vld [vmem:[%s13 + $0x40] sm:$0xff]
        %v2623 = vld [vmem:[%s13 + $0x48] sm:$0xff]
        %v2624 = vld [vmem:[%s13 + $0x50] sm:$0xf]
        %v2625 = vld [vmem:[%s14] sm:$0x1]
        %v2627 = vsel %vm1370, %v2613, 0
        %v2630 = vsel %vm973, %v2624, 0
        %2632 = vmatprep.subr.mxu0 0.0
        %2633 = vmatpush1.msra.mxu0 0.0
        %2634 = vmatprep.subr.mxu0 0.0
        %2635 = vmatpush1.msra.mxu0 0.0
        %2636 = vmatprep.subr.mxu0 0.0
        %2637 = vmatpush1.msra.mxu0 0.0
        %2638 = vmatprep.subr.mxu0 0.0
        %2639 = vmatpush1.msra.mxu0 0.0
        %2640 = vmatprep.subr.mxu0 0.0
        %2641 = vmatpush1.msra.mxu0 0.0
        %2642 = vmatprep.subr.mxu0 0.0
        %2643 = vmatpush1.msra.mxu0 %v2630
        %2644 = vmatprep.subr.mxu0 0.0
        %2645 = vmatpush1.msra.mxu0 %v2623
        %2646 = vmatprep.subr.mxu0 0.0
        %2647 = vmatpush1.msra.mxu0 %v2622
        %2648 = vmatprep.subr.mxu0 0.0
        %2649 = vmatpush1.msra.mxu0 %v2621
        %2650 = vmatprep.subr.mxu0 0.0
        %2651 = vmatpush1.msra.mxu0 %v2620
        %2652 = vmatprep.subr.mxu0 0.0
        %2653 = vmatpush1.msra.mxu0 %v2619
        %2654 = vmatprep.subr.mxu0 0.0
        %2655 = vmatpush1.msra.mxu0 %v2618
        %2656 = vmatprep.subr.mxu0 0.0
        %2657 = vmatpush1.msra.mxu0 %v2617
        %2658 = vmatprep.subr.mxu0 0.0
        %2659 = vmatpush1.msra.mxu0 %v2616
        %2660 = vmatprep.subr.mxu0 0.0
        %2661 = vmatpush1.msra.mxu0 %v2615
        %2662 = vmatprep.subr.mxu0 0.0
        %2663 = vmatpush1.msra.mxu0 %v2614
        %2664 = vmatprep.subr.mxu0 0.0
        %2665 = vmatpush2.msra.mxu0 0.0
        %2666 = vmatprep.subr.mxu0 0.0
        %2667 = vmatpush2.msra.mxu0 0.0
        %2668 = vmatprep.subr.mxu0 0.0
        %2669 = vmatpush2.msra.mxu0 0.0
        %2670 = vmatprep.subr.mxu0 0.0
        %2671 = vmatpush2.msra.mxu0 0.0
        %2672 = vmatprep.subr.mxu0 0.0
        %2673 = vmatpush2.msra.mxu0 0.0
        %2674 = vmatprep.subr.mxu0 0.0
        %2675 = vmatpush2.msra.mxu0 0.0
        %2676 = vmatprep.subr.mxu0 0.0
        %2677 = vmatpush2.msra.mxu0 0.0
        %2678 = vmatprep.subr.mxu0 0.0
        %2679 = vmatpush2.msra.mxu0 0.0
        %2680 = vmatprep.subr.mxu0 0.0
        %2681 = vmatpush2.msra.mxu0 0.0
        %2682 = vmatprep.subr.mxu0 0.0
        %2683 = vmatpush2.msra.mxu0 0.0
        %2684 = vmatprep.subr.mxu0 0.0
        %2685 = vmatpush2.msra.mxu0 0.0
        %2686 = vmatprep.subr.mxu0 0.0
        %2687 = vmatpush2.msra.mxu0 0.0
        %2688 = vmatprep.subr.mxu0 0.0
        %2689 = vmatpush2.msra.mxu0 0.0
        %2690 = vmatprep.subr.mxu0 0.0
        %2691 = vmatpush2.msra.mxu0 0.0
        %2692 = vmatprep.subr.mxu0 0.0
        %2693 = vmatpush2.msra.mxu0 0.0
        %2694 = vmatprep.subr.mxu0 0.0
        %2695 = vmatpush2.msra.mxu0 0.0
        %2696 = vmatprep.mubr.f32.mxu0 0.0
        %2697 = vmatmul.mubr.f32.gmra.mxu0 %v2627
        %v2698 = vpop.f32.mrf.mxu0
        %v2699 = vadd.f32 %v2625, %v2698
        %v2700 = vpop.f32.mrf.mxu0
        %2701 = vdwg.mxu0
        %vm2702 = vcmask 73728
        %2703 = vst.msk [vmem:[%s486] sm:$0x1] %vm2702, %v2699
        %s2704 = sand.u32 %s357, 1
        %s2705 = scalar_lea.sflag [#allocation3], %s2704
        %s2706 = sand.u32 %s357, 1
        %s2707 = scalar_lea.vmem [#allocation2], %s2706
        // Predicated region
        $region81: #{lenet_forward.1} parent=79 // pred_check
          %p2708 = pneg %p367
        $region82: #{lenet_forward.1} parent=79 // pred_check_branch
          %2710 = sbr.rel (%p2708) target = $region84
        $region83: #{lenet_forward.1} parent=79 // pred_region
          %s2712 = ssub.s32 16, 16
          %2713 = vsyncadd %s2705, %s2712
          %s2714 = smul.addr %s29, 16
          %s2715 = scalar_lea.hbm %s15, %s2714
          %s2717 = sshll.u32 %s2707, 4
          %s2718 = int_to_ptr.vmem [resolvable:$true] %s2717
          %2720 = dma.vmem_to_hbm [thread:$0]  %s2718, 16, %s2715, %s2705
        $region84: #{lenet_forward.1} parent=79 // pred_fallthru
          _
      $region80: #{lenet_forward.1} parent=5 // pred_fallthru
        _
      %p2721 = scmp.le.s32.totalorder 2, %s24
      // Predicated region
      $region85: #{lenet_forward.1} parent=5 // pred_check
        %p2722 = pneg %p2721
      $region86: #{lenet_forward.1} parent=5 // pred_check_branch
        %2724 = sbr.rel (%p2722) target = $region88
      $region87: #{lenet_forward.1} parent=5 // pred_region
        %s2725 = ssub.s32 %s24, 2
        // Predicated region
        $region89: #{lenet_forward.1} parent=87 // pred_check
          %p2726 = pneg %p373
        $region90: #{lenet_forward.1} parent=87 // pred_check_branch
          %2728 = sbr.rel (%p2726) target = $region92
        $region91: #{lenet_forward.1} parent=87 // pred_region
          %s2729 = sand.u32 %s358, 1
          %s2730 = scalar_lea.sflag [#allocation3], %s2729
          %s2731 = sand.u32 %s358, 1
          %s2732 = scalar_lea.vmem [#allocation2], %s2731
          %2733 = dma.done %s2730, 16
        $region92: #{lenet_forward.1} parent=87 // pred_fallthru
          _
      $region88: #{lenet_forward.1} parent=5 // pred_fallthru
        _
    $region6: #{lenet_forward.1} parent=1 // loop_footer
      %s28 = sadd.s32 1, %s24
    $region7: #{lenet_forward.1} parent=1 // loop_footer_branch
      %23 = sbr.rel target = $region3
    $region8: #{lenet_forward.1} parent=1 // loop_exit
      _
    %2734 = vsyncpa [#allocation3], 1
    %s2735 = scalar_lea.sflag [#allocation3], 1
    %2736 = vsyncpa %s2735, 1

</llo_original>
